<compile_context>
chip_gen: v7x
topology: tpu7x:2x2x1
jax: 0.10.0
libtpu: 0.0.40
codegen_flags: <defaults>
</compile_context>

<pallas_src>
import math
from functools import partial

import jax
import jax.numpy as jnp
from jax.experimental import pallas as pl
from jax.experimental.pallas import tpu as pltpu


# ----------------------------------------------------------------------------
# Kernel: grid = (batch blocks, query-row tiles).
# ----------------------------------------------------------------------------
def _pam_kernel(C, Cp, Tq,
                patches_ref,                 # (Bt, N, 9*C)  bf16 im2col patches
                wc_ref, bc_ref,              # (9*C, C) bf16, (1, C) f32
                wqkv_ref, bqkv_ref,          # (C, 3*Cp) bf16, (1, 3*Cp) f32
                wo_ref, bo_ref,              # (Cp, C) bf16, (1, C) f32
                out_ref,                     # (Bt, Tq, C) f32
                q_s, k_s, v_s):              # (Bt, N, Cp) bf16 scratch
    f32, bf16 = jnp.float32, jnp.bfloat16
    Bt, N, nine_c = patches_ref.shape
    n_qt = N // Tq
    qt = pl.program_id(1)

    # ---- conv + fused q/k/v once per batch block (q-tile axis is resident) --
    @pl.when(qt == 0)
    def _():
        patches = patches_ref[...].reshape(Bt * N, nine_c)       # bf16
        # Conv2d(C, C, 3, padding=1) as ONE im2col matmul, K = 9*C.
        y = jnp.dot(patches, wc_ref[...], preferred_element_type=f32) + bc_ref[...]
        # Fused q/k/v projection; chunks zero-padded to Cp (lane-tile aligned),
        # 1/sqrt(d_k) already folded into the q chunk wrapper-side.
        qkv = jnp.dot(y.astype(bf16), wqkv_ref[...],
                      preferred_element_type=f32) + bqkv_ref[...]
        q_s[...] = qkv[:, :Cp].astype(bf16).reshape(Bt, N, Cp)
        k_s[...] = qkv[:, Cp:2 * Cp].astype(bf16).reshape(Bt, N, Cp)
        v_s[...] = qkv[:, 2 * Cp:].astype(bf16).reshape(Bt, N, Cp)

    # ---- attention for this query-row tile ----------------------------------
    if n_qt == 1:
        q_t = q_s[...]                                           # (Bt, N, Cp)
    else:
        row0 = pl.multiple_of(qt * Tq, Tq)
        q_t = q_s[:, pl.ds(row0, Tq), :]                         # (Bt, Tq, Cp)

    # q @ k^T without materializing k.T (contract last dims of both operands).
    s = jnp.einsum("bqd,bkd->bqk", q_t, k_s[...],
                   preferred_element_type=f32)                   # (Bt, Tq, N)
    m = jnp.max(s, axis=-1, keepdims=True)
    p = jnp.exp(s - m)                                           # f32, unnormalized
    l = jnp.sum(p, axis=-1, keepdims=True)
    # TODO(synk): nn.Dropout(0.1) after softmax is identity in eval mode;
    # training-mode dropout (pltpu.prng_seed / prng_random_bits) not implemented.

    o = jnp.einsum("bqk,bkd->bqd", p.astype(bf16), v_s[...],
                   preferred_element_type=f32)                   # (Bt, Tq, Cp)
    # Normalize AFTER p @ v: scales a (Tq, Cp) block, not (Tq, N).
    o = o * pl.reciprocal(l, approx=True)

    out = jnp.dot(o.reshape(Bt * Tq, Cp).astype(bf16), wo_ref[...],
                  preferred_element_type=f32) + bo_ref[...]      # (Bt*Tq, C)
    # NOTE: for C < 128 this store is lane-masked; a lane-dense repack
    # ((Tq,C) -> (Tq*C//128, 128)) needs an in-kernel relayout crossing (8,128)
    # tiles -- deliberately skipped (compile risk vs. small win at this size).
    out_ref[...] = out.reshape(Bt, Tq, C).astype(out_ref.dtype)


# ----------------------------------------------------------------------------
# Wrapper
# ----------------------------------------------------------------------------
def position_attention_module(x_nchw, params, matmul_dtype=jnp.bfloat16):
    bs, C, H, W = x_nchw.shape
    N = H * W
    LANE = 128
    Cp = ((C + LANE - 1) // LANE) * LANE     # per-head width, lane-tile aligned
    f32 = jnp.float32

    # ---- query-row tile: bounds live logits to (Tq, N) instead of (N, N) ----
    if N <= 512:
        Tq = N
    else:
        Tq = next((t for t in (512, 256, 128, 64, 32, 16, 8) if N % t == 0), N)
        # TODO(synk): if no tile divides N we fall back to the untiled path; a
        # masked last tile would be needed to tile such N exactly.
    n_qt = N // Tq

    # ---- batch block: amortize per-grid-step overhead at tiny N*C -----------
    Bt = 1
    if n_qt == 1 and N * Cp <= 64 * 1024:    # small per-element working set
        for cand in (4, 2):
            if bs % cand == 0:
                Bt = cand
                break
    # TODO(synk): on v7x with bs == 1 a "parallel" q-tile axis (recomputing k/v
    # per core) would keep the second TensorCore busy; not done here.

    # ---- Glue (plain XLA): NCHW -> NHWC, pad, im2col -- all in bf16 ---------
    # Cast BEFORE pad/concat so the 9x-amplified patches stream is bf16
    # end-to-end (dominant HBM stream; matters most on v5e's ~0.8 TB/s).
    x = jnp.transpose(x_nchw, (0, 2, 3, 1)).astype(matmul_dtype)
    xp = jnp.pad(x, ((0, 0), (1, 1), (1, 1), (0, 0)))
    patches = jnp.concatenate(
        [xp[:, dh:dh + H, dw:dw + W, :] for dh in range(3) for dw in range(3)],
        axis=-1).reshape(bs, N, 9 * C)
    # TODO(synk): at large N*C consider moving the conv in-kernel as 9
    # accumulated matmuls over one (H+2, W+2, C) VMEM copy to avoid the 9x
    # activation HBM amplification of wrapper-side im2col.

    # Conv weight HWIO (3,3,C,C) -> (9*C, C); tap order matches the concat.
    wc = params["wc"].reshape(9 * C, C).astype(matmul_dtype)
    bc = params["bc"].reshape(1, C).astype(f32)

    # Fused q/k/v weight (C, 3*Cp); 1/sqrt(d_k) folded into the q chunk;
    # each C-wide chunk zero-padded to Cp (exact math, padded cols are zero).
    scale = 1.0 / math.sqrt(C)

    def pad_out(w, b):
        return jnp.pad(w, ((0, 0), (0, Cp - C))), jnp.pad(b, (0, Cp - C))

    wq, bq = pad_out(params["wq"] * scale, params["bq"] * scale)
    wk, bk = pad_out(params["wk"], params["bk"])
    wv, bv = pad_out(params["wv"], params["bv"])
    wqkv = jnp.concatenate([wq, wk, wv], axis=1).astype(matmul_dtype)  # (C,3Cp)
    bqkv = jnp.concatenate([bq, bk, bv]).reshape(1, 3 * Cp).astype(f32)

    wo = jnp.pad(params["wo"], ((0, Cp - C), (0, 0))).astype(matmul_dtype)
    bo = params["bo"].reshape(1, C).astype(f32)

    def whole(shape):   # grid-invariant block: DMA'd once, single-buffered
        return pl.BlockSpec(shape, lambda b, qt: (0,) * len(shape),
                            pipeline_mode=pl.Buffered(1))

    in_specs = [
        pl.BlockSpec((Bt, N, 9 * C), lambda b, qt: (b, 0, 0)),
        whole((9 * C, C)), whole((1, C)),
        whole((C, 3 * Cp)), whole((1, 3 * Cp)),
        whole((Cp, C)), whole((1, C)),
    ]
    out_spec = pl.BlockSpec((Bt, Tq, C), lambda b, qt: (b, qt, 0))

    # Explicit scoped-VMEM limit per chip generation (leave compiler headroom).
    try:
        phys = int(pltpu.get_tpu_info().vmem_capacity_bytes)
    except Exception:
        phys = 64 * 1024 * 1024
    vmem_limit = int(min((phys * 3) // 4, 110 * 1024 * 1024))

    # Advisory cost estimate (helps XLA schedule surrounding pad/concat ops).
    flops = 2 * bs * N * (9 * C * C + 3 * C * Cp + 2 * N * Cp + Cp * C)
    bytes_accessed = int(
        patches.size * patches.dtype.itemsize
        + (wc.size + wqkv.size + wo.size) * wc.dtype.itemsize
        + (bc.size + bqkv.size + bo.size) * 4
        + bs * N * C * 4)
    cost = pl.CostEstimate(flops=int(flops),
                           transcendentals=int(bs * N * (N + 1)),
                           bytes_accessed=bytes_accessed)

    return pl.pallas_call(
        partial(_pam_kernel, C, Cp, Tq),
        out_shape=jax.ShapeDtypeStruct((bs, N, C), f32),
        grid_spec=pltpu.PrefetchScalarGridSpec(
            num_scalar_prefetch=0,
            grid=(bs // Bt, n_qt),
            in_specs=in_specs,
            out_specs=out_spec,
            scratch_shapes=[pltpu.VMEM((Bt, N, Cp), matmul_dtype)] * 3,
        ),
        compiler_params=pltpu.CompilerParams(
            dimension_semantics=("parallel", "arbitrary"),
            vmem_limit_bytes=vmem_limit),
        cost_estimate=cost,
    )(patches, wc, bc, wqkv, bqkv, wo, bo)


# ----------------------------------------------------------------------------
# Pure-JAX reference (matched MXU precision: bf16 operands, f32 accumulation)
# ----------------------------------------------------------------------------
def reference(x_nchw, params, matmul_dtype=jnp.bfloat16):
    f32, md = jnp.float32, matmul_dtype
    x = jnp.transpose(x_nchw, (0, 2, 3, 1)).astype(f32)
    y = jax.lax.conv_general_dilated(
        x.astype(md), params["wc"].astype(md), window_strides=(1, 1),
        padding="SAME", dimension_numbers=("NHWC", "HWIO", "NHWC"),
        preferred_element_type=f32) + params["bc"]
    bs, H, W, C = x.shape
    y = y.reshape(bs, H * W, C)

    def mm(eq, a, b):
        return jnp.einsum(eq, a.astype(md), b.astype(md),
                          preferred_element_type=f32)

    q = mm("bnc,cd->bnd", y, params["wq"]) + params["bq"]
    k = mm("bnc,cd->bnd", y, params["wk"]) + params["bk"]
    v = mm("bnc,cd->bnd", y, params["wv"]) + params["bv"]
    att = mm("bnc,bmc->bnm", q, k) / math.sqrt(C)
    p = jax.nn.softmax(att, axis=-1)
    o = mm("bnm,bmc->bnc", p, v)
    return mm("bnc,cd->bnd", o, params["wo"]) + params["bo"]


# ----------------------------------------------------------------------------
# Deterministic synthetic parameters (shapes match the module's __init__)
# ----------------------------------------------------------------------------
def make_params(key, d_model):
    keys = jax.random.split(key, 10)
    s_conv = 1.0 / math.sqrt(9 * d_model)
    s_lin = 1.0 / math.sqrt(d_model)
    return {
        "wc": jax.random.normal(keys[0], (3, 3, d_model, d_model), jnp.float32) * s_conv,
        "bc": jax.random.normal(keys[1], (d_model,), jnp.float32) * 0.01,
        "wq": jax.random.normal(keys[2], (d_model, d_model), jnp.float32) * s_lin,
        "bq": jax.random.normal(keys[3], (d_model,), jnp.float32) * 0.01,
        "wk": jax.random.normal(keys[4], (d_model, d_model), jnp.float32) * s_lin,
        "bk": jax.random.normal(keys[5], (d_model,), jnp.float32) * 0.01,
        "wv": jax.random.normal(keys[6], (d_model, d_model), jnp.float32) * s_lin,
        "bv": jax.random.normal(keys[7], (d_model,), jnp.float32) * 0.01,
        "wo": jax.random.normal(keys[8], (d_model, d_model), jnp.float32) * s_lin,
        "bo": jax.random.normal(keys[9], (d_model,), jnp.float32) * 0.01,
    }


if __name__ == "__main__":
    bs, d_model, H, W = 2, 32, 16, 16
    kx, kp = jax.random.split(jax.random.PRNGKey(0))
    x = jax.random.normal(kx, (bs, d_model, H, W), jnp.float32)
    params = make_params(kp, d_model)

    out = position_attention_module(x, params)
    out = jax.block_until_ready(out)

    ref = reference(x, params)
    assert out.shape == (bs, H * W, d_model), out.shape
    max_err = float(jnp.max(jnp.abs(out - ref)))
    assert jnp.allclose(out, ref, atol=2e-2, rtol=2e-2), max_err
    print("KERNEL_OK")
</pallas_src>

<mosaic_0001>
module attributes {stable_mosaic.version = 11 : i64} {
  func.func @_pam_kernel(%arg0: i32, %arg1: i32, %arg2: memref<2x256x288xbf16, #tpu.memory_space<vmem>>, %arg3: memref<288x32xbf16, #tpu.memory_space<vmem>>, %arg4: memref<1x32xf32, #tpu.memory_space<vmem>>, %arg5: memref<32x384xbf16, #tpu.memory_space<vmem>>, %arg6: memref<1x384xf32, #tpu.memory_space<vmem>>, %arg7: memref<128x32xbf16, #tpu.memory_space<vmem>>, %arg8: memref<1x32xf32, #tpu.memory_space<vmem>>, %arg9: memref<2x256x32xf32, #tpu.memory_space<vmem>>, %arg10: memref<2x256x128xbf16, #tpu.memory_space<vmem>>, %arg11: memref<2x256x128xbf16, #tpu.memory_space<vmem>>, %arg12: memref<2x256x128xbf16, #tpu.memory_space<vmem>>) attributes {dimension_semantics = [#tpu.dimension_semantics<parallel>, #tpu.dimension_semantics<arbitrary>], iteration_bounds = array<i64: 1, 1>, scalar_prefetch = 0 : i64, scratch_operands = 3 : i64, tpu.core_type = #tpu.core_type<tc>, window_params = [{transform_indices = @transform_0, window_bounds = array<i64: 2, 256, 288>}, {pipeline_mode = #tpu.pipeline_mode<synchronous>, transform_indices = @transform_1, window_bounds = array<i64: 288, 32>}, {pipeline_mode = #tpu.pipeline_mode<synchronous>, transform_indices = @transform_2, window_bounds = array<i64: 1, 32>}, {pipeline_mode = #tpu.pipeline_mode<synchronous>, transform_indices = @transform_3, window_bounds = array<i64: 32, 384>}, {pipeline_mode = #tpu.pipeline_mode<synchronous>, transform_indices = @transform_4, window_bounds = array<i64: 1, 384>}, {pipeline_mode = #tpu.pipeline_mode<synchronous>, transform_indices = @transform_5, window_bounds = array<i64: 128, 32>}, {pipeline_mode = #tpu.pipeline_mode<synchronous>, transform_indices = @transform_6, window_bounds = array<i64: 1, 32>}, {transform_indices = @transform_7, window_bounds = array<i64: 2, 256, 32>}]} {
    %c0_i32 = arith.constant 0 : i32
    %0 = arith.cmpi eq, %arg1, %c0_i32 : i32
    %1 = arith.extui %0 : i1 to i32
    %c0_i32_0 = arith.constant 0 : i32
    %2 = arith.cmpi ne, %1, %c0_i32_0 : i32
    scf.if %2 {
      %c0_20 = arith.constant 0 : index
      %c0_21 = arith.constant 0 : index
      %c0_22 = arith.constant 0 : index
      %28 = vector.load %arg2[%c0_20, %c0_21, %c0_22] : memref<2x256x288xbf16, #tpu.memory_space<vmem>>, vector<2x256x288xbf16>
      %29 = vector.shape_cast %28 : vector<2x256x288xbf16> to vector<512x288xbf16>
      %c0_23 = arith.constant 0 : index
      %c0_24 = arith.constant 0 : index
      %30 = vector.load %arg3[%c0_23, %c0_24] : memref<288x32xbf16, #tpu.memory_space<vmem>>, vector<288x32xbf16>
      %cst_25 = arith.constant dense<0.000000e+00> : vector<512x32xf32>
      %31 = tpu.matmul %29, %30, %cst_25 {dimension_numbers = #tpu.dot_dimension_numbers<[1], [0], [0], [1], [0, 0, 1, 1], [], []>} : vector<512x288xbf16>, vector<288x32xbf16>, vector<512x32xf32> -> vector<512x32xf32>
      %c0_26 = arith.constant 0 : index
      %c0_27 = arith.constant 0 : index
      %32 = vector.load %arg4[%c0_26, %c0_27] : memref<1x32xf32, #tpu.memory_space<vmem>>, vector<1x32xf32>
      %33 = vector.broadcast %32 : vector<1x32xf32> to vector<512x32xf32>
      %34 = arith.addf %31, %33 : vector<512x32xf32>
      %35 = arith.truncf %34 : vector<512x32xf32> to vector<512x32xbf16>
      %c0_28 = arith.constant 0 : index
      %c0_29 = arith.constant 0 : index
      %36 = vector.load %arg5[%c0_28, %c0_29] : memref<32x384xbf16, #tpu.memory_space<vmem>>, vector<32x384xbf16>
      %cst_30 = arith.constant dense<0.000000e+00> : vector<512x384xf32>
      %37 = tpu.matmul %35, %36, %cst_30 {dimension_numbers = #tpu.dot_dimension_numbers<[1], [0], [0], [1], [0, 0, 1, 1], [], []>} : vector<512x32xbf16>, vector<32x384xbf16>, vector<512x384xf32> -> vector<512x384xf32>
      %c0_31 = arith.constant 0 : index
      %c0_32 = arith.constant 0 : index
      %38 = vector.load %arg6[%c0_31, %c0_32] : memref<1x384xf32, #tpu.memory_space<vmem>>, vector<1x384xf32>
      %39 = vector.broadcast %38 : vector<1x384xf32> to vector<512x384xf32>
      %40 = arith.addf %37, %39 : vector<512x384xf32>
      %41 = vector.extract_strided_slice %40 {offsets = [0, 0], sizes = [512, 128], strides = [1, 1]} : vector<512x384xf32> to vector<512x128xf32>
      %42 = arith.truncf %41 : vector<512x128xf32> to vector<512x128xbf16>
      %43 = vector.shape_cast %42 : vector<512x128xbf16> to vector<2x256x128xbf16>
      %c0_33 = arith.constant 0 : index
      %c0_34 = arith.constant 0 : index
      %c0_35 = arith.constant 0 : index
      %44 = vector.load %arg10[%c0_33, %c0_34, %c0_35] : memref<2x256x128xbf16, #tpu.memory_space<vmem>>, vector<2x256x128xbf16>
      tpu.vector_store %arg10[%c0_33, %c0_34, %c0_35], %43 {strides = array<i32>} : memref<2x256x128xbf16, #tpu.memory_space<vmem>>, vector<2x256x128xbf16>,
      %45 = vector.extract_strided_slice %40 {offsets = [0, 128], sizes = [512, 128], strides = [1, 1]} : vector<512x384xf32> to vector<512x128xf32>
      %46 = arith.truncf %45 : vector<512x128xf32> to vector<512x128xbf16>
      %47 = vector.shape_cast %46 : vector<512x128xbf16> to vector<2x256x128xbf16>
      %c0_36 = arith.constant 0 : index
      %c0_37 = arith.constant 0 : index
      %c0_38 = arith.constant 0 : index
      %48 = vector.load %arg11[%c0_36, %c0_37, %c0_38] : memref<2x256x128xbf16, #tpu.memory_space<vmem>>, vector<2x256x128xbf16>
      tpu.vector_store %arg11[%c0_36, %c0_37, %c0_38], %47 {strides = array<i32>} : memref<2x256x128xbf16, #tpu.memory_space<vmem>>, vector<2x256x128xbf16>,
      %49 = vector.extract_strided_slice %40 {offsets = [0, 256], sizes = [512, 128], strides = [1, 1]} : vector<512x384xf32> to vector<512x128xf32>
      %50 = arith.truncf %49 : vector<512x128xf32> to vector<512x128xbf16>
      %51 = vector.shape_cast %50 : vector<512x128xbf16> to vector<2x256x128xbf16>
      %c0_39 = arith.constant 0 : index
      %c0_40 = arith.constant 0 : index
      %c0_41 = arith.constant 0 : index
      %52 = vector.load %arg12[%c0_39, %c0_40, %c0_41] : memref<2x256x128xbf16, #tpu.memory_space<vmem>>, vector<2x256x128xbf16>
      tpu.vector_store %arg12[%c0_39, %c0_40, %c0_41], %51 {strides = array<i32>} : memref<2x256x128xbf16, #tpu.memory_space<vmem>>, vector<2x256x128xbf16>,
    } else {
    }
    %c0 = arith.constant 0 : index
    %c0_1 = arith.constant 0 : index
    %c0_2 = arith.constant 0 : index
    %3 = vector.load %arg10[%c0, %c0_1, %c0_2] : memref<2x256x128xbf16, #tpu.memory_space<vmem>>, vector<2x256x128xbf16>
    %c0_3 = arith.constant 0 : index
    %c0_4 = arith.constant 0 : index
    %c0_5 = arith.constant 0 : index
    %4 = vector.load %arg11[%c0_3, %c0_4, %c0_5] : memref<2x256x128xbf16, #tpu.memory_space<vmem>>, vector<2x256x128xbf16>
    "tpu.trace_start"() <{level = 10 : i32, message = "bqd,bkd->bqk"}> : () -> ()
    %cst = arith.constant dense<0.000000e+00> : vector<2x256x256xf32>
    %5 = tpu.matmul %3, %4, %cst {dimension_numbers = #tpu.dot_dimension_numbers<[2], [2], [1], [1], [0, 0, 0, 1, 1, 1], [0], [0]>} : vector<2x256x128xbf16>, vector<2x256x128xbf16>, vector<2x256x256xf32> -> vector<2x256x256xf32>
    "tpu.trace_stop"() : () -> ()
    %cst_6 = arith.constant dense<0xFF800000> : vector<2x256xf32>
    %6 = vector.multi_reduction <maximumf>, %5, %cst_6 [2] : vector<2x256x256xf32> to vector<2x256xf32>
    %7 = vector.shape_cast %6 : vector<2x256xf32> to vector<2x256x1xf32>
    %8 = vector.broadcast %7 : vector<2x256x1xf32> to vector<2x256x256xf32>
    %9 = arith.subf %5, %8 : vector<2x256x256xf32>
    %10 = math.exp %9 : vector<2x256x256xf32>
    %cst_7 = arith.constant dense<0.000000e+00> : vector<2x256xf32>
    %11 = vector.multi_reduction <add>, %10, %cst_7 [2] : vector<2x256x256xf32> to vector<2x256xf32>
    %12 = vector.shape_cast %11 : vector<2x256xf32> to vector<2x256x1xf32>
    %13 = arith.truncf %10 : vector<2x256x256xf32> to vector<2x256x256xbf16>
    %c0_8 = arith.constant 0 : index
    %c0_9 = arith.constant 0 : index
    %c0_10 = arith.constant 0 : index
    %14 = vector.load %arg12[%c0_8, %c0_9, %c0_10] : memref<2x256x128xbf16, #tpu.memory_space<vmem>>, vector<2x256x128xbf16>
    "tpu.trace_start"() <{level = 10 : i32, message = "bqk,bkd->bqd"}> : () -> ()
    %cst_11 = arith.constant dense<0.000000e+00> : vector<2x256x128xf32>
    %15 = tpu.matmul %13, %14, %cst_11 {dimension_numbers = #tpu.dot_dimension_numbers<[2], [1], [1], [2], [0, 0, 0, 1, 1, 2], [0], [0]>} : vector<2x256x256xbf16>, vector<2x256x128xbf16>, vector<2x256x128xf32> -> vector<2x256x128xf32>
    "tpu.trace_stop"() : () -> ()
    %16 = tpu.reciprocal %12 {approx = true} : vector<2x256x1xf32> -> vector<2x256x1xf32>
    %17 = vector.broadcast %16 : vector<2x256x1xf32> to vector<2x256x128xf32>
    %18 = arith.mulf %15, %17 : vector<2x256x128xf32>
    %19 = vector.shape_cast %18 : vector<2x256x128xf32> to vector<512x128xf32>
    %20 = arith.truncf %19 : vector<512x128xf32> to vector<512x128xbf16>
    %c0_12 = arith.constant 0 : index
    %c0_13 = arith.constant 0 : index
    %21 = vector.load %arg7[%c0_12, %c0_13] : memref<128x32xbf16, #tpu.memory_space<vmem>>, vector<128x32xbf16>
    %cst_14 = arith.constant dense<0.000000e+00> : vector<512x32xf32>
    %22 = tpu.matmul %20, %21, %cst_14 {dimension_numbers = #tpu.dot_dimension_numbers<[1], [0], [0], [1], [0, 0, 1, 1], [], []>} : vector<512x128xbf16>, vector<128x32xbf16>, vector<512x32xf32> -> vector<512x32xf32>
    %c0_15 = arith.constant 0 : index
    %c0_16 = arith.constant 0 : index
    %23 = vector.load %arg8[%c0_15, %c0_16] : memref<1x32xf32, #tpu.memory_space<vmem>>, vector<1x32xf32>
    %24 = vector.broadcast %23 : vector<1x32xf32> to vector<512x32xf32>
    %25 = arith.addf %22, %24 : vector<512x32xf32>
    %26 = vector.shape_cast %25 : vector<512x32xf32> to vector<2x256x32xf32>
    %c0_17 = arith.constant 0 : index
    %c0_18 = arith.constant 0 : index
    %c0_19 = arith.constant 0 : index
    %27 = vector.load %arg9[%c0_17, %c0_18, %c0_19] : memref<2x256x32xf32, #tpu.memory_space<vmem>>, vector<2x256x32xf32>
    tpu.vector_store %arg9[%c0_17, %c0_18, %c0_19], %26 {strides = array<i32>} : memref<2x256x32xf32, #tpu.memory_space<vmem>>, vector<2x256x32xf32>,
    return
  }
  func.func @transform_0(%arg0: i32, %arg1: i32) -> (i32, i32, i32) {
    %c0_i32 = arith.constant 0 : i32
    %c0_i32_0 = arith.constant 0 : i32
    %c0_i32_1 = arith.constant 0 : i32
    return %arg0, %c0_i32, %c0_i32_0 : i32, i32, i32
  }
  func.func @transform_1(%arg0: i32, %arg1: i32) -> (i32, i32) {
    %c0_i32 = arith.constant 0 : i32
    %c0_i32_0 = arith.constant 0 : i32
    %c0_i32_1 = arith.constant 0 : i32
    return %c0_i32, %c0_i32_0 : i32, i32
  }
  func.func @transform_2(%arg0: i32, %arg1: i32) -> (i32, i32) {
    %c0_i32 = arith.constant 0 : i32
    %c0_i32_0 = arith.constant 0 : i32
    %c0_i32_1 = arith.constant 0 : i32
    return %c0_i32, %c0_i32_0 : i32, i32
  }
  func.func @transform_3(%arg0: i32, %arg1: i32) -> (i32, i32) {
    %c0_i32 = arith.constant 0 : i32
    %c0_i32_0 = arith.constant 0 : i32
    %c0_i32_1 = arith.constant 0 : i32
    return %c0_i32, %c0_i32_0 : i32, i32
  }
  func.func @transform_4(%arg0: i32, %arg1: i32) -> (i32, i32) {
    %c0_i32 = arith.constant 0 : i32
    %c0_i32_0 = arith.constant 0 : i32
    %c0_i32_1 = arith.constant 0 : i32
    return %c0_i32, %c0_i32_0 : i32, i32
  }
  func.func @transform_5(%arg0: i32, %arg1: i32) -> (i32, i32) {
    %c0_i32 = arith.constant 0 : i32
    %c0_i32_0 = arith.constant 0 : i32
    %c0_i32_1 = arith.constant 0 : i32
    return %c0_i32, %c0_i32_0 : i32, i32
  }
  func.func @transform_6(%arg0: i32, %arg1: i32) -> (i32, i32) {
    %c0_i32 = arith.constant 0 : i32
    %c0_i32_0 = arith.constant 0 : i32
    %c0_i32_1 = arith.constant 0 : i32
    return %c0_i32, %c0_i32_0 : i32, i32
  }
  func.func @transform_7(%arg0: i32, %arg1: i32) -> (i32, i32, i32) {
    %c0_i32 = arith.constant 0 : i32
    %c0_i32_0 = arith.constant 0 : i32
    return %arg0, %arg1, %c0_i32 : i32, i32, i32
  }
}

</mosaic_0001>

<llo_original>
// kernel: tpu_custom_call.1
$region0: #{tpu_custom_call.1}
  #allocation0 [shape = 'u32[]', space=smem, size = 0x4, offset = 0x4, fixed_abs, tag = 'smem constant byte address 0x4 - core index']
  #allocation1 [shape = 'u32[144,128]{1,0:T(1,128)}', space=vmem, size = 0x12000, scoped, tag = 'internal scratch']
  #allocation2 [shape = 'bf16[2,256,128]{2,1,0:T(16,128)(2,1)}', space=vmem, size = 0x20000, scoped, tag = 'scratch operand']
  #allocation3 [shape = 'bf16[2,256,128]{2,1,0:T(16,128)(2,1)}', space=vmem, size = 0x20000, scoped, tag = 'scratch operand']
  #allocation4 [shape = 'bf16[2,256,128]{2,1,0:T(16,128)(2,1)}', space=vmem, size = 0x20000, scoped, tag = 'scratch operand']
  %s0 = inlined_call_operand.vmem [shape: bf16[2,256,288], index: 0, kind: input, shape index: {}]
  %s1 = inlined_call_operand.vmem [shape: bf16[288,32], index: 1, kind: input, shape index: {}]
  %s2 = inlined_call_operand.vmem [shape: f32[1,32], index: 2, kind: input, shape index: {}]
  %s3 = inlined_call_operand.vmem [shape: bf16[32,384], index: 3, kind: input, shape index: {}]
  %s4 = inlined_call_operand.vmem [shape: f32[1,384], index: 4, kind: input, shape index: {}]
  %s5 = inlined_call_operand.vmem [shape: bf16[128,32], index: 5, kind: input, shape index: {}]
  %s6 = inlined_call_operand.vmem [shape: f32[1,32], index: 6, kind: input, shape index: {}]
  %s7 = inlined_call_operand.vmem [shape: f32[2,256,32], index: 7, kind: output, shape index: {}]
  %s8 = sld [smem:[#allocation0]]
  $region42: #{tpu_custom_call.1} parent=0
    _
  %s10 = ssub.s32 1, %s8
  %s11 = scalar_select 0, %s10, %s8
  // Predicated region
  $region2: #{tpu_custom_call.1} parent=0 // pred_check
    _
  $region3: #{tpu_custom_call.1} parent=0 // pred_check_branch
    %13 = sbr.rel (0) target = $region5
  $region4: #{tpu_custom_call.1} parent=0 // pred_region
    _
  $region5: #{tpu_custom_call.1} parent=0 // pred_fallthru
    _
  // Predicated region
  $region6: #{tpu_custom_call.1} parent=0 // pred_check
    _
  $region7: #{tpu_custom_call.1} parent=0 // pred_check_branch
    %15 = sbr.rel (0) target = $region9
  $region8: #{tpu_custom_call.1} parent=0 // pred_region
    _
  $region9: #{tpu_custom_call.1} parent=0 // pred_fallthru
    _
  // Predicated region
  $region10: #{tpu_custom_call.1} parent=0 // pred_check
    _
  $region11: #{tpu_custom_call.1} parent=0 // pred_check_branch
    %17 = sbr.rel (0) target = $region13
  $region12: #{tpu_custom_call.1} parent=0 // pred_region
    _
  $region13: #{tpu_custom_call.1} parent=0 // pred_fallthru
    _
  // Predicated region
  $region14: #{tpu_custom_call.1} parent=0 // pred_check
    _
  $region15: #{tpu_custom_call.1} parent=0 // pred_check_branch
    %19 = sbr.rel (0) target = $region17
  $region16: #{tpu_custom_call.1} parent=0 // pred_region
    _
  $region17: #{tpu_custom_call.1} parent=0 // pred_fallthru
    _
  // Predicated region
  $region18: #{tpu_custom_call.1} parent=0 // pred_check
    _
  $region19: #{tpu_custom_call.1} parent=0 // pred_check_branch
    %21 = sbr.rel (0) target = $region21
  $region20: #{tpu_custom_call.1} parent=0 // pred_region
    _
  $region21: #{tpu_custom_call.1} parent=0 // pred_fallthru
    _
  // Predicated region
  $region22: #{tpu_custom_call.1} parent=0 // pred_check
    _
  $region23: #{tpu_custom_call.1} parent=0 // pred_check_branch
    %23 = sbr.rel (0) target = $region25
  $region24: #{tpu_custom_call.1} parent=0 // pred_region
    _
  $region25: #{tpu_custom_call.1} parent=0 // pred_fallthru
    _
  // Predicated region
  $region26: #{tpu_custom_call.1} parent=0 // pred_check
    _
  $region27: #{tpu_custom_call.1} parent=0 // pred_check_branch
    %25 = sbr.rel (0) target = $region29
  $region28: #{tpu_custom_call.1} parent=0 // pred_region
    _
  $region29: #{tpu_custom_call.1} parent=0 // pred_fallthru
    _
  %p27 = scmp.eq.s32.totalorder 0, 0
  // Predicated region
  $region30: #{tpu_custom_call.1} parent=0 // pred_check
    %p28 = pneg %p27
  $region31: #{tpu_custom_call.1} parent=0 // pred_check_branch
    %30 = sbr.rel (%p28) target = $region33
  $region32: #{tpu_custom_call.1} parent=0 // pred_region
    %v31 = vld [vmem:[%s0] sm:$0xff]
    %v32 = vld [vmem:[%s0 + $0x8] sm:$0xf]
    %v33 = vld [vmem:[%s0 + $0xc] sm:$0xff]
    %v34 = vld [vmem:[%s0 + $0x14] sm:$0xf]
    %v35 = vld [vmem:[%s0 + $0x18] sm:$0xff]
    %v36 = vld [vmem:[%s0 + $0x20] sm:$0xf]
    %v37 = vld [vmem:[%s0 + $0x24] sm:$0xff]
    %v38 = vld [vmem:[%s0 + $0x2c] sm:$0xf]
    %v39 = vld [vmem:[%s0 + $0x30] sm:$0xff]
    %v40 = vld [vmem:[%s0 + $0x38] sm:$0xf]
    %v41 = vld [vmem:[%s0 + $0x3c] sm:$0xff]
    %v42 = vld [vmem:[%s0 + $0x44] sm:$0xf]
    %v43 = vld [vmem:[%s0 + $0x48] sm:$0xff]
    %v44 = vld [vmem:[%s0 + $0x50] sm:$0xf]
    %v45 = vld [vmem:[%s0 + $0x54] sm:$0xff]
    %v46 = vld [vmem:[%s0 + $0x5c] sm:$0xf]
    %v47 = vld [vmem:[%s0 + $0x60] sm:$0xff]
    %v48 = vld [vmem:[%s0 + $0x68] sm:$0xf]
    %v49 = vld [vmem:[%s0 + $0x6c] sm:$0xff]
    %v50 = vld [vmem:[%s0 + $0x74] sm:$0xf]
    %v51 = vld [vmem:[%s0 + $0x78] sm:$0xff]
    %v52 = vld [vmem:[%s0 + $0x80] sm:$0xf]
    %v53 = vld [vmem:[%s0 + $0x84] sm:$0xff]
    %v54 = vld [vmem:[%s0 + $0x8c] sm:$0xf]
    %v55 = vld [vmem:[%s0 + $0x90] sm:$0xff]
    %v56 = vld [vmem:[%s0 + $0x98] sm:$0xf]
    %v57 = vld [vmem:[%s0 + $0x9c] sm:$0xff]
    %v58 = vld [vmem:[%s0 + $0xa4] sm:$0xf]
    %v59 = vld [vmem:[%s0 + $0xa8] sm:$0xff]
    %v60 = vld [vmem:[%s0 + $0xb0] sm:$0xf]
    %v61 = vld [vmem:[%s0 + $0xb4] sm:$0xff]
    %v62 = vld [vmem:[%s0 + $0xbc] sm:$0xf]
    %v63 = vld [vmem:[%s0 + $0xc0] sm:$0xff]
    %v64 = vld [vmem:[%s0 + $0xc8] sm:$0xf]
    %v65 = vld [vmem:[%s0 + $0xcc] sm:$0xff]
    %v66 = vld [vmem:[%s0 + $0xd4] sm:$0xf]
    %v67 = vld [vmem:[%s0 + $0xd8] sm:$0xff]
    %v68 = vld [vmem:[%s0 + $0xe0] sm:$0xf]
    %v69 = vld [vmem:[%s0 + $0xe4] sm:$0xff]
    %v70 = vld [vmem:[%s0 + $0xec] sm:$0xf]
    %v71 = vld [vmem:[%s0 + $0xf0] sm:$0xff]
    %v72 = vld [vmem:[%s0 + $0xf8] sm:$0xf]
    %v73 = vld [vmem:[%s0 + $0xfc] sm:$0xff]
    %v74 = vld [vmem:[%s0 + $0x104] sm:$0xf]
    %v75 = vld [vmem:[%s0 + $0x108] sm:$0xff]
    %v76 = vld [vmem:[%s0 + $0x110] sm:$0xf]
    %v77 = vld [vmem:[%s0 + $0x114] sm:$0xff]
    %v78 = vld [vmem:[%s0 + $0x11c] sm:$0xf]
    %v79 = vld [vmem:[%s0 + $0x120] sm:$0xff]
    %v80 = vld [vmem:[%s0 + $0x128] sm:$0xf]
    %v81 = vld [vmem:[%s0 + $0x12c] sm:$0xff]
    %v82 = vld [vmem:[%s0 + $0x134] sm:$0xf]
    %v83 = vld [vmem:[%s0 + $0x138] sm:$0xff]
    %v84 = vld [vmem:[%s0 + $0x140] sm:$0xf]
    %v85 = vld [vmem:[%s0 + $0x144] sm:$0xff]
    %v86 = vld [vmem:[%s0 + $0x14c] sm:$0xf]
    %v87 = vld [vmem:[%s0 + $0x150] sm:$0xff]
    %v88 = vld [vmem:[%s0 + $0x158] sm:$0xf]
    %v89 = vld [vmem:[%s0 + $0x15c] sm:$0xff]
    %v90 = vld [vmem:[%s0 + $0x164] sm:$0xf]
    %v91 = vld [vmem:[%s0 + $0x168] sm:$0xff]
    %v92 = vld [vmem:[%s0 + $0x170] sm:$0xf]
    %v93 = vld [vmem:[%s0 + $0x174] sm:$0xff]
    %v94 = vld [vmem:[%s0 + $0x17c] sm:$0xf]
    %v95 = vld [vmem:[%s0 + $0x180] sm:$0xff]
    %v96 = vld [vmem:[%s0 + $0x188] sm:$0xf]
    %v97 = vld [vmem:[%s0 + $0x18c] sm:$0xff]
    %v98 = vld [vmem:[%s0 + $0x194] sm:$0xf]
    %v99 = vld [vmem:[%s0 + $0x198] sm:$0xff]
    %v100 = vld [vmem:[%s0 + $0x1a0] sm:$0xf]
    %v101 = vld [vmem:[%s0 + $0x1a4] sm:$0xff]
    %v102 = vld [vmem:[%s0 + $0x1ac] sm:$0xf]
    %v103 = vld [vmem:[%s0 + $0x1b0] sm:$0xff]
    %v104 = vld [vmem:[%s0 + $0x1b8] sm:$0xf]
    %v105 = vld [vmem:[%s0 + $0x1bc] sm:$0xff]
    %v106 = vld [vmem:[%s0 + $0x1c4] sm:$0xf]
    %v107 = vld [vmem:[%s0 + $0x1c8] sm:$0xff]
    %v108 = vld [vmem:[%s0 + $0x1d0] sm:$0xf]
    %v109 = vld [vmem:[%s0 + $0x1d4] sm:$0xff]
    %v110 = vld [vmem:[%s0 + $0x1dc] sm:$0xf]
    %v111 = vld [vmem:[%s0 + $0x1e0] sm:$0xff]
    %v112 = vld [vmem:[%s0 + $0x1e8] sm:$0xf]
    %v113 = vld [vmem:[%s0 + $0x1ec] sm:$0xff]
    %v114 = vld [vmem:[%s0 + $0x1f4] sm:$0xf]
    %v115 = vld [vmem:[%s0 + $0x1f8] sm:$0xff]
    %v116 = vld [vmem:[%s0 + $0x200] sm:$0xf]
    %v117 = vld [vmem:[%s0 + $0x204] sm:$0xff]
    %v118 = vld [vmem:[%s0 + $0x20c] sm:$0xf]
    %v119 = vld [vmem:[%s0 + $0x210] sm:$0xff]
    %v120 = vld [vmem:[%s0 + $0x218] sm:$0xf]
    %v121 = vld [vmem:[%s0 + $0x21c] sm:$0xff]
    %v122 = vld [vmem:[%s0 + $0x224] sm:$0xf]
    %v123 = vld [vmem:[%s0 + $0x228] sm:$0xff]
    %v124 = vld [vmem:[%s0 + $0x230] sm:$0xf]
    %v125 = vld [vmem:[%s0 + $0x234] sm:$0xff]
    %v126 = vld [vmem:[%s0 + $0x23c] sm:$0xf]
    %v127 = vld [vmem:[%s0 + $0x240] sm:$0xff]
    %v128 = vld [vmem:[%s0 + $0x248] sm:$0xf]
    %v129 = vld [vmem:[%s0 + $0x24c] sm:$0xff]
    %v130 = vld [vmem:[%s0 + $0x254] sm:$0xf]
    %v131 = vld [vmem:[%s0 + $0x258] sm:$0xff]
    %v132 = vld [vmem:[%s0 + $0x260] sm:$0xf]
    %v133 = vld [vmem:[%s0 + $0x264] sm:$0xff]
    %v134 = vld [vmem:[%s0 + $0x26c] sm:$0xf]
    %v135 = vld [vmem:[%s0 + $0x270] sm:$0xff]
    %v136 = vld [vmem:[%s0 + $0x278] sm:$0xf]
    %v137 = vld [vmem:[%s0 + $0x27c] sm:$0xff]
    %v138 = vld [vmem:[%s0 + $0x284] sm:$0xf]
    %v139 = vld [vmem:[%s0 + $0x288] sm:$0xff]
    %v140 = vld [vmem:[%s0 + $0x290] sm:$0xf]
    %v141 = vld [vmem:[%s0 + $0x294] sm:$0xff]
    %v142 = vld [vmem:[%s0 + $0x29c] sm:$0xf]
    %v143 = vld [vmem:[%s0 + $0x2a0] sm:$0xff]
    %v144 = vld [vmem:[%s0 + $0x2a8] sm:$0xf]
    %v145 = vld [vmem:[%s0 + $0x2ac] sm:$0xff]
    %v146 = vld [vmem:[%s0 + $0x2b4] sm:$0xf]
    %v147 = vld [vmem:[%s0 + $0x2b8] sm:$0xff]
    %v148 = vld [vmem:[%s0 + $0x2c0] sm:$0xf]
    %v149 = vld [vmem:[%s0 + $0x2c4] sm:$0xff]
    %v150 = vld [vmem:[%s0 + $0x2cc] sm:$0xf]
    %v151 = vld [vmem:[%s0 + $0x2d0] sm:$0xff]
    %v152 = vld [vmem:[%s0 + $0x2d8] sm:$0xf]
    %v153 = vld [vmem:[%s0 + $0x2dc] sm:$0xff]
    %v154 = vld [vmem:[%s0 + $0x2e4] sm:$0xf]
    %v155 = vld [vmem:[%s0 + $0x2e8] sm:$0xff]
    %v156 = vld [vmem:[%s0 + $0x2f0] sm:$0xf]
    %v157 = vld [vmem:[%s0 + $0x2f4] sm:$0xff]
    %v158 = vld [vmem:[%s0 + $0x2fc] sm:$0xf]
    %v159 = vld [vmem:[%s1] sm:$0xf]
    %v160 = vld [vmem:[%s1 + $0x4] sm:$0xf]
    %v161 = vld [vmem:[%s1 + $0x8] sm:$0xf]
    %v162 = vld [vmem:[%s1 + $0xc] sm:$0xf]
    %v163 = vld [vmem:[%s1 + $0x10] sm:$0xf]
    %v164 = vld [vmem:[%s1 + $0x14] sm:$0xf]
    %v165 = vld [vmem:[%s1 + $0x18] sm:$0xf]
    %v166 = vld [vmem:[%s1 + $0x1c] sm:$0xf]
    %v167 = vld [vmem:[%s1 + $0x20] sm:$0xf]
    %v168 = vld [vmem:[%s1 + $0x24] sm:$0xf]
    %v169 = vld [vmem:[%s1 + $0x28] sm:$0xf]
    %v170 = vld [vmem:[%s1 + $0x2c] sm:$0xf]
    %v171 = vld [vmem:[%s1 + $0x30] sm:$0xf]
    %v172 = vld [vmem:[%s1 + $0x34] sm:$0xf]
    %v173 = vld [vmem:[%s1 + $0x38] sm:$0xf]
    %v174 = vld [vmem:[%s1 + $0x3c] sm:$0xf]
    %v175 = vld [vmem:[%s1 + $0x40] sm:$0xf]
    %v176 = vld [vmem:[%s1 + $0x44] sm:$0xf]
    %v177 = vld [vmem:[%s1 + $0x48] sm:$0xf]
    %v178 = vld [vmem:[%s1 + $0x4c] sm:$0xf]
    %v179 = vld [vmem:[%s1 + $0x50] sm:$0xf]
    %v180 = vld [vmem:[%s1 + $0x54] sm:$0xf]
    %v181 = vld [vmem:[%s1 + $0x58] sm:$0xf]
    %v182 = vld [vmem:[%s1 + $0x5c] sm:$0xf]
    %v183 = vld [vmem:[%s1 + $0x60] sm:$0xf]
    %v184 = vld [vmem:[%s1 + $0x64] sm:$0xf]
    %v185 = vld [vmem:[%s1 + $0x68] sm:$0xf]
    %v186 = vld [vmem:[%s1 + $0x6c] sm:$0xf]
    %v187 = vld [vmem:[%s1 + $0x70] sm:$0xf]
    %v188 = vld [vmem:[%s1 + $0x74] sm:$0xf]
    %v189 = vld [vmem:[%s1 + $0x78] sm:$0xf]
    %v190 = vld [vmem:[%s1 + $0x7c] sm:$0xf]
    %v191 = vld [vmem:[%s1 + $0x80] sm:$0xf]
    %v192 = vld [vmem:[%s1 + $0x84] sm:$0xf]
    %v193 = vld [vmem:[%s1 + $0x88] sm:$0xf]
    %v194 = vld [vmem:[%s1 + $0x8c] sm:$0xf]
    %v195 = vld [vmem:[%s2] sm:$0x1]
    %v197 = vlaneseq
    %v198 = vshrl.u32 %v197, 7
    %v199 = vsub.s32 0, %v198
    %v200 = vrot.slane %v195, %v199
    %v330 = vunpack.c.l.b16 %v31
    %v331 = vunpack.c.h.b16 %v31
    %v332 = vunpack.c.l.b16 %v32
    %v333 = vunpack.c.l.b16 %v33
    %v334 = vunpack.c.h.b16 %v33
    %v335 = vunpack.c.l.b16 %v34
    %v336 = vunpack.c.l.b16 %v35
    %v337 = vunpack.c.h.b16 %v35
    %v338 = vunpack.c.l.b16 %v36
    %v339 = vunpack.c.l.b16 %v37
    %v340 = vunpack.c.h.b16 %v37
    %v341 = vunpack.c.l.b16 %v38
    %v342 = vunpack.c.l.b16 %v39
    %v343 = vunpack.c.h.b16 %v39
    %v344 = vunpack.c.l.b16 %v40
    %v345 = vunpack.c.l.b16 %v41
    %v346 = vunpack.c.h.b16 %v41
    %v347 = vunpack.c.l.b16 %v42
    %v348 = vunpack.c.l.b16 %v43
    %v349 = vunpack.c.h.b16 %v43
    %v350 = vunpack.c.l.b16 %v44
    %v351 = vunpack.c.l.b16 %v45
    %v352 = vunpack.c.h.b16 %v45
    %v353 = vunpack.c.l.b16 %v46
    %v354 = vunpack.c.l.b16 %v47
    %v355 = vunpack.c.h.b16 %v47
    %v356 = vunpack.c.l.b16 %v48
    %v357 = vunpack.c.l.b16 %v49
    %v358 = vunpack.c.h.b16 %v49
    %v359 = vunpack.c.l.b16 %v50
    %v360 = vunpack.c.l.b16 %v51
    %v361 = vunpack.c.h.b16 %v51
    %v362 = vunpack.c.l.b16 %v52
    %v363 = vunpack.c.l.b16 %v53
    %v364 = vunpack.c.h.b16 %v53
    %v365 = vunpack.c.l.b16 %v54
    %v366 = vunpack.c.l.b16 %v55
    %v367 = vunpack.c.h.b16 %v55
    %v368 = vunpack.c.l.b16 %v56
    %v369 = vunpack.c.l.b16 %v57
    %v370 = vunpack.c.h.b16 %v57
    %v371 = vunpack.c.l.b16 %v58
    %v372 = vunpack.c.l.b16 %v59
    %v373 = vunpack.c.h.b16 %v59
    %v374 = vunpack.c.l.b16 %v60
    %v375 = vunpack.c.l.b16 %v61
    %v376 = vunpack.c.h.b16 %v61
    %v377 = vunpack.c.l.b16 %v62
    %v378 = vunpack.c.l.b16 %v63
    %v379 = vunpack.c.h.b16 %v63
    %v380 = vunpack.c.l.b16 %v64
    %v381 = vunpack.c.l.b16 %v65
    %v382 = vunpack.c.h.b16 %v65
    %v383 = vunpack.c.l.b16 %v66
    %v384 = vunpack.c.l.b16 %v67
    %v385 = vunpack.c.h.b16 %v67
    %v386 = vunpack.c.l.b16 %v68
    %v387 = vunpack.c.l.b16 %v69
    %v388 = vunpack.c.h.b16 %v69
    %v389 = vunpack.c.l.b16 %v70
    %v390 = vunpack.c.l.b16 %v71
    %v391 = vunpack.c.h.b16 %v71
    %v392 = vunpack.c.l.b16 %v72
    %v393 = vunpack.c.l.b16 %v73
    %v394 = vunpack.c.h.b16 %v73
    %v395 = vunpack.c.l.b16 %v74
    %v396 = vunpack.c.l.b16 %v75
    %v397 = vunpack.c.h.b16 %v75
    %v398 = vunpack.c.l.b16 %v76
    %v399 = vunpack.c.l.b16 %v77
    %v400 = vunpack.c.h.b16 %v77
    %v401 = vunpack.c.l.b16 %v78
    %v402 = vunpack.c.l.b16 %v79
    %v403 = vunpack.c.h.b16 %v79
    %v404 = vunpack.c.l.b16 %v80
    %v405 = vunpack.c.l.b16 %v81
    %v406 = vunpack.c.h.b16 %v81
    %v407 = vunpack.c.l.b16 %v82
    %v408 = vunpack.c.l.b16 %v83
    %v409 = vunpack.c.h.b16 %v83
    %v410 = vunpack.c.l.b16 %v84
    %v411 = vunpack.c.l.b16 %v85
    %v412 = vunpack.c.h.b16 %v85
    %v413 = vunpack.c.l.b16 %v86
    %v414 = vunpack.c.l.b16 %v87
    %v415 = vunpack.c.h.b16 %v87
    %v416 = vunpack.c.l.b16 %v88
    %v417 = vunpack.c.l.b16 %v89
    %v418 = vunpack.c.h.b16 %v89
    %v419 = vunpack.c.l.b16 %v90
    %v420 = vunpack.c.l.b16 %v91
    %v421 = vunpack.c.h.b16 %v91
    %v422 = vunpack.c.l.b16 %v92
    %v423 = vunpack.c.l.b16 %v93
    %v424 = vunpack.c.h.b16 %v93
    %v425 = vunpack.c.l.b16 %v94
    %v426 = vunpack.c.l.b16 %v95
    %v427 = vunpack.c.h.b16 %v95
    %v428 = vunpack.c.l.b16 %v96
    %v429 = vunpack.c.l.b16 %v97
    %v430 = vunpack.c.h.b16 %v97
    %v431 = vunpack.c.l.b16 %v98
    %v432 = vunpack.c.l.b16 %v99
    %v433 = vunpack.c.h.b16 %v99
    %v434 = vunpack.c.l.b16 %v100
    %v435 = vunpack.c.l.b16 %v101
    %v436 = vunpack.c.h.b16 %v101
    %v437 = vunpack.c.l.b16 %v102
    %v438 = vunpack.c.l.b16 %v103
    %v439 = vunpack.c.h.b16 %v103
    %v440 = vunpack.c.l.b16 %v104
    %v441 = vunpack.c.l.b16 %v105
    %v442 = vunpack.c.h.b16 %v105
    %v443 = vunpack.c.l.b16 %v106
    %v444 = vunpack.c.l.b16 %v107
    %v445 = vunpack.c.h.b16 %v107
    %v446 = vunpack.c.l.b16 %v108
    %v447 = vunpack.c.l.b16 %v109
    %v448 = vunpack.c.h.b16 %v109
    %v449 = vunpack.c.l.b16 %v110
    %v450 = vunpack.c.l.b16 %v111
    %v451 = vunpack.c.h.b16 %v111
    %v452 = vunpack.c.l.b16 %v112
    %v453 = vunpack.c.l.b16 %v113
    %v454 = vunpack.c.h.b16 %v113
    %v455 = vunpack.c.l.b16 %v114
    %v456 = vunpack.c.l.b16 %v115
    %v457 = vunpack.c.h.b16 %v115
    %v458 = vunpack.c.l.b16 %v116
    %v459 = vunpack.c.l.b16 %v117
    %v460 = vunpack.c.h.b16 %v117
    %v461 = vunpack.c.l.b16 %v118
    %v462 = vunpack.c.l.b16 %v119
    %v463 = vunpack.c.h.b16 %v119
    %v464 = vunpack.c.l.b16 %v120
    %v465 = vunpack.c.l.b16 %v121
    %v466 = vunpack.c.h.b16 %v121
    %v467 = vunpack.c.l.b16 %v122
    %v468 = vunpack.c.l.b16 %v123
    %v469 = vunpack.c.h.b16 %v123
    %v470 = vunpack.c.l.b16 %v124
    %v471 = vunpack.c.l.b16 %v125
    %v472 = vunpack.c.h.b16 %v125
    %v473 = vunpack.c.l.b16 %v126
    %v474 = vunpack.c.l.b16 %v127
    %v475 = vunpack.c.h.b16 %v127
    %v476 = vunpack.c.l.b16 %v128
    %v477 = vunpack.c.l.b16 %v129
    %v478 = vunpack.c.h.b16 %v129
    %v479 = vunpack.c.l.b16 %v130
    %v480 = vunpack.c.l.b16 %v131
    %v481 = vunpack.c.h.b16 %v131
    %v482 = vunpack.c.l.b16 %v132
    %v483 = vunpack.c.l.b16 %v133
    %v484 = vunpack.c.h.b16 %v133
    %v485 = vunpack.c.l.b16 %v134
    %v486 = vunpack.c.l.b16 %v135
    %v487 = vunpack.c.h.b16 %v135
    %v488 = vunpack.c.l.b16 %v136
    %v489 = vunpack.c.l.b16 %v137
    %v490 = vunpack.c.h.b16 %v137
    %v491 = vunpack.c.l.b16 %v138
    %v492 = vunpack.c.l.b16 %v139
    %v493 = vunpack.c.h.b16 %v139
    %v494 = vunpack.c.l.b16 %v140
    %v495 = vunpack.c.l.b16 %v141
    %v496 = vunpack.c.h.b16 %v141
    %v497 = vunpack.c.l.b16 %v142
    %v498 = vunpack.c.l.b16 %v143
    %v499 = vunpack.c.h.b16 %v143
    %v500 = vunpack.c.l.b16 %v144
    %v501 = vunpack.c.l.b16 %v145
    %v502 = vunpack.c.h.b16 %v145
    %v503 = vunpack.c.l.b16 %v146
    %v504 = vunpack.c.l.b16 %v147
    %v505 = vunpack.c.h.b16 %v147
    %v506 = vunpack.c.l.b16 %v148
    %v507 = vunpack.c.l.b16 %v149
    %v508 = vunpack.c.h.b16 %v149
    %v509 = vunpack.c.l.b16 %v150
    %v510 = vunpack.c.l.b16 %v151
    %v511 = vunpack.c.h.b16 %v151
    %v512 = vunpack.c.l.b16 %v152
    %v513 = vunpack.c.l.b16 %v153
    %v514 = vunpack.c.h.b16 %v153
    %v515 = vunpack.c.l.b16 %v154
    %v516 = vunpack.c.l.b16 %v155
    %v517 = vunpack.c.h.b16 %v155
    %v518 = vunpack.c.l.b16 %v156
    %v519 = vunpack.c.l.b16 %v157
    %v520 = vunpack.c.h.b16 %v157
    %v521 = vunpack.c.l.b16 %v158
    %v522 = vpack.c.b16 %v333, %v330
    %v523 = vpack.c.b16 %v334, %v331
    %v524 = vpack.c.b16 %v335, %v332
    %v525 = vpack.c.b16 %v339, %v336
    %v526 = vpack.c.b16 %v340, %v337
    %v527 = vpack.c.b16 %v341, %v338
    %v528 = vpack.c.b16 %v345, %v342
    %v529 = vpack.c.b16 %v346, %v343
    %v530 = vpack.c.b16 %v347, %v344
    %v531 = vpack.c.b16 %v351, %v348
    %v532 = vpack.c.b16 %v352, %v349
    %v533 = vpack.c.b16 %v353, %v350
    %v534 = vpack.c.b16 %v357, %v354
    %v535 = vpack.c.b16 %v358, %v355
    %v536 = vpack.c.b16 %v359, %v356
    %v537 = vpack.c.b16 %v363, %v360
    %v538 = vpack.c.b16 %v364, %v361
    %v539 = vpack.c.b16 %v365, %v362
    %v540 = vpack.c.b16 %v369, %v366
    %v541 = vpack.c.b16 %v370, %v367
    %v542 = vpack.c.b16 %v371, %v368
    %v543 = vpack.c.b16 %v375, %v372
    %v544 = vpack.c.b16 %v376, %v373
    %v545 = vpack.c.b16 %v377, %v374
    %v546 = vpack.c.b16 %v381, %v378
    %v547 = vpack.c.b16 %v382, %v379
    %v548 = vpack.c.b16 %v383, %v380
    %v549 = vpack.c.b16 %v387, %v384
    %v550 = vpack.c.b16 %v388, %v385
    %v551 = vpack.c.b16 %v389, %v386
    %v552 = vpack.c.b16 %v393, %v390
    %v553 = vpack.c.b16 %v394, %v391
    %v554 = vpack.c.b16 %v395, %v392
    %v555 = vpack.c.b16 %v399, %v396
    %v556 = vpack.c.b16 %v400, %v397
    %v557 = vpack.c.b16 %v401, %v398
    %v558 = vpack.c.b16 %v405, %v402
    %v559 = vpack.c.b16 %v406, %v403
    %v560 = vpack.c.b16 %v407, %v404
    %v561 = vpack.c.b16 %v411, %v408
    %v562 = vpack.c.b16 %v412, %v409
    %v563 = vpack.c.b16 %v413, %v410
    %v564 = vpack.c.b16 %v417, %v414
    %v565 = vpack.c.b16 %v418, %v415
    %v566 = vpack.c.b16 %v419, %v416
    %v567 = vpack.c.b16 %v423, %v420
    %v568 = vpack.c.b16 %v424, %v421
    %v569 = vpack.c.b16 %v425, %v422
    %v570 = vpack.c.b16 %v429, %v426
    %v571 = vpack.c.b16 %v430, %v427
    %v572 = vpack.c.b16 %v431, %v428
    %v573 = vpack.c.b16 %v435, %v432
    %v574 = vpack.c.b16 %v436, %v433
    %v575 = vpack.c.b16 %v437, %v434
    %v576 = vpack.c.b16 %v441, %v438
    %v577 = vpack.c.b16 %v442, %v439
    %v578 = vpack.c.b16 %v443, %v440
    %v579 = vpack.c.b16 %v447, %v444
    %v580 = vpack.c.b16 %v448, %v445
    %v581 = vpack.c.b16 %v449, %v446
    %v582 = vpack.c.b16 %v453, %v450
    %v583 = vpack.c.b16 %v454, %v451
    %v584 = vpack.c.b16 %v455, %v452
    %v585 = vpack.c.b16 %v459, %v456
    %v586 = vpack.c.b16 %v460, %v457
    %v587 = vpack.c.b16 %v461, %v458
    %v588 = vpack.c.b16 %v465, %v462
    %v589 = vpack.c.b16 %v466, %v463
    %v590 = vpack.c.b16 %v467, %v464
    %v591 = vpack.c.b16 %v471, %v468
    %v592 = vpack.c.b16 %v472, %v469
    %v593 = vpack.c.b16 %v473, %v470
    %v594 = vpack.c.b16 %v477, %v474
    %v595 = vpack.c.b16 %v478, %v475
    %v596 = vpack.c.b16 %v479, %v476
    %v597 = vpack.c.b16 %v483, %v480
    %v598 = vpack.c.b16 %v484, %v481
    %v599 = vpack.c.b16 %v485, %v482
    %v600 = vpack.c.b16 %v489, %v486
    %v601 = vpack.c.b16 %v490, %v487
    %v602 = vpack.c.b16 %v491, %v488
    %v603 = vpack.c.b16 %v495, %v492
    %v604 = vpack.c.b16 %v496, %v493
    %v605 = vpack.c.b16 %v497, %v494
    %v606 = vpack.c.b16 %v501, %v498
    %v607 = vpack.c.b16 %v502, %v499
    %v608 = vpack.c.b16 %v503, %v500
    %v609 = vpack.c.b16 %v507, %v504
    %v610 = vpack.c.b16 %v508, %v505
    %v611 = vpack.c.b16 %v509, %v506
    %v612 = vpack.c.b16 %v513, %v510
    %v613 = vpack.c.b16 %v514, %v511
    %v614 = vpack.c.b16 %v515, %v512
    %v615 = vpack.c.b16 %v519, %v516
    %v616 = vpack.c.b16 %v520, %v517
    %v617 = vpack.c.b16 %v521, %v518
    %v718 = vunpack.c.l.b16 %v159
    %v719 = vunpack.c.l.b16 %v160
    %v720 = vunpack.c.l.b16 %v161
    %v721 = vunpack.c.l.b16 %v162
    %v722 = vunpack.c.l.b16 %v163
    %v723 = vunpack.c.l.b16 %v164
    %v724 = vunpack.c.l.b16 %v165
    %v725 = vunpack.c.l.b16 %v166
    %v726 = vunpack.c.l.b16 %v167
    %v727 = vunpack.c.l.b16 %v168
    %v728 = vunpack.c.l.b16 %v169
    %v729 = vunpack.c.l.b16 %v170
    %v730 = vunpack.c.l.b16 %v171
    %v731 = vunpack.c.l.b16 %v172
    %v732 = vunpack.c.l.b16 %v173
    %v733 = vunpack.c.l.b16 %v174
    %v734 = vunpack.c.l.b16 %v175
    %v735 = vunpack.c.l.b16 %v176
    %v736 = vunpack.c.l.b16 %v177
    %v737 = vunpack.c.l.b16 %v178
    %v738 = vunpack.c.l.b16 %v179
    %v739 = vunpack.c.l.b16 %v180
    %v740 = vunpack.c.l.b16 %v181
    %v741 = vunpack.c.l.b16 %v182
    %v742 = vunpack.c.l.b16 %v183
    %v743 = vunpack.c.l.b16 %v184
    %v744 = vunpack.c.l.b16 %v185
    %v745 = vunpack.c.l.b16 %v186
    %v746 = vunpack.c.l.b16 %v187
    %v747 = vunpack.c.l.b16 %v188
    %v748 = vunpack.c.l.b16 %v189
    %v749 = vunpack.c.l.b16 %v190
    %v750 = vunpack.c.l.b16 %v191
    %v751 = vunpack.c.l.b16 %v192
    %v752 = vunpack.c.l.b16 %v193
    %v753 = vunpack.c.l.b16 %v194
    %v754 = vpack.c.b16 %v719, %v718
    %v755 = vpack.c.b16 %v721, %v720
    %v756 = vpack.c.b16 %v723, %v722
    %v757 = vpack.c.b16 %v725, %v724
    %v758 = vpack.c.b16 %v727, %v726
    %v759 = vpack.c.b16 %v729, %v728
    %v760 = vpack.c.b16 %v731, %v730
    %v761 = vpack.c.b16 %v733, %v732
    %v762 = vpack.c.b16 %v735, %v734
    %v763 = vpack.c.b16 %v737, %v736
    %v764 = vpack.c.b16 %v739, %v738
    %v765 = vpack.c.b16 %v741, %v740
    %v766 = vpack.c.b16 %v743, %v742
    %v767 = vpack.c.b16 %v745, %v744
    %v768 = vpack.c.b16 %v747, %v746
    %v769 = vpack.c.b16 %v749, %v748
    %v770 = vpack.c.b16 %v751, %v750
    %v771 = vpack.c.b16 %v753, %v752
    %vm790 = vcmask 261120
    %v792 = vsel %vm790, %v524, 0
    %v795 = vsel %vm790, %v527, 0
    %v798 = vsel %vm790, %v530, 0
    %v801 = vsel %vm790, %v533, 0
    %v804 = vsel %vm790, %v536, 0
    %v807 = vsel %vm790, %v539, 0
    %v810 = vsel %vm790, %v542, 0
    %v813 = vsel %vm790, %v545, 0
    %v816 = vsel %vm790, %v548, 0
    %v819 = vsel %vm790, %v551, 0
    %v822 = vsel %vm790, %v554, 0
    %v825 = vsel %vm790, %v557, 0
    %v828 = vsel %vm790, %v560, 0
    %v831 = vsel %vm790, %v563, 0
    %v834 = vsel %vm790, %v566, 0
    %v837 = vsel %vm790, %v569, 0
    %v840 = vsel %vm790, %v572, 0
    %v843 = vsel %vm790, %v575, 0
    %v846 = vsel %vm790, %v578, 0
    %v849 = vsel %vm790, %v581, 0
    %v852 = vsel %vm790, %v584, 0
    %v855 = vsel %vm790, %v587, 0
    %v858 = vsel %vm790, %v590, 0
    %v861 = vsel %vm790, %v593, 0
    %v864 = vsel %vm790, %v596, 0
    %v867 = vsel %vm790, %v599, 0
    %v870 = vsel %vm790, %v602, 0
    %v873 = vsel %vm790, %v605, 0
    %v876 = vsel %vm790, %v608, 0
    %v879 = vsel %vm790, %v611, 0
    %v882 = vsel %vm790, %v614, 0
    %v885 = vsel %vm790, %v617, 0
    %887 = vmatprep.subr.bf16.mxu0 0
    %888 = vmatpush1.bf16.msra.mxu0 %v754
    %889 = vmatprep.subr.bf16.mxu0 0
    %890 = vmatpush1.bf16.msra.mxu0 %v755
    %891 = vmatprep.subr.bf16.mxu0 0
    %892 = vmatpush1.bf16.msra.mxu0 %v756
    %893 = vmatprep.subr.bf16.mxu0 0
    %894 = vmatpush1.bf16.msra.mxu0 %v757
    %895 = vmatprep.subr.bf16.mxu0 0
    %896 = vmatpush1.bf16.msra.mxu0 %v758
    %897 = vmatprep.subr.bf16.mxu0 0
    %898 = vmatpush1.bf16.msra.mxu0 %v759
    %899 = vmatprep.subr.bf16.mxu0 0
    %900 = vmatpush1.bf16.msra.mxu0 %v760
    %901 = vmatprep.subr.bf16.mxu0 0
    %902 = vmatpush1.bf16.msra.mxu0 %v761
    %903 = vmatprep.subr.bf16.mxu0 0
    %904 = vmatpush1.bf16.msra.mxu0 %v762
    %905 = vmatprep.subr.bf16.mxu0 0
    %906 = vmatpush1.bf16.msra.mxu0 %v763
    %907 = vmatprep.subr.bf16.mxu0 0
    %908 = vmatpush1.bf16.msra.mxu0 %v764
    %909 = vmatprep.subr.bf16.mxu0 0
    %910 = vmatpush1.bf16.msra.mxu0 %v765
    %911 = vmatprep.subr.bf16.mxu0 0
    %912 = vmatpush1.bf16.msra.mxu0 %v766
    %913 = vmatprep.subr.bf16.mxu0 0
    %914 = vmatpush1.bf16.msra.mxu0 %v767
    %915 = vmatprep.subr.bf16.mxu0 0
    %916 = vmatpush1.bf16.msra.mxu0 %v768
    %917 = vmatprep.subr.bf16.mxu0 0
    %918 = vmatpush1.bf16.msra.mxu0 %v769
    %919 = vmatprep.mubr.bf16.mxu0 %v523
    %920 = vmatmul.mubr.bf16.gmra.mrb[0].mxu0 %v522
    %v921 = vpop.f32.mrb[0].mxu0
    %v922 = vadd.f32 %v200, %v921
    %v923 = vpop.f32.mrb[0].mxu0
    %v924 = vpop.f32.mrb[0].mxu0
    %v925 = vadd.f32 %v200, %v924
    %v926 = vpop.f32.mrb[0].mxu0
    %927 = vmatprep.mubr.bf16.mxu0 %v526
    %928 = vmatmul.mubr.bf16.gmra.mrb[0].mxu0 %v525
    %v929 = vpop.f32.mrb[0].mxu0
    %v930 = vadd.f32 %v200, %v929
    %v931 = vpop.f32.mrb[0].mxu0
    %v932 = vpop.f32.mrb[0].mxu0
    %v933 = vadd.f32 %v200, %v932
    %v934 = vpop.f32.mrb[0].mxu0
    %935 = vmatprep.mubr.bf16.mxu0 %v529
    %936 = vmatmul.mubr.bf16.gmra.mrb[0].mxu0 %v528
    %v937 = vpop.f32.mrb[0].mxu0
    %v938 = vadd.f32 %v200, %v937
    %v939 = vpop.f32.mrb[0].mxu0
    %v940 = vpop.f32.mrb[0].mxu0
    %v941 = vadd.f32 %v200, %v940
    %v942 = vpop.f32.mrb[0].mxu0
    %943 = vmatprep.mubr.bf16.mxu0 %v532
    %944 = vmatmul.mubr.bf16.gmra.mrb[0].mxu0 %v531
    %v945 = vpop.f32.mrb[0].mxu0
    %v946 = vadd.f32 %v200, %v945
    %v947 = vpop.f32.mrb[0].mxu0
    %v948 = vpop.f32.mrb[0].mxu0
    %v949 = vadd.f32 %v200, %v948
    %v950 = vpop.f32.mrb[0].mxu0
    %951 = vmatprep.mubr.bf16.mxu0 %v535
    %952 = vmatmul.mubr.bf16.gmra.mrb[0].mxu0 %v534
    %v953 = vpop.f32.mrb[0].mxu0
    %v954 = vadd.f32 %v200, %v953
    %v955 = vpop.f32.mrb[0].mxu0
    %v956 = vpop.f32.mrb[0].mxu0
    %v957 = vadd.f32 %v200, %v956
    %v958 = vpop.f32.mrb[0].mxu0
    %959 = vmatprep.mubr.bf16.mxu0 %v538
    %960 = vmatmul.mubr.bf16.gmra.mrb[0].mxu0 %v537
    %v961 = vpop.f32.mrb[0].mxu0
    %v962 = vadd.f32 %v200, %v961
    %v963 = vpop.f32.mrb[0].mxu0
    %v964 = vpop.f32.mrb[0].mxu0
    %v965 = vadd.f32 %v200, %v964
    %v966 = vpop.f32.mrb[0].mxu0
    %967 = vmatprep.mubr.bf16.mxu0 %v541
    %968 = vmatmul.mubr.bf16.gmra.mrb[0].mxu0 %v540
    %v969 = vpop.f32.mrb[0].mxu0
    %v970 = vadd.f32 %v200, %v969
    %v971 = vpop.f32.mrb[0].mxu0
    %v972 = vpop.f32.mrb[0].mxu0
    %v973 = vadd.f32 %v200, %v972
    %v974 = vpop.f32.mrb[0].mxu0
    %975 = vmatprep.mubr.bf16.mxu0 %v544
    %976 = vmatmul.mubr.bf16.gmra.mrb[0].mxu0 %v543
    %v977 = vpop.f32.mrb[0].mxu0
    %v978 = vadd.f32 %v200, %v977
    %v979 = vpop.f32.mrb[0].mxu0
    %v980 = vpop.f32.mrb[0].mxu0
    %v981 = vadd.f32 %v200, %v980
    %v982 = vpop.f32.mrb[0].mxu0
    %983 = vmatprep.mubr.bf16.mxu0 %v547
    %984 = vmatmul.mubr.bf16.gmra.mrb[0].mxu0 %v546
    %v985 = vpop.f32.mrb[0].mxu0
    %v986 = vadd.f32 %v200, %v985
    %v987 = vpop.f32.mrb[0].mxu0
    %v988 = vpop.f32.mrb[0].mxu0
    %v989 = vadd.f32 %v200, %v988
    %v990 = vpop.f32.mrb[0].mxu0
    %991 = vmatprep.mubr.bf16.mxu0 %v550
    %992 = vmatmul.mubr.bf16.gmra.mrb[0].mxu0 %v549
    %v993 = vpop.f32.mrb[0].mxu0
    %v994 = vadd.f32 %v200, %v993
    %v995 = vpop.f32.mrb[0].mxu0
    %v996 = vpop.f32.mrb[0].mxu0
    %v997 = vadd.f32 %v200, %v996
    %v998 = vpop.f32.mrb[0].mxu0
    %999 = vmatprep.mubr.bf16.mxu0 %v553
    %1000 = vmatmul.mubr.bf16.gmra.mrb[0].mxu0 %v552
    %v1001 = vpop.f32.mrb[0].mxu0
    %v1002 = vadd.f32 %v200, %v1001
    %v1003 = vpop.f32.mrb[0].mxu0
    %v1004 = vpop.f32.mrb[0].mxu0
    %v1005 = vadd.f32 %v200, %v1004
    %v1006 = vpop.f32.mrb[0].mxu0
    %1007 = vmatprep.mubr.bf16.mxu0 %v556
    %1008 = vmatmul.mubr.bf16.gmra.mrb[0].mxu0 %v555
    %v1009 = vpop.f32.mrb[0].mxu0
    %v1010 = vadd.f32 %v200, %v1009
    %v1011 = vpop.f32.mrb[0].mxu0
    %v1012 = vpop.f32.mrb[0].mxu0
    %v1013 = vadd.f32 %v200, %v1012
    %v1014 = vpop.f32.mrb[0].mxu0
    %1015 = vmatprep.mubr.bf16.mxu0 %v559
    %1016 = vmatmul.mubr.bf16.gmra.mrb[0].mxu0 %v558
    %v1017 = vpop.f32.mrb[0].mxu0
    %v1018 = vadd.f32 %v200, %v1017
    %v1019 = vpop.f32.mrb[0].mxu0
    %v1020 = vpop.f32.mrb[0].mxu0
    %v1021 = vadd.f32 %v200, %v1020
    %v1022 = vpop.f32.mrb[0].mxu0
    %1023 = vmatprep.mubr.bf16.mxu0 %v562
    %1024 = vmatmul.mubr.bf16.gmra.mrb[0].mxu0 %v561
    %v1025 = vpop.f32.mrb[0].mxu0
    %v1026 = vadd.f32 %v200, %v1025
    %v1027 = vpop.f32.mrb[0].mxu0
    %v1028 = vpop.f32.mrb[0].mxu0
    %v1029 = vadd.f32 %v200, %v1028
    %v1030 = vpop.f32.mrb[0].mxu0
    %1031 = vmatprep.mubr.bf16.mxu0 %v565
    %1032 = vmatmul.mubr.bf16.gmra.mrb[0].mxu0 %v564
    %v1033 = vpop.f32.mrb[0].mxu0
    %v1034 = vadd.f32 %v200, %v1033
    %v1035 = vpop.f32.mrb[0].mxu0
    %v1036 = vpop.f32.mrb[0].mxu0
    %v1037 = vadd.f32 %v200, %v1036
    %v1038 = vpop.f32.mrb[0].mxu0
    %1039 = vmatprep.mubr.bf16.mxu0 %v568
    %1040 = vmatmul.mubr.bf16.gmra.mrb[0].mxu0 %v567
    %v1041 = vpop.f32.mrb[0].mxu0
    %v1042 = vadd.f32 %v200, %v1041
    %v1043 = vpop.f32.mrb[0].mxu0
    %v1044 = vpop.f32.mrb[0].mxu0
    %v1045 = vadd.f32 %v200, %v1044
    %v1046 = vpop.f32.mrb[0].mxu0
    %1047 = vmatprep.mubr.bf16.mxu0 %v571
    %1048 = vmatmul.mubr.bf16.gmra.mrb[0].mxu0 %v570
    %v1049 = vpop.f32.mrb[0].mxu0
    %v1050 = vadd.f32 %v200, %v1049
    %v1051 = vpop.f32.mrb[0].mxu0
    %v1052 = vpop.f32.mrb[0].mxu0
    %v1053 = vadd.f32 %v200, %v1052
    %v1054 = vpop.f32.mrb[0].mxu0
    %1055 = vmatprep.mubr.bf16.mxu0 %v574
    %1056 = vmatmul.mubr.bf16.gmra.mrb[0].mxu0 %v573
    %v1057 = vpop.f32.mrb[0].mxu0
    %v1058 = vadd.f32 %v200, %v1057
    %v1059 = vpop.f32.mrb[0].mxu0
    %v1060 = vpop.f32.mrb[0].mxu0
    %v1061 = vadd.f32 %v200, %v1060
    %v1062 = vpop.f32.mrb[0].mxu0
    %1063 = vmatprep.mubr.bf16.mxu0 %v577
    %1064 = vmatmul.mubr.bf16.gmra.mrb[0].mxu0 %v576
    %v1065 = vpop.f32.mrb[0].mxu0
    %v1066 = vadd.f32 %v200, %v1065
    %v1067 = vpop.f32.mrb[0].mxu0
    %v1068 = vpop.f32.mrb[0].mxu0
    %v1069 = vadd.f32 %v200, %v1068
    %v1070 = vpop.f32.mrb[0].mxu0
    %1071 = vmatprep.mubr.bf16.mxu0 %v580
    %1072 = vmatmul.mubr.bf16.gmra.mrb[0].mxu0 %v579
    %v1073 = vpop.f32.mrb[0].mxu0
    %v1074 = vadd.f32 %v200, %v1073
    %v1075 = vpop.f32.mrb[0].mxu0
    %v1076 = vpop.f32.mrb[0].mxu0
    %v1077 = vadd.f32 %v200, %v1076
    %v1078 = vpop.f32.mrb[0].mxu0
    %1079 = vmatprep.mubr.bf16.mxu0 %v583
    %1080 = vmatmul.mubr.bf16.gmra.mrb[0].mxu0 %v582
    %v1081 = vpop.f32.mrb[0].mxu0
    %v1082 = vadd.f32 %v200, %v1081
    %v1083 = vpop.f32.mrb[0].mxu0
    %v1084 = vpop.f32.mrb[0].mxu0
    %v1085 = vadd.f32 %v200, %v1084
    %v1086 = vpop.f32.mrb[0].mxu0
    %1087 = vmatprep.mubr.bf16.mxu0 %v586
    %1088 = vmatmul.mubr.bf16.gmra.mrb[0].mxu0 %v585
    %v1089 = vpop.f32.mrb[0].mxu0
    %v1090 = vadd.f32 %v200, %v1089
    %v1091 = vpop.f32.mrb[0].mxu0
    %v1092 = vpop.f32.mrb[0].mxu0
    %v1093 = vadd.f32 %v200, %v1092
    %v1094 = vpop.f32.mrb[0].mxu0
    %1095 = vmatprep.mubr.bf16.mxu0 %v589
    %1096 = vmatmul.mubr.bf16.gmra.mrb[0].mxu0 %v588
    %v1097 = vpop.f32.mrb[0].mxu0
    %v1098 = vadd.f32 %v200, %v1097
    %v1099 = vpop.f32.mrb[0].mxu0
    %v1100 = vpop.f32.mrb[0].mxu0
    %v1101 = vadd.f32 %v200, %v1100
    %v1102 = vpop.f32.mrb[0].mxu0
    %1103 = vmatprep.mubr.bf16.mxu0 %v592
    %1104 = vmatmul.mubr.bf16.gmra.mrb[0].mxu0 %v591
    %v1105 = vpop.f32.mrb[0].mxu0
    %v1106 = vadd.f32 %v200, %v1105
    %v1107 = vpop.f32.mrb[0].mxu0
    %v1108 = vpop.f32.mrb[0].mxu0
    %v1109 = vadd.f32 %v200, %v1108
    %v1110 = vpop.f32.mrb[0].mxu0
    %1111 = vmatprep.mubr.bf16.mxu0 %v595
    %1112 = vmatmul.mubr.bf16.gmra.mrb[0].mxu0 %v594
    %v1113 = vpop.f32.mrb[0].mxu0
    %v1114 = vadd.f32 %v200, %v1113
    %v1115 = vpop.f32.mrb[0].mxu0
    %v1116 = vpop.f32.mrb[0].mxu0
    %v1117 = vadd.f32 %v200, %v1116
    %v1118 = vpop.f32.mrb[0].mxu0
    %1119 = vmatprep.mubr.bf16.mxu0 %v598
    %1120 = vmatmul.mubr.bf16.gmra.mrb[0].mxu0 %v597
    %v1121 = vpop.f32.mrb[0].mxu0
    %v1122 = vadd.f32 %v200, %v1121
    %v1123 = vpop.f32.mrb[0].mxu0
    %v1124 = vpop.f32.mrb[0].mxu0
    %v1125 = vadd.f32 %v200, %v1124
    %v1126 = vpop.f32.mrb[0].mxu0
    %1127 = vmatprep.mubr.bf16.mxu0 %v601
    %1128 = vmatmul.mubr.bf16.gmra.mrb[0].mxu0 %v600
    %v1129 = vpop.f32.mrb[0].mxu0
    %v1130 = vadd.f32 %v200, %v1129
    %v1131 = vpop.f32.mrb[0].mxu0
    %v1132 = vpop.f32.mrb[0].mxu0
    %v1133 = vadd.f32 %v200, %v1132
    %v1134 = vpop.f32.mrb[0].mxu0
    %1135 = vmatprep.mubr.bf16.mxu0 %v604
    %1136 = vmatmul.mubr.bf16.gmra.mrb[0].mxu0 %v603
    %v1137 = vpop.f32.mrb[0].mxu0
    %v1138 = vadd.f32 %v200, %v1137
    %v1139 = vpop.f32.mrb[0].mxu0
    %v1140 = vpop.f32.mrb[0].mxu0
    %v1141 = vadd.f32 %v200, %v1140
    %v1142 = vpop.f32.mrb[0].mxu0
    %1143 = vmatprep.mubr.bf16.mxu0 %v607
    %1144 = vmatmul.mubr.bf16.gmra.mrb[0].mxu0 %v606
    %v1145 = vpop.f32.mrb[0].mxu0
    %v1146 = vadd.f32 %v200, %v1145
    %v1147 = vpop.f32.mrb[0].mxu0
    %v1148 = vpop.f32.mrb[0].mxu0
    %v1149 = vadd.f32 %v200, %v1148
    %v1150 = vpop.f32.mrb[0].mxu0
    %1151 = vmatprep.mubr.bf16.mxu0 %v610
    %1152 = vmatmul.mubr.bf16.gmra.mrb[0].mxu0 %v609
    %v1153 = vpop.f32.mrb[0].mxu0
    %v1154 = vadd.f32 %v200, %v1153
    %v1155 = vpop.f32.mrb[0].mxu0
    %v1156 = vpop.f32.mrb[0].mxu0
    %v1157 = vadd.f32 %v200, %v1156
    %v1158 = vpop.f32.mrb[0].mxu0
    %1159 = vmatprep.mubr.bf16.mxu0 %v613
    %1160 = vmatmul.mubr.bf16.gmra.mrb[0].mxu0 %v612
    %v1161 = vpop.f32.mrb[0].mxu0
    %v1162 = vadd.f32 %v200, %v1161
    %v1163 = vpop.f32.mrb[0].mxu0
    %v1164 = vpop.f32.mrb[0].mxu0
    %v1165 = vadd.f32 %v200, %v1164
    %v1166 = vpop.f32.mrb[0].mxu0
    %1167 = vmatprep.mubr.bf16.mxu0 %v616
    %1168 = vmatmul.mubr.bf16.gmra.mrb[0].mxu0 %v615
    %v1169 = vpop.f32.mrb[0].mxu0
    %v1170 = vadd.f32 %v200, %v1169
    %v1171 = vpop.f32.mrb[0].mxu0
    %v1172 = vpop.f32.mrb[0].mxu0
    %v1173 = vadd.f32 %v200, %v1172
    %v1174 = vpop.f32.mrb[0].mxu0
    %1175 = vdwg.mxu0
    %1176 = vmatprep.subr.bf16.mxu0 0
    %1177 = vmatpush1.bf16.msra.mxu0 %v770
    %1178 = vmatprep.subr.bf16.mxu0 0
    %1179 = vmatpush1.bf16.msra.mxu0 %v771
    %1180 = vmatprep.subr.bf16.mxu0 0
    %1181 = vmatpush1.bf16.msra.mxu0 0
    %1182 = vmatprep.subr.bf16.mxu0 0
    %1183 = vmatpush1.bf16.msra.mxu0 0
    %1184 = vmatprep.subr.bf16.mxu0 0
    %1185 = vmatpush1.bf16.msra.mxu0 0
    %1186 = vmatprep.subr.bf16.mxu0 0
    %1187 = vmatpush1.bf16.msra.mxu0 0
    %1188 = vmatprep.subr.bf16.mxu0 0
    %1189 = vmatpush1.bf16.msra.mxu0 0
    %1190 = vmatprep.subr.bf16.mxu0 0
    %1191 = vmatpush1.bf16.msra.mxu0 0
    %1192 = vmatprep.subr.bf16.mxu0 0
    %1193 = vmatpush1.bf16.msra.mxu0 0
    %1194 = vmatprep.subr.bf16.mxu0 0
    %1195 = vmatpush1.bf16.msra.mxu0 0
    %1196 = vmatprep.subr.bf16.mxu0 0
    %1197 = vmatpush1.bf16.msra.mxu0 0
    %1198 = vmatprep.subr.bf16.mxu0 0
    %1199 = vmatpush1.bf16.msra.mxu0 0
    %1200 = vmatprep.subr.bf16.mxu0 0
    %1201 = vmatpush1.bf16.msra.mxu0 0
    %1202 = vmatprep.subr.bf16.mxu0 0
    %1203 = vmatpush1.bf16.msra.mxu0 0
    %1204 = vmatprep.subr.bf16.mxu0 0
    %1205 = vmatpush1.bf16.msra.mxu0 0
    %1206 = vmatprep.subr.bf16.mxu0 0
    %1207 = vmatpush1.bf16.msra.mxu0 0
    %1208 = vmatprep.mubr.bf16.mxu0 0
    %1209 = vmatmul.mubr.bf16.gmra.mrb[0].mxu0 %v792
    %v1210 = vpop.f32.mrb[0].mxu0
    %v1211 = vadd.f32 %v922, %v1210
    %v1212 = vpop.f32.mrb[0].mxu0
    %v1213 = vpop.f32.mrb[0].mxu0
    %v1214 = vadd.f32 %v925, %v1213
    %v1215 = vpop.f32.mrb[0].mxu0
    %1216 = vmatprep.mubr.bf16.mxu0 0
    %1217 = vmatmul.mubr.bf16.gmra.mrb[0].mxu0 %v795
    %v1218 = vpop.f32.mrb[0].mxu0
    %v1219 = vadd.f32 %v930, %v1218
    %v1220 = vpop.f32.mrb[0].mxu0
    %v1221 = vpop.f32.mrb[0].mxu0
    %v1222 = vadd.f32 %v933, %v1221
    %v1223 = vpop.f32.mrb[0].mxu0
    %1224 = vmatprep.mubr.bf16.mxu0 0
    %1225 = vmatmul.mubr.bf16.gmra.mrb[0].mxu0 %v798
    %v1226 = vpop.f32.mrb[0].mxu0
    %v1227 = vadd.f32 %v938, %v1226
    %v1228 = vpop.f32.mrb[0].mxu0
    %v1229 = vpop.f32.mrb[0].mxu0
    %v1230 = vadd.f32 %v941, %v1229
    %v1231 = vpop.f32.mrb[0].mxu0
    %1232 = vmatprep.mubr.bf16.mxu0 0
    %1233 = vmatmul.mubr.bf16.gmra.mrb[0].mxu0 %v801
    %v1234 = vpop.f32.mrb[0].mxu0
    %v1235 = vadd.f32 %v946, %v1234
    %v1236 = vpop.f32.mrb[0].mxu0
    %v1237 = vpop.f32.mrb[0].mxu0
    %v1238 = vadd.f32 %v949, %v1237
    %v1239 = vpop.f32.mrb[0].mxu0
    %1240 = vmatprep.mubr.bf16.mxu0 0
    %1241 = vmatmul.mubr.bf16.gmra.mrb[0].mxu0 %v804
    %v1242 = vpop.f32.mrb[0].mxu0
    %v1243 = vadd.f32 %v954, %v1242
    %v1244 = vpop.f32.mrb[0].mxu0
    %v1245 = vpop.f32.mrb[0].mxu0
    %v1246 = vadd.f32 %v957, %v1245
    %v1247 = vpop.f32.mrb[0].mxu0
    %1248 = vmatprep.mubr.bf16.mxu0 0
    %1249 = vmatmul.mubr.bf16.gmra.mrb[0].mxu0 %v807
    %v1250 = vpop.f32.mrb[0].mxu0
    %v1251 = vadd.f32 %v962, %v1250
    %v1252 = vpop.f32.mrb[0].mxu0
    %v1253 = vpop.f32.mrb[0].mxu0
    %v1254 = vadd.f32 %v965, %v1253
    %v1255 = vpop.f32.mrb[0].mxu0
    %1256 = vmatprep.mubr.bf16.mxu0 0
    %1257 = vmatmul.mubr.bf16.gmra.mrb[0].mxu0 %v810
    %v1258 = vpop.f32.mrb[0].mxu0
    %v1259 = vadd.f32 %v970, %v1258
    %v1260 = vpop.f32.mrb[0].mxu0
    %v1261 = vpop.f32.mrb[0].mxu0
    %v1262 = vadd.f32 %v973, %v1261
    %v1263 = vpop.f32.mrb[0].mxu0
    %1264 = vmatprep.mubr.bf16.mxu0 0
    %1265 = vmatmul.mubr.bf16.gmra.mrb[0].mxu0 %v813
    %v1266 = vpop.f32.mrb[0].mxu0
    %v1267 = vadd.f32 %v978, %v1266
    %v1268 = vpop.f32.mrb[0].mxu0
    %v1269 = vpop.f32.mrb[0].mxu0
    %v1270 = vadd.f32 %v981, %v1269
    %v1271 = vpop.f32.mrb[0].mxu0
    %1272 = vmatprep.mubr.bf16.mxu0 0
    %1273 = vmatmul.mubr.bf16.gmra.mrb[0].mxu0 %v816
    %v1274 = vpop.f32.mrb[0].mxu0
    %v1275 = vadd.f32 %v986, %v1274
    %v1276 = vpop.f32.mrb[0].mxu0
    %v1277 = vpop.f32.mrb[0].mxu0
    %v1278 = vadd.f32 %v989, %v1277
    %v1279 = vpop.f32.mrb[0].mxu0
    %1280 = vmatprep.mubr.bf16.mxu0 0
    %1281 = vmatmul.mubr.bf16.gmra.mrb[0].mxu0 %v819
    %v1282 = vpop.f32.mrb[0].mxu0
    %v1283 = vadd.f32 %v994, %v1282
    %v1284 = vpop.f32.mrb[0].mxu0
    %v1285 = vpop.f32.mrb[0].mxu0
    %v1286 = vadd.f32 %v997, %v1285
    %v1287 = vpop.f32.mrb[0].mxu0
    %1288 = vmatprep.mubr.bf16.mxu0 0
    %1289 = vmatmul.mubr.bf16.gmra.mrb[0].mxu0 %v822
    %v1290 = vpop.f32.mrb[0].mxu0
    %v1291 = vadd.f32 %v1002, %v1290
    %v1292 = vpop.f32.mrb[0].mxu0
    %v1293 = vpop.f32.mrb[0].mxu0
    %v1294 = vadd.f32 %v1005, %v1293
    %v1295 = vpop.f32.mrb[0].mxu0
    %1296 = vmatprep.mubr.bf16.mxu0 0
    %1297 = vmatmul.mubr.bf16.gmra.mrb[0].mxu0 %v825
    %v1298 = vpop.f32.mrb[0].mxu0
    %v1299 = vadd.f32 %v1010, %v1298
    %v1300 = vpop.f32.mrb[0].mxu0
    %v1301 = vpop.f32.mrb[0].mxu0
    %v1302 = vadd.f32 %v1013, %v1301
    %v1303 = vpop.f32.mrb[0].mxu0
    %1304 = vmatprep.mubr.bf16.mxu0 0
    %1305 = vmatmul.mubr.bf16.gmra.mrb[0].mxu0 %v828
    %v1306 = vpop.f32.mrb[0].mxu0
    %v1307 = vadd.f32 %v1018, %v1306
    %v1308 = vpop.f32.mrb[0].mxu0
    %v1309 = vpop.f32.mrb[0].mxu0
    %v1310 = vadd.f32 %v1021, %v1309
    %v1311 = vpop.f32.mrb[0].mxu0
    %1312 = vmatprep.mubr.bf16.mxu0 0
    %1313 = vmatmul.mubr.bf16.gmra.mrb[0].mxu0 %v831
    %v1314 = vpop.f32.mrb[0].mxu0
    %v1315 = vadd.f32 %v1026, %v1314
    %v1316 = vpop.f32.mrb[0].mxu0
    %v1317 = vpop.f32.mrb[0].mxu0
    %v1318 = vadd.f32 %v1029, %v1317
    %v1319 = vpop.f32.mrb[0].mxu0
    %1320 = vmatprep.mubr.bf16.mxu0 0
    %1321 = vmatmul.mubr.bf16.gmra.mrb[0].mxu0 %v834
    %v1322 = vpop.f32.mrb[0].mxu0
    %v1323 = vadd.f32 %v1034, %v1322
    %v1324 = vpop.f32.mrb[0].mxu0
    %v1325 = vpop.f32.mrb[0].mxu0
    %v1326 = vadd.f32 %v1037, %v1325
    %v1327 = vpop.f32.mrb[0].mxu0
    %1328 = vmatprep.mubr.bf16.mxu0 0
    %1329 = vmatmul.mubr.bf16.gmra.mrb[0].mxu0 %v837
    %v1330 = vpop.f32.mrb[0].mxu0
    %v1331 = vadd.f32 %v1042, %v1330
    %v1332 = vpop.f32.mrb[0].mxu0
    %v1333 = vpop.f32.mrb[0].mxu0
    %v1334 = vadd.f32 %v1045, %v1333
    %v1335 = vpop.f32.mrb[0].mxu0
    %1336 = vmatprep.mubr.bf16.mxu0 0
    %1337 = vmatmul.mubr.bf16.gmra.mrb[0].mxu0 %v840
    %v1338 = vpop.f32.mrb[0].mxu0
    %v1339 = vadd.f32 %v1050, %v1338
    %v1340 = vpop.f32.mrb[0].mxu0
    %v1341 = vpop.f32.mrb[0].mxu0
    %v1342 = vadd.f32 %v1053, %v1341
    %v1343 = vpop.f32.mrb[0].mxu0
    %1344 = vmatprep.mubr.bf16.mxu0 0
    %1345 = vmatmul.mubr.bf16.gmra.mrb[0].mxu0 %v843
    %v1346 = vpop.f32.mrb[0].mxu0
    %v1347 = vadd.f32 %v1058, %v1346
    %v1348 = vpop.f32.mrb[0].mxu0
    %v1349 = vpop.f32.mrb[0].mxu0
    %v1350 = vadd.f32 %v1061, %v1349
    %v1351 = vpop.f32.mrb[0].mxu0
    %1352 = vmatprep.mubr.bf16.mxu0 0
    %1353 = vmatmul.mubr.bf16.gmra.mrb[0].mxu0 %v846
    %v1354 = vpop.f32.mrb[0].mxu0
    %v1355 = vadd.f32 %v1066, %v1354
    %v1356 = vpop.f32.mrb[0].mxu0
    %v1357 = vpop.f32.mrb[0].mxu0
    %v1358 = vadd.f32 %v1069, %v1357
    %v1359 = vpop.f32.mrb[0].mxu0
    %1360 = vmatprep.mubr.bf16.mxu0 0
    %1361 = vmatmul.mubr.bf16.gmra.mrb[0].mxu0 %v849
    %v1362 = vpop.f32.mrb[0].mxu0
    %v1363 = vadd.f32 %v1074, %v1362
    %v1364 = vpop.f32.mrb[0].mxu0
    %v1365 = vpop.f32.mrb[0].mxu0
    %v1366 = vadd.f32 %v1077, %v1365
    %v1367 = vpop.f32.mrb[0].mxu0
    %1368 = vmatprep.mubr.bf16.mxu0 0
    %1369 = vmatmul.mubr.bf16.gmra.mrb[0].mxu0 %v852
    %v1370 = vpop.f32.mrb[0].mxu0
    %v1371 = vadd.f32 %v1082, %v1370
    %v1372 = vpop.f32.mrb[0].mxu0
    %v1373 = vpop.f32.mrb[0].mxu0
    %v1374 = vadd.f32 %v1085, %v1373
    %v1375 = vpop.f32.mrb[0].mxu0
    %1376 = vmatprep.mubr.bf16.mxu0 0
    %1377 = vmatmul.mubr.bf16.gmra.mrb[0].mxu0 %v855
    %v1378 = vpop.f32.mrb[0].mxu0
    %v1379 = vadd.f32 %v1090, %v1378
    %v1380 = vpop.f32.mrb[0].mxu0
    %v1381 = vpop.f32.mrb[0].mxu0
    %v1382 = vadd.f32 %v1093, %v1381
    %v1383 = vpop.f32.mrb[0].mxu0
    %1384 = vmatprep.mubr.bf16.mxu0 0
    %1385 = vmatmul.mubr.bf16.gmra.mrb[0].mxu0 %v858
    %v1386 = vpop.f32.mrb[0].mxu0
    %v1387 = vadd.f32 %v1098, %v1386
    %v1388 = vpop.f32.mrb[0].mxu0
    %v1389 = vpop.f32.mrb[0].mxu0
    %v1390 = vadd.f32 %v1101, %v1389
    %v1391 = vpop.f32.mrb[0].mxu0
    %1392 = vmatprep.mubr.bf16.mxu0 0
    %1393 = vmatmul.mubr.bf16.gmra.mrb[0].mxu0 %v861
    %v1394 = vpop.f32.mrb[0].mxu0
    %v1395 = vadd.f32 %v1106, %v1394
    %v1396 = vpop.f32.mrb[0].mxu0
    %v1397 = vpop.f32.mrb[0].mxu0
    %v1398 = vadd.f32 %v1109, %v1397
    %v1399 = vpop.f32.mrb[0].mxu0
    %1400 = vmatprep.mubr.bf16.mxu0 0
    %1401 = vmatmul.mubr.bf16.gmra.mrb[0].mxu0 %v864
    %v1402 = vpop.f32.mrb[0].mxu0
    %v1403 = vadd.f32 %v1114, %v1402
    %v1404 = vpop.f32.mrb[0].mxu0
    %v1405 = vpop.f32.mrb[0].mxu0
    %v1406 = vadd.f32 %v1117, %v1405
    %v1407 = vpop.f32.mrb[0].mxu0
    %1408 = vmatprep.mubr.bf16.mxu0 0
    %1409 = vmatmul.mubr.bf16.gmra.mrb[0].mxu0 %v867
    %v1410 = vpop.f32.mrb[0].mxu0
    %v1411 = vadd.f32 %v1122, %v1410
    %v1412 = vpop.f32.mrb[0].mxu0
    %v1413 = vpop.f32.mrb[0].mxu0
    %v1414 = vadd.f32 %v1125, %v1413
    %v1415 = vpop.f32.mrb[0].mxu0
    %1416 = vmatprep.mubr.bf16.mxu0 0
    %1417 = vmatmul.mubr.bf16.gmra.mrb[0].mxu0 %v870
    %v1418 = vpop.f32.mrb[0].mxu0
    %v1419 = vadd.f32 %v1130, %v1418
    %v1420 = vpop.f32.mrb[0].mxu0
    %v1421 = vpop.f32.mrb[0].mxu0
    %v1422 = vadd.f32 %v1133, %v1421
    %v1423 = vpop.f32.mrb[0].mxu0
    %1424 = vmatprep.mubr.bf16.mxu0 0
    %1425 = vmatmul.mubr.bf16.gmra.mrb[0].mxu0 %v873
    %v1426 = vpop.f32.mrb[0].mxu0
    %v1427 = vadd.f32 %v1138, %v1426
    %v1428 = vpop.f32.mrb[0].mxu0
    %v1429 = vpop.f32.mrb[0].mxu0
    %v1430 = vadd.f32 %v1141, %v1429
    %v1431 = vpop.f32.mrb[0].mxu0
    %1432 = vmatprep.mubr.bf16.mxu0 0
    %1433 = vmatmul.mubr.bf16.gmra.mrb[0].mxu0 %v876
    %v1434 = vpop.f32.mrb[0].mxu0
    %v1435 = vadd.f32 %v1146, %v1434
    %v1436 = vpop.f32.mrb[0].mxu0
    %v1437 = vpop.f32.mrb[0].mxu0
    %v1438 = vadd.f32 %v1149, %v1437
    %v1439 = vpop.f32.mrb[0].mxu0
    %1440 = vmatprep.mubr.bf16.mxu0 0
    %1441 = vmatmul.mubr.bf16.gmra.mrb[0].mxu0 %v879
    %v1442 = vpop.f32.mrb[0].mxu0
    %v1443 = vadd.f32 %v1154, %v1442
    %v1444 = vpop.f32.mrb[0].mxu0
    %v1445 = vpop.f32.mrb[0].mxu0
    %v1446 = vadd.f32 %v1157, %v1445
    %v1447 = vpop.f32.mrb[0].mxu0
    %1448 = vmatprep.mubr.bf16.mxu0 0
    %1449 = vmatmul.mubr.bf16.gmra.mrb[0].mxu0 %v882
    %v1450 = vpop.f32.mrb[0].mxu0
    %v1451 = vadd.f32 %v1162, %v1450
    %v1452 = vpop.f32.mrb[0].mxu0
    %v1453 = vpop.f32.mrb[0].mxu0
    %v1454 = vadd.f32 %v1165, %v1453
    %v1455 = vpop.f32.mrb[0].mxu0
    %1456 = vmatprep.mubr.bf16.mxu0 0
    %1457 = vmatmul.mubr.bf16.gmra.mrb[0].mxu0 %v885
    %v1458 = vpop.f32.mrb[0].mxu0
    %v1459 = vadd.f32 %v1170, %v1458
    %v1460 = vpop.f32.mrb[0].mxu0
    %v1461 = vpop.f32.mrb[0].mxu0
    %v1462 = vadd.f32 %v1173, %v1461
    %v1463 = vpop.f32.mrb[0].mxu0
    %1464 = vdwg.mxu0
    %v1465 = vpack.c.bf16 %v1214, %v1211
    %v1466 = vpack.c.bf16 %v1222, %v1219
    %v1467 = vpack.c.bf16 %v1230, %v1227
    %v1468 = vpack.c.bf16 %v1238, %v1235
    %v1469 = vpack.c.bf16 %v1246, %v1243
    %v1470 = vpack.c.bf16 %v1254, %v1251
    %v1471 = vpack.c.bf16 %v1262, %v1259
    %v1472 = vpack.c.bf16 %v1270, %v1267
    %v1473 = vpack.c.bf16 %v1278, %v1275
    %v1474 = vpack.c.bf16 %v1286, %v1283
    %v1475 = vpack.c.bf16 %v1294, %v1291
    %v1476 = vpack.c.bf16 %v1302, %v1299
    %v1477 = vpack.c.bf16 %v1310, %v1307
    %v1478 = vpack.c.bf16 %v1318, %v1315
    %v1479 = vpack.c.bf16 %v1326, %v1323
    %v1480 = vpack.c.bf16 %v1334, %v1331
    %v1481 = vpack.c.bf16 %v1342, %v1339
    %v1482 = vpack.c.bf16 %v1350, %v1347
    %v1483 = vpack.c.bf16 %v1358, %v1355
    %v1484 = vpack.c.bf16 %v1366, %v1363
    %v1485 = vpack.c.bf16 %v1374, %v1371
    %v1486 = vpack.c.bf16 %v1382, %v1379
    %v1487 = vpack.c.bf16 %v1390, %v1387
    %v1488 = vpack.c.bf16 %v1398, %v1395
    %v1489 = vpack.c.bf16 %v1406, %v1403
    %v1490 = vpack.c.bf16 %v1414, %v1411
    %v1491 = vpack.c.bf16 %v1422, %v1419
    %v1492 = vpack.c.bf16 %v1430, %v1427
    %v1493 = vpack.c.bf16 %v1438, %v1435
    %v1494 = vpack.c.bf16 %v1446, %v1443
    %v1495 = vpack.c.bf16 %v1454, %v1451
    %v1496 = vpack.c.bf16 %v1462, %v1459
    %v1497 = vld [vmem:[%s3] sm:$0xff]
    %v1498 = vld [vmem:[%s3 + $0x8] sm:$0xf]
    %v1499 = vld [vmem:[%s3 + $0xc] sm:$0xff]
    %v1500 = vld [vmem:[%s3 + $0x14] sm:$0xf]
    %v1501 = vld [vmem:[%s3 + $0x18] sm:$0xff]
    %v1502 = vld [vmem:[%s3 + $0x20] sm:$0xf]
    %v1503 = vld [vmem:[%s3 + $0x24] sm:$0xff]
    %v1504 = vld [vmem:[%s3 + $0x2c] sm:$0xf]
    %v1505 = vld [vmem:[%s4] sm:$0x7]
    %v1507 = vlaneseq
    %v1508 = vshrl.u32 %v1507, 7
    %v1509 = vsub.s32 0, %v1508
    %v1510 = vrot.slane %v1505, %v1509
    %v1511 = vlaneseq
    %v1512 = vshrl.u32 %v1511, 7
    %v1513 = vsub.s32 1, %v1512
    %v1514 = vrot.slane %v1505, %v1513
    %v1515 = vlaneseq
    %v1516 = vshrl.u32 %v1515, 7
    %v1517 = vsub.s32 2, %v1516
    %v1518 = vrot.slane %v1505, %v1517
    %v1530 = vunpack.c.l.b16 %v1497
    %v1531 = vunpack.c.h.b16 %v1497
    %v1532 = vunpack.c.l.b16 %v1498
    %v1533 = vunpack.c.l.b16 %v1499
    %v1534 = vunpack.c.h.b16 %v1499
    %v1535 = vunpack.c.l.b16 %v1500
    %v1536 = vunpack.c.l.b16 %v1501
    %v1537 = vunpack.c.h.b16 %v1501
    %v1538 = vunpack.c.l.b16 %v1502
    %v1539 = vunpack.c.l.b16 %v1503
    %v1540 = vunpack.c.h.b16 %v1503
    %v1541 = vunpack.c.l.b16 %v1504
    %v1542 = vpack.c.b16 %v1533, %v1530
    %v1543 = vpack.c.b16 %v1534, %v1531
    %v1544 = vpack.c.b16 %v1535, %v1532
    %v1545 = vpack.c.b16 %v1539, %v1536
    %v1546 = vpack.c.b16 %v1540, %v1537
    %v1547 = vpack.c.b16 %v1541, %v1538
    %v1555 = vsel %vm790, %v1465, 0
    %v1558 = vsel %vm790, %v1466, 0
    %v1561 = vsel %vm790, %v1467, 0
    %v1564 = vsel %vm790, %v1468, 0
    %v1567 = vsel %vm790, %v1469, 0
    %v1570 = vsel %vm790, %v1470, 0
    %v1573 = vsel %vm790, %v1471, 0
    %v1576 = vsel %vm790, %v1472, 0
    %v1579 = vsel %vm790, %v1473, 0
    %v1582 = vsel %vm790, %v1474, 0
    %v1585 = vsel %vm790, %v1475, 0
    %v1588 = vsel %vm790, %v1476, 0
    %v1591 = vsel %vm790, %v1477, 0
    %v1594 = vsel %vm790, %v1478, 0
    %v1597 = vsel %vm790, %v1479, 0
    %v1600 = vsel %vm790, %v1480, 0
    %v1603 = vsel %vm790, %v1481, 0
    %v1606 = vsel %vm790, %v1482, 0
    %v1609 = vsel %vm790, %v1483, 0
    %v1612 = vsel %vm790, %v1484, 0
    %v1615 = vsel %vm790, %v1485, 0
    %v1618 = vsel %vm790, %v1486, 0
    %v1621 = vsel %vm790, %v1487, 0
    %v1624 = vsel %vm790, %v1488, 0
    %v1627 = vsel %vm790, %v1489, 0
    %v1630 = vsel %vm790, %v1490, 0
    %v1633 = vsel %vm790, %v1491, 0
    %v1636 = vsel %vm790, %v1492, 0
    %v1639 = vsel %vm790, %v1493, 0
    %v1642 = vsel %vm790, %v1494, 0
    %v1645 = vsel %vm790, %v1495, 0
    %v1648 = vsel %vm790, %v1496, 0
    %1650 = vmatprep.subr.bf16.mxu0 %v1543
    %1651 = vmatpush1.bf16.msra.mxu0 %v1542
    %1652 = vmatprep.subr.bf16.mxu0 %v1546
    %1653 = vmatpush1.bf16.msra.mxu0 %v1545
    %1654 = vmatprep.subr.bf16.mxu0 0
    %1655 = vmatpush1.bf16.msra.mxu0 0
    %1656 = vmatprep.subr.bf16.mxu0 0
    %1657 = vmatpush1.bf16.msra.mxu0 0
    %1658 = vmatprep.subr.bf16.mxu0 0
    %1659 = vmatpush1.bf16.msra.mxu0 0
    %1660 = vmatprep.subr.bf16.mxu0 0
    %1661 = vmatpush1.bf16.msra.mxu0 0
    %1662 = vmatprep.subr.bf16.mxu0 0
    %1663 = vmatpush1.bf16.msra.mxu0 0
    %1664 = vmatprep.subr.bf16.mxu0 0
    %1665 = vmatpush1.bf16.msra.mxu0 0
    %1666 = vmatprep.subr.bf16.mxu0 0
    %1667 = vmatpush1.bf16.msra.mxu0 0
    %1668 = vmatprep.subr.bf16.mxu0 0
    %1669 = vmatpush1.bf16.msra.mxu0 0
    %1670 = vmatprep.subr.bf16.mxu0 0
    %1671 = vmatpush1.bf16.msra.mxu0 0
    %1672 = vmatprep.subr.bf16.mxu0 0
    %1673 = vmatpush1.bf16.msra.mxu0 0
    %1674 = vmatprep.subr.bf16.mxu0 0
    %1675 = vmatpush1.bf16.msra.mxu0 0
    %1676 = vmatprep.subr.bf16.mxu0 0
    %1677 = vmatpush1.bf16.msra.mxu0 0
    %1678 = vmatprep.subr.bf16.mxu0 0
    %1679 = vmatpush1.bf16.msra.mxu0 0
    %1680 = vmatprep.subr.bf16.mxu0 0
    %1681 = vmatpush1.bf16.msra.mxu0 0
    %1682 = vmatprep.mubr.bf16.mxu0 0
    %1683 = vmatmul.mubr.bf16.gmra.mrb[0].mxu0 %v1555
    %v1684 = vpop.f32.mrb[0].mxu0
    %v1685 = vadd.f32 %v1510, %v1684
    %v1686 = vpop.f32.mrb[0].mxu0
    %v1687 = vadd.f32 %v1514, %v1686
    %v1688 = vpop.f32.mrb[0].mxu0
    %v1689 = vadd.f32 %v1510, %v1688
    %v1690 = vpop.f32.mrb[0].mxu0
    %v1691 = vadd.f32 %v1514, %v1690
    %1692 = vmatprep.mubr.bf16.mxu0 0
    %1693 = vmatmul.mubr.bf16.gmra.mrb[0].mxu0 %v1558
    %v1694 = vpop.f32.mrb[0].mxu0
    %v1695 = vadd.f32 %v1510, %v1694
    %v1696 = vpop.f32.mrb[0].mxu0
    %v1697 = vadd.f32 %v1514, %v1696
    %v1698 = vpop.f32.mrb[0].mxu0
    %v1699 = vadd.f32 %v1510, %v1698
    %v1700 = vpop.f32.mrb[0].mxu0
    %v1701 = vadd.f32 %v1514, %v1700
    %1702 = vmatprep.mubr.bf16.mxu0 0
    %1703 = vmatmul.mubr.bf16.gmra.mrb[0].mxu0 %v1561
    %v1704 = vpop.f32.mrb[0].mxu0
    %v1705 = vadd.f32 %v1510, %v1704
    %v1706 = vpop.f32.mrb[0].mxu0
    %v1707 = vadd.f32 %v1514, %v1706
    %v1708 = vpop.f32.mrb[0].mxu0
    %v1709 = vadd.f32 %v1510, %v1708
    %v1710 = vpop.f32.mrb[0].mxu0
    %v1711 = vadd.f32 %v1514, %v1710
    %1712 = vmatprep.mubr.bf16.mxu0 0
    %1713 = vmatmul.mubr.bf16.gmra.mrb[0].mxu0 %v1564
    %v1714 = vpop.f32.mrb[0].mxu0
    %v1715 = vadd.f32 %v1510, %v1714
    %v1716 = vpop.f32.mrb[0].mxu0
    %v1717 = vadd.f32 %v1514, %v1716
    %v1718 = vpop.f32.mrb[0].mxu0
    %v1719 = vadd.f32 %v1510, %v1718
    %v1720 = vpop.f32.mrb[0].mxu0
    %v1721 = vadd.f32 %v1514, %v1720
    %1722 = vmatprep.mubr.bf16.mxu0 0
    %1723 = vmatmul.mubr.bf16.gmra.mrb[0].mxu0 %v1567
    %v1724 = vpop.f32.mrb[0].mxu0
    %v1725 = vadd.f32 %v1510, %v1724
    %v1726 = vpop.f32.mrb[0].mxu0
    %v1727 = vadd.f32 %v1514, %v1726
    %v1728 = vpop.f32.mrb[0].mxu0
    %v1729 = vadd.f32 %v1510, %v1728
    %v1730 = vpop.f32.mrb[0].mxu0
    %v1731 = vadd.f32 %v1514, %v1730
    %1732 = vmatprep.mubr.bf16.mxu0 0
    %1733 = vmatmul.mubr.bf16.gmra.mrb[0].mxu0 %v1570
    %v1734 = vpop.f32.mrb[0].mxu0
    %v1735 = vadd.f32 %v1510, %v1734
    %v1736 = vpop.f32.mrb[0].mxu0
    %v1737 = vadd.f32 %v1514, %v1736
    %v1738 = vpop.f32.mrb[0].mxu0
    %v1739 = vadd.f32 %v1510, %v1738
    %v1740 = vpop.f32.mrb[0].mxu0
    %v1741 = vadd.f32 %v1514, %v1740
    %1742 = vmatprep.mubr.bf16.mxu0 0
    %1743 = vmatmul.mubr.bf16.gmra.mrb[0].mxu0 %v1573
    %v1744 = vpop.f32.mrb[0].mxu0
    %v1745 = vadd.f32 %v1510, %v1744
    %v1746 = vpop.f32.mrb[0].mxu0
    %v1747 = vadd.f32 %v1514, %v1746
    %v1748 = vpop.f32.mrb[0].mxu0
    %v1749 = vadd.f32 %v1510, %v1748
    %v1750 = vpop.f32.mrb[0].mxu0
    %v1751 = vadd.f32 %v1514, %v1750
    %1752 = vmatprep.mubr.bf16.mxu0 0
    %1753 = vmatmul.mubr.bf16.gmra.mrb[0].mxu0 %v1576
    %v1754 = vpop.f32.mrb[0].mxu0
    %v1755 = vadd.f32 %v1510, %v1754
    %v1756 = vpop.f32.mrb[0].mxu0
    %v1757 = vadd.f32 %v1514, %v1756
    %v1758 = vpop.f32.mrb[0].mxu0
    %v1759 = vadd.f32 %v1510, %v1758
    %v1760 = vpop.f32.mrb[0].mxu0
    %v1761 = vadd.f32 %v1514, %v1760
    %1762 = vmatprep.mubr.bf16.mxu0 0
    %1763 = vmatmul.mubr.bf16.gmra.mrb[0].mxu0 %v1579
    %v1764 = vpop.f32.mrb[0].mxu0
    %v1765 = vadd.f32 %v1510, %v1764
    %v1766 = vpop.f32.mrb[0].mxu0
    %v1767 = vadd.f32 %v1514, %v1766
    %v1768 = vpop.f32.mrb[0].mxu0
    %v1769 = vadd.f32 %v1510, %v1768
    %v1770 = vpop.f32.mrb[0].mxu0
    %v1771 = vadd.f32 %v1514, %v1770
    %1772 = vmatprep.mubr.bf16.mxu0 0
    %1773 = vmatmul.mubr.bf16.gmra.mrb[0].mxu0 %v1582
    %v1774 = vpop.f32.mrb[0].mxu0
    %v1775 = vadd.f32 %v1510, %v1774
    %v1776 = vpop.f32.mrb[0].mxu0
    %v1777 = vadd.f32 %v1514, %v1776
    %v1778 = vpop.f32.mrb[0].mxu0
    %v1779 = vadd.f32 %v1510, %v1778
    %v1780 = vpop.f32.mrb[0].mxu0
    %v1781 = vadd.f32 %v1514, %v1780
    %1782 = vmatprep.mubr.bf16.mxu0 0
    %1783 = vmatmul.mubr.bf16.gmra.mrb[0].mxu0 %v1585
    %v1784 = vpop.f32.mrb[0].mxu0
    %v1785 = vadd.f32 %v1510, %v1784
    %v1786 = vpop.f32.mrb[0].mxu0
    %v1787 = vadd.f32 %v1514, %v1786
    %v1788 = vpop.f32.mrb[0].mxu0
    %v1789 = vadd.f32 %v1510, %v1788
    %v1790 = vpop.f32.mrb[0].mxu0
    %v1791 = vadd.f32 %v1514, %v1790
    %1792 = vmatprep.mubr.bf16.mxu0 0
    %1793 = vmatmul.mubr.bf16.gmra.mrb[0].mxu0 %v1588
    %v1794 = vpop.f32.mrb[0].mxu0
    %v1795 = vadd.f32 %v1510, %v1794
    %v1796 = vpop.f32.mrb[0].mxu0
    %v1797 = vadd.f32 %v1514, %v1796
    %v1798 = vpop.f32.mrb[0].mxu0
    %v1799 = vadd.f32 %v1510, %v1798
    %v1800 = vpop.f32.mrb[0].mxu0
    %v1801 = vadd.f32 %v1514, %v1800
    %1802 = vmatprep.mubr.bf16.mxu0 0
    %1803 = vmatmul.mubr.bf16.gmra.mrb[0].mxu0 %v1591
    %v1804 = vpop.f32.mrb[0].mxu0
    %v1805 = vadd.f32 %v1510, %v1804
    %v1806 = vpop.f32.mrb[0].mxu0
    %v1807 = vadd.f32 %v1514, %v1806
    %v1808 = vpop.f32.mrb[0].mxu0
    %v1809 = vadd.f32 %v1510, %v1808
    %v1810 = vpop.f32.mrb[0].mxu0
    %v1811 = vadd.f32 %v1514, %v1810
    %1812 = vmatprep.mubr.bf16.mxu0 0
    %1813 = vmatmul.mubr.bf16.gmra.mrb[0].mxu0 %v1594
    %v1814 = vpop.f32.mrb[0].mxu0
    %v1815 = vadd.f32 %v1510, %v1814
    %v1816 = vpop.f32.mrb[0].mxu0
    %v1817 = vadd.f32 %v1514, %v1816
    %v1818 = vpop.f32.mrb[0].mxu0
    %v1819 = vadd.f32 %v1510, %v1818
    %v1820 = vpop.f32.mrb[0].mxu0
    %v1821 = vadd.f32 %v1514, %v1820
    %1822 = vmatprep.mubr.bf16.mxu0 0
    %1823 = vmatmul.mubr.bf16.gmra.mrb[0].mxu0 %v1597
    %v1824 = vpop.f32.mrb[0].mxu0
    %v1825 = vadd.f32 %v1510, %v1824
    %v1826 = vpop.f32.mrb[0].mxu0
    %v1827 = vadd.f32 %v1514, %v1826
    %v1828 = vpop.f32.mrb[0].mxu0
    %v1829 = vadd.f32 %v1510, %v1828
    %v1830 = vpop.f32.mrb[0].mxu0
    %v1831 = vadd.f32 %v1514, %v1830
    %1832 = vmatprep.mubr.bf16.mxu0 0
    %1833 = vmatmul.mubr.bf16.gmra.mrb[0].mxu0 %v1600
    %v1834 = vpop.f32.mrb[0].mxu0
    %v1835 = vadd.f32 %v1510, %v1834
    %v1836 = vpop.f32.mrb[0].mxu0
    %v1837 = vadd.f32 %v1514, %v1836
    %v1838 = vpop.f32.mrb[0].mxu0
    %v1839 = vadd.f32 %v1510, %v1838
    %v1840 = vpop.f32.mrb[0].mxu0
    %v1841 = vadd.f32 %v1514, %v1840
    %1842 = vmatprep.mubr.bf16.mxu0 0
    %1843 = vmatmul.mubr.bf16.gmra.mrb[0].mxu0 %v1603
    %v1844 = vpop.f32.mrb[0].mxu0
    %v1845 = vadd.f32 %v1510, %v1844
    %v1846 = vpop.f32.mrb[0].mxu0
    %v1847 = vadd.f32 %v1514, %v1846
    %v1848 = vpop.f32.mrb[0].mxu0
    %v1849 = vadd.f32 %v1510, %v1848
    %v1850 = vpop.f32.mrb[0].mxu0
    %v1851 = vadd.f32 %v1514, %v1850
    %1852 = vmatprep.mubr.bf16.mxu0 0
    %1853 = vmatmul.mubr.bf16.gmra.mrb[0].mxu0 %v1606
    %v1854 = vpop.f32.mrb[0].mxu0
    %v1855 = vadd.f32 %v1510, %v1854
    %v1856 = vpop.f32.mrb[0].mxu0
    %v1857 = vadd.f32 %v1514, %v1856
    %v1858 = vpop.f32.mrb[0].mxu0
    %v1859 = vadd.f32 %v1510, %v1858
    %v1860 = vpop.f32.mrb[0].mxu0
    %v1861 = vadd.f32 %v1514, %v1860
    %1862 = vmatprep.mubr.bf16.mxu0 0
    %1863 = vmatmul.mubr.bf16.gmra.mrb[0].mxu0 %v1609
    %v1864 = vpop.f32.mrb[0].mxu0
    %v1865 = vadd.f32 %v1510, %v1864
    %v1866 = vpop.f32.mrb[0].mxu0
    %v1867 = vadd.f32 %v1514, %v1866
    %v1868 = vpop.f32.mrb[0].mxu0
    %v1869 = vadd.f32 %v1510, %v1868
    %v1870 = vpop.f32.mrb[0].mxu0
    %v1871 = vadd.f32 %v1514, %v1870
    %1872 = vmatprep.mubr.bf16.mxu0 0
    %1873 = vmatmul.mubr.bf16.gmra.mrb[0].mxu0 %v1612
    %v1874 = vpop.f32.mrb[0].mxu0
    %v1875 = vadd.f32 %v1510, %v1874
    %v1876 = vpop.f32.mrb[0].mxu0
    %v1877 = vadd.f32 %v1514, %v1876
    %v1878 = vpop.f32.mrb[0].mxu0
    %v1879 = vadd.f32 %v1510, %v1878
    %v1880 = vpop.f32.mrb[0].mxu0
    %v1881 = vadd.f32 %v1514, %v1880
    %1882 = vmatprep.mubr.bf16.mxu0 0
    %1883 = vmatmul.mubr.bf16.gmra.mrb[0].mxu0 %v1615
    %v1884 = vpop.f32.mrb[0].mxu0
    %v1885 = vadd.f32 %v1510, %v1884
    %v1886 = vpop.f32.mrb[0].mxu0
    %v1887 = vadd.f32 %v1514, %v1886
    %v1888 = vpop.f32.mrb[0].mxu0
    %v1889 = vadd.f32 %v1510, %v1888
    %v1890 = vpop.f32.mrb[0].mxu0
    %v1891 = vadd.f32 %v1514, %v1890
    %1892 = vmatprep.mubr.bf16.mxu0 0
    %1893 = vmatmul.mubr.bf16.gmra.mrb[0].mxu0 %v1618
    %v1894 = vpop.f32.mrb[0].mxu0
    %v1895 = vadd.f32 %v1510, %v1894
    %v1896 = vpop.f32.mrb[0].mxu0
    %v1897 = vadd.f32 %v1514, %v1896
    %v1898 = vpop.f32.mrb[0].mxu0
    %v1899 = vadd.f32 %v1510, %v1898
    %v1900 = vpop.f32.mrb[0].mxu0
    %v1901 = vadd.f32 %v1514, %v1900
    %1902 = vmatprep.mubr.bf16.mxu0 0
    %1903 = vmatmul.mubr.bf16.gmra.mrb[0].mxu0 %v1621
    %v1904 = vpop.f32.mrb[0].mxu0
    %v1905 = vadd.f32 %v1510, %v1904
    %v1906 = vpop.f32.mrb[0].mxu0
    %v1907 = vadd.f32 %v1514, %v1906
    %v1908 = vpop.f32.mrb[0].mxu0
    %v1909 = vadd.f32 %v1510, %v1908
    %v1910 = vpop.f32.mrb[0].mxu0
    %v1911 = vadd.f32 %v1514, %v1910
    %1912 = vmatprep.mubr.bf16.mxu0 0
    %1913 = vmatmul.mubr.bf16.gmra.mrb[0].mxu0 %v1624
    %v1914 = vpop.f32.mrb[0].mxu0
    %v1915 = vadd.f32 %v1510, %v1914
    %v1916 = vpop.f32.mrb[0].mxu0
    %v1917 = vadd.f32 %v1514, %v1916
    %v1918 = vpop.f32.mrb[0].mxu0
    %v1919 = vadd.f32 %v1510, %v1918
    %v1920 = vpop.f32.mrb[0].mxu0
    %v1921 = vadd.f32 %v1514, %v1920
    %1922 = vmatprep.mubr.bf16.mxu0 0
    %1923 = vmatmul.mubr.bf16.gmra.mrb[0].mxu0 %v1627
    %v1924 = vpop.f32.mrb[0].mxu0
    %v1925 = vadd.f32 %v1510, %v1924
    %v1926 = vpop.f32.mrb[0].mxu0
    %v1927 = vadd.f32 %v1514, %v1926
    %v1928 = vpop.f32.mrb[0].mxu0
    %v1929 = vadd.f32 %v1510, %v1928
    %v1930 = vpop.f32.mrb[0].mxu0
    %v1931 = vadd.f32 %v1514, %v1930
    %1932 = vmatprep.mubr.bf16.mxu0 0
    %1933 = vmatmul.mubr.bf16.gmra.mrb[0].mxu0 %v1630
    %v1934 = vpop.f32.mrb[0].mxu0
    %v1935 = vadd.f32 %v1510, %v1934
    %v1936 = vpop.f32.mrb[0].mxu0
    %v1937 = vadd.f32 %v1514, %v1936
    %v1938 = vpop.f32.mrb[0].mxu0
    %v1939 = vadd.f32 %v1510, %v1938
    %v1940 = vpop.f32.mrb[0].mxu0
    %v1941 = vadd.f32 %v1514, %v1940
    %1942 = vmatprep.mubr.bf16.mxu0 0
    %1943 = vmatmul.mubr.bf16.gmra.mrb[0].mxu0 %v1633
    %v1944 = vpop.f32.mrb[0].mxu0
    %v1945 = vadd.f32 %v1510, %v1944
    %v1946 = vpop.f32.mrb[0].mxu0
    %v1947 = vadd.f32 %v1514, %v1946
    %v1948 = vpop.f32.mrb[0].mxu0
    %v1949 = vadd.f32 %v1510, %v1948
    %v1950 = vpop.f32.mrb[0].mxu0
    %v1951 = vadd.f32 %v1514, %v1950
    %1952 = vmatprep.mubr.bf16.mxu0 0
    %1953 = vmatmul.mubr.bf16.gmra.mrb[0].mxu0 %v1636
    %v1954 = vpop.f32.mrb[0].mxu0
    %v1955 = vadd.f32 %v1510, %v1954
    %v1956 = vpop.f32.mrb[0].mxu0
    %v1957 = vadd.f32 %v1514, %v1956
    %v1958 = vpop.f32.mrb[0].mxu0
    %v1959 = vadd.f32 %v1510, %v1958
    %v1960 = vpop.f32.mrb[0].mxu0
    %v1961 = vadd.f32 %v1514, %v1960
    %1962 = vmatprep.mubr.bf16.mxu0 0
    %1963 = vmatmul.mubr.bf16.gmra.mrb[0].mxu0 %v1639
    %v1964 = vpop.f32.mrb[0].mxu0
    %v1965 = vadd.f32 %v1510, %v1964
    %v1966 = vpop.f32.mrb[0].mxu0
    %v1967 = vadd.f32 %v1514, %v1966
    %v1968 = vpop.f32.mrb[0].mxu0
    %v1969 = vadd.f32 %v1510, %v1968
    %v1970 = vpop.f32.mrb[0].mxu0
    %v1971 = vadd.f32 %v1514, %v1970
    %1972 = vmatprep.mubr.bf16.mxu0 0
    %1973 = vmatmul.mubr.bf16.gmra.mrb[0].mxu0 %v1642
    %v1974 = vpop.f32.mrb[0].mxu0
    %v1975 = vadd.f32 %v1510, %v1974
    %v1976 = vpop.f32.mrb[0].mxu0
    %v1977 = vadd.f32 %v1514, %v1976
    %v1978 = vpop.f32.mrb[0].mxu0
    %v1979 = vadd.f32 %v1510, %v1978
    %v1980 = vpop.f32.mrb[0].mxu0
    %v1981 = vadd.f32 %v1514, %v1980
    %1982 = vmatprep.mubr.bf16.mxu0 0
    %1983 = vmatmul.mubr.bf16.gmra.mrb[0].mxu0 %v1645
    %v1984 = vpop.f32.mrb[0].mxu0
    %v1985 = vadd.f32 %v1510, %v1984
    %v1986 = vpop.f32.mrb[0].mxu0
    %v1987 = vadd.f32 %v1514, %v1986
    %v1988 = vpop.f32.mrb[0].mxu0
    %v1989 = vadd.f32 %v1510, %v1988
    %v1990 = vpop.f32.mrb[0].mxu0
    %v1991 = vadd.f32 %v1514, %v1990
    %1992 = vmatprep.mubr.bf16.mxu0 0
    %1993 = vmatmul.mubr.bf16.gmra.mrb[0].mxu0 %v1648
    %v1994 = vpop.f32.mrb[0].mxu0
    %v1995 = vadd.f32 %v1510, %v1994
    %v1996 = vpop.f32.mrb[0].mxu0
    %v1997 = vadd.f32 %v1514, %v1996
    %v1998 = vpop.f32.mrb[0].mxu0
    %v1999 = vadd.f32 %v1510, %v1998
    %v2000 = vpop.f32.mrb[0].mxu0
    %v2001 = vadd.f32 %v1514, %v2000
    %2002 = vdwg.mxu0
    %2003 = vmatprep.subr.bf16.mxu0 0
    %2004 = vmatpush1.bf16.msra.mxu0 %v1544
    %2005 = vmatprep.subr.bf16.mxu0 0
    %2006 = vmatpush1.bf16.msra.mxu0 %v1547
    %2007 = vmatprep.subr.bf16.mxu0 0
    %2008 = vmatpush1.bf16.msra.mxu0 0
    %2009 = vmatprep.subr.bf16.mxu0 0
    %2010 = vmatpush1.bf16.msra.mxu0 0
    %2011 = vmatprep.subr.bf16.mxu0 0
    %2012 = vmatpush1.bf16.msra.mxu0 0
    %2013 = vmatprep.subr.bf16.mxu0 0
    %2014 = vmatpush1.bf16.msra.mxu0 0
    %2015 = vmatprep.subr.bf16.mxu0 0
    %2016 = vmatpush1.bf16.msra.mxu0 0
    %2017 = vmatprep.subr.bf16.mxu0 0
    %2018 = vmatpush1.bf16.msra.mxu0 0
    %2019 = vmatprep.subr.bf16.mxu0 0
    %2020 = vmatpush1.bf16.msra.mxu0 0
    %2021 = vmatprep.subr.bf16.mxu0 0
    %2022 = vmatpush1.bf16.msra.mxu0 0
    %2023 = vmatprep.subr.bf16.mxu0 0
    %2024 = vmatpush1.bf16.msra.mxu0 0
    %2025 = vmatprep.subr.bf16.mxu0 0
    %2026 = vmatpush1.bf16.msra.mxu0 0
    %2027 = vmatprep.subr.bf16.mxu0 0
    %2028 = vmatpush1.bf16.msra.mxu0 0
    %2029 = vmatprep.subr.bf16.mxu0 0
    %2030 = vmatpush1.bf16.msra.mxu0 0
    %2031 = vmatprep.subr.bf16.mxu0 0
    %2032 = vmatpush1.bf16.msra.mxu0 0
    %2033 = vmatprep.subr.bf16.mxu0 0
    %2034 = vmatpush1.bf16.msra.mxu0 0
    %2035 = vmatprep.mubr.bf16.mxu0 0
    %2036 = vmatmul.mubr.bf16.gmra.mrb[0].mxu0 %v1555
    %v2037 = vpop.f32.mrb[0].mxu0
    %v2038 = vadd.f32 %v1518, %v2037
    %v2039 = vpop.f32.mrb[0].mxu0
    %v2040 = vpop.f32.mrb[0].mxu0
    %v2041 = vadd.f32 %v1518, %v2040
    %v2042 = vpop.f32.mrb[0].mxu0
    %2043 = vmatprep.mubr.bf16.mxu0 0
    %2044 = vmatmul.mubr.bf16.gmra.mrb[0].mxu0 %v1558
    %v2045 = vpop.f32.mrb[0].mxu0
    %v2046 = vadd.f32 %v1518, %v2045
    %v2047 = vpop.f32.mrb[0].mxu0
    %v2048 = vpop.f32.mrb[0].mxu0
    %v2049 = vadd.f32 %v1518, %v2048
    %v2050 = vpop.f32.mrb[0].mxu0
    %2051 = vmatprep.mubr.bf16.mxu0 0
    %2052 = vmatmul.mubr.bf16.gmra.mrb[0].mxu0 %v1561
    %v2053 = vpop.f32.mrb[0].mxu0
    %v2054 = vadd.f32 %v1518, %v2053
    %v2055 = vpop.f32.mrb[0].mxu0
    %v2056 = vpop.f32.mrb[0].mxu0
    %v2057 = vadd.f32 %v1518, %v2056
    %v2058 = vpop.f32.mrb[0].mxu0
    %2059 = vmatprep.mubr.bf16.mxu0 0
    %2060 = vmatmul.mubr.bf16.gmra.mrb[0].mxu0 %v1564
    %v2061 = vpop.f32.mrb[0].mxu0
    %v2062 = vadd.f32 %v1518, %v2061
    %v2063 = vpop.f32.mrb[0].mxu0
    %v2064 = vpop.f32.mrb[0].mxu0
    %v2065 = vadd.f32 %v1518, %v2064
    %v2066 = vpop.f32.mrb[0].mxu0
    %2067 = vmatprep.mubr.bf16.mxu0 0
    %2068 = vmatmul.mubr.bf16.gmra.mrb[0].mxu0 %v1567
    %v2069 = vpop.f32.mrb[0].mxu0
    %v2070 = vadd.f32 %v1518, %v2069
    %v2071 = vpop.f32.mrb[0].mxu0
    %v2072 = vpop.f32.mrb[0].mxu0
    %v2073 = vadd.f32 %v1518, %v2072
    %v2074 = vpop.f32.mrb[0].mxu0
    %2075 = vmatprep.mubr.bf16.mxu0 0
    %2076 = vmatmul.mubr.bf16.gmra.mrb[0].mxu0 %v1570
    %v2077 = vpop.f32.mrb[0].mxu0
    %v2078 = vadd.f32 %v1518, %v2077
    %v2079 = vpop.f32.mrb[0].mxu0
    %v2080 = vpop.f32.mrb[0].mxu0
    %v2081 = vadd.f32 %v1518, %v2080
    %v2082 = vpop.f32.mrb[0].mxu0
    %2083 = vmatprep.mubr.bf16.mxu0 0
    %2084 = vmatmul.mubr.bf16.gmra.mrb[0].mxu0 %v1573
    %v2085 = vpop.f32.mrb[0].mxu0
    %v2086 = vadd.f32 %v1518, %v2085
    %v2087 = vpop.f32.mrb[0].mxu0
    %v2088 = vpop.f32.mrb[0].mxu0
    %v2089 = vadd.f32 %v1518, %v2088
    %v2090 = vpop.f32.mrb[0].mxu0
    %2091 = vmatprep.mubr.bf16.mxu0 0
    %2092 = vmatmul.mubr.bf16.gmra.mrb[0].mxu0 %v1576
    %v2093 = vpop.f32.mrb[0].mxu0
    %v2094 = vadd.f32 %v1518, %v2093
    %v2095 = vpop.f32.mrb[0].mxu0
    %v2096 = vpop.f32.mrb[0].mxu0
    %v2097 = vadd.f32 %v1518, %v2096
    %v2098 = vpop.f32.mrb[0].mxu0
    %2099 = vmatprep.mubr.bf16.mxu0 0
    %2100 = vmatmul.mubr.bf16.gmra.mrb[0].mxu0 %v1579
    %v2101 = vpop.f32.mrb[0].mxu0
    %v2102 = vadd.f32 %v1518, %v2101
    %v2103 = vpop.f32.mrb[0].mxu0
    %v2104 = vpop.f32.mrb[0].mxu0
    %v2105 = vadd.f32 %v1518, %v2104
    %v2106 = vpop.f32.mrb[0].mxu0
    %2107 = vmatprep.mubr.bf16.mxu0 0
    %2108 = vmatmul.mubr.bf16.gmra.mrb[0].mxu0 %v1582
    %v2109 = vpop.f32.mrb[0].mxu0
    %v2110 = vadd.f32 %v1518, %v2109
    %v2111 = vpop.f32.mrb[0].mxu0
    %v2112 = vpop.f32.mrb[0].mxu0
    %v2113 = vadd.f32 %v1518, %v2112
    %v2114 = vpop.f32.mrb[0].mxu0
    %2115 = vmatprep.mubr.bf16.mxu0 0
    %2116 = vmatmul.mubr.bf16.gmra.mrb[0].mxu0 %v1585
    %v2117 = vpop.f32.mrb[0].mxu0
    %v2118 = vadd.f32 %v1518, %v2117
    %v2119 = vpop.f32.mrb[0].mxu0
    %v2120 = vpop.f32.mrb[0].mxu0
    %v2121 = vadd.f32 %v1518, %v2120
    %v2122 = vpop.f32.mrb[0].mxu0
    %2123 = vmatprep.mubr.bf16.mxu0 0
    %2124 = vmatmul.mubr.bf16.gmra.mrb[0].mxu0 %v1588
    %v2125 = vpop.f32.mrb[0].mxu0
    %v2126 = vadd.f32 %v1518, %v2125
    %v2127 = vpop.f32.mrb[0].mxu0
    %v2128 = vpop.f32.mrb[0].mxu0
    %v2129 = vadd.f32 %v1518, %v2128
    %v2130 = vpop.f32.mrb[0].mxu0
    %2131 = vmatprep.mubr.bf16.mxu0 0
    %2132 = vmatmul.mubr.bf16.gmra.mrb[0].mxu0 %v1591
    %v2133 = vpop.f32.mrb[0].mxu0
    %v2134 = vadd.f32 %v1518, %v2133
    %v2135 = vpop.f32.mrb[0].mxu0
    %v2136 = vpop.f32.mrb[0].mxu0
    %v2137 = vadd.f32 %v1518, %v2136
    %v2138 = vpop.f32.mrb[0].mxu0
    %2139 = vmatprep.mubr.bf16.mxu0 0
    %2140 = vmatmul.mubr.bf16.gmra.mrb[0].mxu0 %v1594
    %v2141 = vpop.f32.mrb[0].mxu0
    %v2142 = vadd.f32 %v1518, %v2141
    %v2143 = vpop.f32.mrb[0].mxu0
    %v2144 = vpop.f32.mrb[0].mxu0
    %v2145 = vadd.f32 %v1518, %v2144
    %v2146 = vpop.f32.mrb[0].mxu0
    %2147 = vmatprep.mubr.bf16.mxu0 0
    %2148 = vmatmul.mubr.bf16.gmra.mrb[0].mxu0 %v1597
    %v2149 = vpop.f32.mrb[0].mxu0
    %v2150 = vadd.f32 %v1518, %v2149
    %v2151 = vpop.f32.mrb[0].mxu0
    %v2152 = vpop.f32.mrb[0].mxu0
    %v2153 = vadd.f32 %v1518, %v2152
    %v2154 = vpop.f32.mrb[0].mxu0
    %2155 = vmatprep.mubr.bf16.mxu0 0
    %2156 = vmatmul.mubr.bf16.gmra.mrb[0].mxu0 %v1600
    %v2157 = vpop.f32.mrb[0].mxu0
    %v2158 = vadd.f32 %v1518, %v2157
    %v2159 = vpop.f32.mrb[0].mxu0
    %v2160 = vpop.f32.mrb[0].mxu0
    %v2161 = vadd.f32 %v1518, %v2160
    %v2162 = vpop.f32.mrb[0].mxu0
    %2163 = vmatprep.mubr.bf16.mxu0 0
    %2164 = vmatmul.mubr.bf16.gmra.mrb[0].mxu0 %v1603
    %v2165 = vpop.f32.mrb[0].mxu0
    %v2166 = vadd.f32 %v1518, %v2165
    %v2167 = vpop.f32.mrb[0].mxu0
    %v2168 = vpop.f32.mrb[0].mxu0
    %v2169 = vadd.f32 %v1518, %v2168
    %v2170 = vpop.f32.mrb[0].mxu0
    %2171 = vmatprep.mubr.bf16.mxu0 0
    %2172 = vmatmul.mubr.bf16.gmra.mrb[0].mxu0 %v1606
    %v2173 = vpop.f32.mrb[0].mxu0
    %v2174 = vadd.f32 %v1518, %v2173
    %v2175 = vpop.f32.mrb[0].mxu0
    %v2176 = vpop.f32.mrb[0].mxu0
    %v2177 = vadd.f32 %v1518, %v2176
    %v2178 = vpop.f32.mrb[0].mxu0
    %2179 = vmatprep.mubr.bf16.mxu0 0
    %2180 = vmatmul.mubr.bf16.gmra.mrb[0].mxu0 %v1609
    %v2181 = vpop.f32.mrb[0].mxu0
    %v2182 = vadd.f32 %v1518, %v2181
    %v2183 = vpop.f32.mrb[0].mxu0
    %v2184 = vpop.f32.mrb[0].mxu0
    %v2185 = vadd.f32 %v1518, %v2184
    %v2186 = vpop.f32.mrb[0].mxu0
    %2187 = vmatprep.mubr.bf16.mxu0 0
    %2188 = vmatmul.mubr.bf16.gmra.mrb[0].mxu0 %v1612
    %v2189 = vpop.f32.mrb[0].mxu0
    %v2190 = vadd.f32 %v1518, %v2189
    %v2191 = vpop.f32.mrb[0].mxu0
    %v2192 = vpop.f32.mrb[0].mxu0
    %v2193 = vadd.f32 %v1518, %v2192
    %v2194 = vpop.f32.mrb[0].mxu0
    %2195 = vmatprep.mubr.bf16.mxu0 0
    %2196 = vmatmul.mubr.bf16.gmra.mrb[0].mxu0 %v1615
    %v2197 = vpop.f32.mrb[0].mxu0
    %v2198 = vadd.f32 %v1518, %v2197
    %v2199 = vpop.f32.mrb[0].mxu0
    %v2200 = vpop.f32.mrb[0].mxu0
    %v2201 = vadd.f32 %v1518, %v2200
    %v2202 = vpop.f32.mrb[0].mxu0
    %2203 = vmatprep.mubr.bf16.mxu0 0
    %2204 = vmatmul.mubr.bf16.gmra.mrb[0].mxu0 %v1618
    %v2205 = vpop.f32.mrb[0].mxu0
    %v2206 = vadd.f32 %v1518, %v2205
    %v2207 = vpop.f32.mrb[0].mxu0
    %v2208 = vpop.f32.mrb[0].mxu0
    %v2209 = vadd.f32 %v1518, %v2208
    %v2210 = vpop.f32.mrb[0].mxu0
    %2211 = vmatprep.mubr.bf16.mxu0 0
    %2212 = vmatmul.mubr.bf16.gmra.mrb[0].mxu0 %v1621
    %v2213 = vpop.f32.mrb[0].mxu0
    %v2214 = vadd.f32 %v1518, %v2213
    %v2215 = vpop.f32.mrb[0].mxu0
    %v2216 = vpop.f32.mrb[0].mxu0
    %v2217 = vadd.f32 %v1518, %v2216
    %v2218 = vpop.f32.mrb[0].mxu0
    %2219 = vmatprep.mubr.bf16.mxu0 0
    %2220 = vmatmul.mubr.bf16.gmra.mrb[0].mxu0 %v1624
    %v2221 = vpop.f32.mrb[0].mxu0
    %v2222 = vadd.f32 %v1518, %v2221
    %v2223 = vpop.f32.mrb[0].mxu0
    %v2224 = vpop.f32.mrb[0].mxu0
    %v2225 = vadd.f32 %v1518, %v2224
    %v2226 = vpop.f32.mrb[0].mxu0
    %2227 = vmatprep.mubr.bf16.mxu0 0
    %2228 = vmatmul.mubr.bf16.gmra.mrb[0].mxu0 %v1627
    %v2229 = vpop.f32.mrb[0].mxu0
    %v2230 = vadd.f32 %v1518, %v2229
    %v2231 = vpop.f32.mrb[0].mxu0
    %v2232 = vpop.f32.mrb[0].mxu0
    %v2233 = vadd.f32 %v1518, %v2232
    %v2234 = vpop.f32.mrb[0].mxu0
    %2235 = vmatprep.mubr.bf16.mxu0 0
    %2236 = vmatmul.mubr.bf16.gmra.mrb[0].mxu0 %v1630
    %v2237 = vpop.f32.mrb[0].mxu0
    %v2238 = vadd.f32 %v1518, %v2237
    %v2239 = vpop.f32.mrb[0].mxu0
    %v2240 = vpop.f32.mrb[0].mxu0
    %v2241 = vadd.f32 %v1518, %v2240
    %v2242 = vpop.f32.mrb[0].mxu0
    %2243 = vmatprep.mubr.bf16.mxu0 0
    %2244 = vmatmul.mubr.bf16.gmra.mrb[0].mxu0 %v1633
    %v2245 = vpop.f32.mrb[0].mxu0
    %v2246 = vadd.f32 %v1518, %v2245
    %v2247 = vpop.f32.mrb[0].mxu0
    %v2248 = vpop.f32.mrb[0].mxu0
    %v2249 = vadd.f32 %v1518, %v2248
    %v2250 = vpop.f32.mrb[0].mxu0
    %2251 = vmatprep.mubr.bf16.mxu0 0
    %2252 = vmatmul.mubr.bf16.gmra.mrb[0].mxu0 %v1636
    %v2253 = vpop.f32.mrb[0].mxu0
    %v2254 = vadd.f32 %v1518, %v2253
    %v2255 = vpop.f32.mrb[0].mxu0
    %v2256 = vpop.f32.mrb[0].mxu0
    %v2257 = vadd.f32 %v1518, %v2256
    %v2258 = vpop.f32.mrb[0].mxu0
    %2259 = vmatprep.mubr.bf16.mxu0 0
    %2260 = vmatmul.mubr.bf16.gmra.mrb[0].mxu0 %v1639
    %v2261 = vpop.f32.mrb[0].mxu0
    %v2262 = vadd.f32 %v1518, %v2261
    %v2263 = vpop.f32.mrb[0].mxu0
    %v2264 = vpop.f32.mrb[0].mxu0
    %v2265 = vadd.f32 %v1518, %v2264
    %v2266 = vpop.f32.mrb[0].mxu0
    %2267 = vmatprep.mubr.bf16.mxu0 0
    %2268 = vmatmul.mubr.bf16.gmra.mrb[0].mxu0 %v1642
    %v2269 = vpop.f32.mrb[0].mxu0
    %v2270 = vadd.f32 %v1518, %v2269
    %v2271 = vpop.f32.mrb[0].mxu0
    %v2272 = vpop.f32.mrb[0].mxu0
    %v2273 = vadd.f32 %v1518, %v2272
    %v2274 = vpop.f32.mrb[0].mxu0
    %2275 = vmatprep.mubr.bf16.mxu0 0
    %2276 = vmatmul.mubr.bf16.gmra.mrb[0].mxu0 %v1645
    %v2277 = vpop.f32.mrb[0].mxu0
    %v2278 = vadd.f32 %v1518, %v2277
    %v2279 = vpop.f32.mrb[0].mxu0
    %v2280 = vpop.f32.mrb[0].mxu0
    %v2281 = vadd.f32 %v1518, %v2280
    %v2282 = vpop.f32.mrb[0].mxu0
    %2283 = vmatprep.mubr.bf16.mxu0 0
    %2284 = vmatmul.mubr.bf16.gmra.mrb[0].mxu0 %v1648
    %v2285 = vpop.f32.mrb[0].mxu0
    %v2286 = vadd.f32 %v1518, %v2285
    %v2287 = vpop.f32.mrb[0].mxu0
    %v2288 = vpop.f32.mrb[0].mxu0
    %v2289 = vadd.f32 %v1518, %v2288
    %v2290 = vpop.f32.mrb[0].mxu0
    %2291 = vdwg.mxu0
    %v2292 = vpack.c.bf16 %v1689, %v1685
    %v2293 = vpack.c.bf16 %v1699, %v1695
    %v2294 = vpack.c.bf16 %v1709, %v1705
    %v2295 = vpack.c.bf16 %v1719, %v1715
    %v2296 = vpack.c.bf16 %v1729, %v1725
    %v2297 = vpack.c.bf16 %v1739, %v1735
    %v2298 = vpack.c.bf16 %v1749, %v1745
    %v2299 = vpack.c.bf16 %v1759, %v1755
    %v2300 = vpack.c.bf16 %v1769, %v1765
    %v2301 = vpack.c.bf16 %v1779, %v1775
    %v2302 = vpack.c.bf16 %v1789, %v1785
    %v2303 = vpack.c.bf16 %v1799, %v1795
    %v2304 = vpack.c.bf16 %v1809, %v1805
    %v2305 = vpack.c.bf16 %v1819, %v1815
    %v2306 = vpack.c.bf16 %v1829, %v1825
    %v2307 = vpack.c.bf16 %v1839, %v1835
    %v2308 = vpack.c.bf16 %v1849, %v1845
    %v2309 = vpack.c.bf16 %v1859, %v1855
    %v2310 = vpack.c.bf16 %v1869, %v1865
    %v2311 = vpack.c.bf16 %v1879, %v1875
    %v2312 = vpack.c.bf16 %v1889, %v1885
    %v2313 = vpack.c.bf16 %v1899, %v1895
    %v2314 = vpack.c.bf16 %v1909, %v1905
    %v2315 = vpack.c.bf16 %v1919, %v1915
    %v2316 = vpack.c.bf16 %v1929, %v1925
    %v2317 = vpack.c.bf16 %v1939, %v1935
    %v2318 = vpack.c.bf16 %v1949, %v1945
    %v2319 = vpack.c.bf16 %v1959, %v1955
    %v2320 = vpack.c.bf16 %v1969, %v1965
    %v2321 = vpack.c.bf16 %v1979, %v1975
    %v2322 = vpack.c.bf16 %v1989, %v1985
    %v2323 = vpack.c.bf16 %v1999, %v1995
    %2324 = vst [vmem:[#allocation2] sm:$0xff] %v2292
    %2325 = vst [vmem:[#allocation2 + $0x8] sm:$0xff] %v2293
    %2326 = vst [vmem:[#allocation2 + $0x10] sm:$0xff] %v2294
    %2327 = vst [vmem:[#allocation2 + $0x18] sm:$0xff] %v2295
    %2328 = vst [vmem:[#allocation2 + $0x20] sm:$0xff] %v2296
    %2329 = vst [vmem:[#allocation2 + $0x28] sm:$0xff] %v2297
    %2330 = vst [vmem:[#allocation2 + $0x30] sm:$0xff] %v2298
    %2331 = vst [vmem:[#allocation2 + $0x38] sm:$0xff] %v2299
    %2332 = vst [vmem:[#allocation2 + $0x40] sm:$0xff] %v2300
    %2333 = vst [vmem:[#allocation2 + $0x48] sm:$0xff] %v2301
    %2334 = vst [vmem:[#allocation2 + $0x50] sm:$0xff] %v2302
    %2335 = vst [vmem:[#allocation2 + $0x58] sm:$0xff] %v2303
    %2336 = vst [vmem:[#allocation2 + $0x60] sm:$0xff] %v2304
    %2337 = vst [vmem:[#allocation2 + $0x68] sm:$0xff] %v2305
    %2338 = vst [vmem:[#allocation2 + $0x70] sm:$0xff] %v2306
    %2339 = vst [vmem:[#allocation2 + $0x78] sm:$0xff] %v2307
    %2340 = vst [vmem:[#allocation2 + $0x80] sm:$0xff] %v2308
    %2341 = vst [vmem:[#allocation2 + $0x88] sm:$0xff] %v2309
    %2342 = vst [vmem:[#allocation2 + $0x90] sm:$0xff] %v2310
    %2343 = vst [vmem:[#allocation2 + $0x98] sm:$0xff] %v2311
    %2344 = vst [vmem:[#allocation2 + $0xa0] sm:$0xff] %v2312
    %2345 = vst [vmem:[#allocation2 + $0xa8] sm:$0xff] %v2313
    %2346 = vst [vmem:[#allocation2 + $0xb0] sm:$0xff] %v2314
    %2347 = vst [vmem:[#allocation2 + $0xb8] sm:$0xff] %v2315
    %2348 = vst [vmem:[#allocation2 + $0xc0] sm:$0xff] %v2316
    %2349 = vst [vmem:[#allocation2 + $0xc8] sm:$0xff] %v2317
    %2350 = vst [vmem:[#allocation2 + $0xd0] sm:$0xff] %v2318
    %2351 = vst [vmem:[#allocation2 + $0xd8] sm:$0xff] %v2319
    %2352 = vst [vmem:[#allocation2 + $0xe0] sm:$0xff] %v2320
    %2353 = vst [vmem:[#allocation2 + $0xe8] sm:$0xff] %v2321
    %2354 = vst [vmem:[#allocation2 + $0xf0] sm:$0xff] %v2322
    %2355 = vst [vmem:[#allocation2 + $0xf8] sm:$0xff] %v2323
    %v2356 = vpack.c.bf16 %v1691, %v1687
    %v2357 = vpack.c.bf16 %v1701, %v1697
    %v2358 = vpack.c.bf16 %v1711, %v1707
    %v2359 = vpack.c.bf16 %v1721, %v1717
    %v2360 = vpack.c.bf16 %v1731, %v1727
    %v2361 = vpack.c.bf16 %v1741, %v1737
    %v2362 = vpack.c.bf16 %v1751, %v1747
    %v2363 = vpack.c.bf16 %v1761, %v1757
    %v2364 = vpack.c.bf16 %v1771, %v1767
    %v2365 = vpack.c.bf16 %v1781, %v1777
    %v2366 = vpack.c.bf16 %v1791, %v1787
    %v2367 = vpack.c.bf16 %v1801, %v1797
    %v2368 = vpack.c.bf16 %v1811, %v1807
    %v2369 = vpack.c.bf16 %v1821, %v1817
    %v2370 = vpack.c.bf16 %v1831, %v1827
    %v2371 = vpack.c.bf16 %v1841, %v1837
    %v2372 = vpack.c.bf16 %v1851, %v1847
    %v2373 = vpack.c.bf16 %v1861, %v1857
    %v2374 = vpack.c.bf16 %v1871, %v1867
    %v2375 = vpack.c.bf16 %v1881, %v1877
    %v2376 = vpack.c.bf16 %v1891, %v1887
    %v2377 = vpack.c.bf16 %v1901, %v1897
    %v2378 = vpack.c.bf16 %v1911, %v1907
    %v2379 = vpack.c.bf16 %v1921, %v1917
    %v2380 = vpack.c.bf16 %v1931, %v1927
    %v2381 = vpack.c.bf16 %v1941, %v1937
    %v2382 = vpack.c.bf16 %v1951, %v1947
    %v2383 = vpack.c.bf16 %v1961, %v1957
    %v2384 = vpack.c.bf16 %v1971, %v1967
    %v2385 = vpack.c.bf16 %v1981, %v1977
    %v2386 = vpack.c.bf16 %v1991, %v1987
    %v2387 = vpack.c.bf16 %v2001, %v1997
    %2388 = vst [vmem:[#allocation3] sm:$0xff] %v2356
    %2389 = vst [vmem:[#allocation3 + $0x8] sm:$0xff] %v2357
    %2390 = vst [vmem:[#allocation3 + $0x10] sm:$0xff] %v2358
    %2391 = vst [vmem:[#allocation3 + $0x18] sm:$0xff] %v2359
    %2392 = vst [vmem:[#allocation3 + $0x20] sm:$0xff] %v2360
    %2393 = vst [vmem:[#allocation3 + $0x28] sm:$0xff] %v2361
    %2394 = vst [vmem:[#allocation3 + $0x30] sm:$0xff] %v2362
    %2395 = vst [vmem:[#allocation3 + $0x38] sm:$0xff] %v2363
    %2396 = vst [vmem:[#allocation3 + $0x40] sm:$0xff] %v2364
    %2397 = vst [vmem:[#allocation3 + $0x48] sm:$0xff] %v2365
    %2398 = vst [vmem:[#allocation3 + $0x50] sm:$0xff] %v2366
    %2399 = vst [vmem:[#allocation3 + $0x58] sm:$0xff] %v2367
    %2400 = vst [vmem:[#allocation3 + $0x60] sm:$0xff] %v2368
    %2401 = vst [vmem:[#allocation3 + $0x68] sm:$0xff] %v2369
    %2402 = vst [vmem:[#allocation3 + $0x70] sm:$0xff] %v2370
    %2403 = vst [vmem:[#allocation3 + $0x78] sm:$0xff] %v2371
    %2404 = vst [vmem:[#allocation3 + $0x80] sm:$0xff] %v2372
    %2405 = vst [vmem:[#allocation3 + $0x88] sm:$0xff] %v2373
    %2406 = vst [vmem:[#allocation3 + $0x90] sm:$0xff] %v2374
    %2407 = vst [vmem:[#allocation3 + $0x98] sm:$0xff] %v2375
    %2408 = vst [vmem:[#allocation3 + $0xa0] sm:$0xff] %v2376
    %2409 = vst [vmem:[#allocation3 + $0xa8] sm:$0xff] %v2377
    %2410 = vst [vmem:[#allocation3 + $0xb0] sm:$0xff] %v2378
    %2411 = vst [vmem:[#allocation3 + $0xb8] sm:$0xff] %v2379
    %2412 = vst [vmem:[#allocation3 + $0xc0] sm:$0xff] %v2380
    %2413 = vst [vmem:[#allocation3 + $0xc8] sm:$0xff] %v2381
    %2414 = vst [vmem:[#allocation3 + $0xd0] sm:$0xff] %v2382
    %2415 = vst [vmem:[#allocation3 + $0xd8] sm:$0xff] %v2383
    %2416 = vst [vmem:[#allocation3 + $0xe0] sm:$0xff] %v2384
    %2417 = vst [vmem:[#allocation3 + $0xe8] sm:$0xff] %v2385
    %2418 = vst [vmem:[#allocation3 + $0xf0] sm:$0xff] %v2386
    %2419 = vst [vmem:[#allocation3 + $0xf8] sm:$0xff] %v2387
    %v2420 = vpack.c.bf16 %v2041, %v2038
    %v2421 = vpack.c.bf16 %v2049, %v2046
    %v2422 = vpack.c.bf16 %v2057, %v2054
    %v2423 = vpack.c.bf16 %v2065, %v2062
    %v2424 = vpack.c.bf16 %v2073, %v2070
    %v2425 = vpack.c.bf16 %v2081, %v2078
    %v2426 = vpack.c.bf16 %v2089, %v2086
    %v2427 = vpack.c.bf16 %v2097, %v2094
    %v2428 = vpack.c.bf16 %v2105, %v2102
    %v2429 = vpack.c.bf16 %v2113, %v2110
    %v2430 = vpack.c.bf16 %v2121, %v2118
    %v2431 = vpack.c.bf16 %v2129, %v2126
    %v2432 = vpack.c.bf16 %v2137, %v2134
    %v2433 = vpack.c.bf16 %v2145, %v2142
    %v2434 = vpack.c.bf16 %v2153, %v2150
    %v2435 = vpack.c.bf16 %v2161, %v2158
    %v2436 = vpack.c.bf16 %v2169, %v2166
    %v2437 = vpack.c.bf16 %v2177, %v2174
    %v2438 = vpack.c.bf16 %v2185, %v2182
    %v2439 = vpack.c.bf16 %v2193, %v2190
    %v2440 = vpack.c.bf16 %v2201, %v2198
    %v2441 = vpack.c.bf16 %v2209, %v2206
    %v2442 = vpack.c.bf16 %v2217, %v2214
    %v2443 = vpack.c.bf16 %v2225, %v2222
    %v2444 = vpack.c.bf16 %v2233, %v2230
    %v2445 = vpack.c.bf16 %v2241, %v2238
    %v2446 = vpack.c.bf16 %v2249, %v2246
    %v2447 = vpack.c.bf16 %v2257, %v2254
    %v2448 = vpack.c.bf16 %v2265, %v2262
    %v2449 = vpack.c.bf16 %v2273, %v2270
    %v2450 = vpack.c.bf16 %v2281, %v2278
    %v2451 = vpack.c.bf16 %v2289, %v2286
    %2452 = vst [vmem:[#allocation4] sm:$0xff] %v2420
    %2453 = vst [vmem:[#allocation4 + $0x8] sm:$0xff] %v2421
    %2454 = vst [vmem:[#allocation4 + $0x10] sm:$0xff] %v2422
    %2455 = vst [vmem:[#allocation4 + $0x18] sm:$0xff] %v2423
    %2456 = vst [vmem:[#allocation4 + $0x20] sm:$0xff] %v2424
    %2457 = vst [vmem:[#allocation4 + $0x28] sm:$0xff] %v2425
    %2458 = vst [vmem:[#allocation4 + $0x30] sm:$0xff] %v2426
    %2459 = vst [vmem:[#allocation4 + $0x38] sm:$0xff] %v2427
    %2460 = vst [vmem:[#allocation4 + $0x40] sm:$0xff] %v2428
    %2461 = vst [vmem:[#allocation4 + $0x48] sm:$0xff] %v2429
    %2462 = vst [vmem:[#allocation4 + $0x50] sm:$0xff] %v2430
    %2463 = vst [vmem:[#allocation4 + $0x58] sm:$0xff] %v2431
    %2464 = vst [vmem:[#allocation4 + $0x60] sm:$0xff] %v2432
    %2465 = vst [vmem:[#allocation4 + $0x68] sm:$0xff] %v2433
    %2466 = vst [vmem:[#allocation4 + $0x70] sm:$0xff] %v2434
    %2467 = vst [vmem:[#allocation4 + $0x78] sm:$0xff] %v2435
    %2468 = vst [vmem:[#allocation4 + $0x80] sm:$0xff] %v2436
    %2469 = vst [vmem:[#allocation4 + $0x88] sm:$0xff] %v2437
    %2470 = vst [vmem:[#allocation4 + $0x90] sm:$0xff] %v2438
    %2471 = vst [vmem:[#allocation4 + $0x98] sm:$0xff] %v2439
    %2472 = vst [vmem:[#allocation4 + $0xa0] sm:$0xff] %v2440
    %2473 = vst [vmem:[#allocation4 + $0xa8] sm:$0xff] %v2441
    %2474 = vst [vmem:[#allocation4 + $0xb0] sm:$0xff] %v2442
    %2475 = vst [vmem:[#allocation4 + $0xb8] sm:$0xff] %v2443
    %2476 = vst [vmem:[#allocation4 + $0xc0] sm:$0xff] %v2444
    %2477 = vst [vmem:[#allocation4 + $0xc8] sm:$0xff] %v2445
    %2478 = vst [vmem:[#allocation4 + $0xd0] sm:$0xff] %v2446
    %2479 = vst [vmem:[#allocation4 + $0xd8] sm:$0xff] %v2447
    %2480 = vst [vmem:[#allocation4 + $0xe0] sm:$0xff] %v2448
    %2481 = vst [vmem:[#allocation4 + $0xe8] sm:$0xff] %v2449
    %2482 = vst [vmem:[#allocation4 + $0xf0] sm:$0xff] %v2450
    %2483 = vst [vmem:[#allocation4 + $0xf8] sm:$0xff] %v2451
  $region33: #{tpu_custom_call.1} parent=0 // pred_fallthru
    _
  %v2484 = vld [vmem:[#allocation2] sm:$0xff]
  %v2485 = vld [vmem:[#allocation2 + $0x8] sm:$0xff]
  %v2486 = vld [vmem:[#allocation2 + $0x10] sm:$0xff]
  %v2487 = vld [vmem:[#allocation2 + $0x18] sm:$0xff]
  %v2488 = vld [vmem:[#allocation2 + $0x20] sm:$0xff]
  %v2489 = vld [vmem:[#allocation2 + $0x28] sm:$0xff]
  %v2490 = vld [vmem:[#allocation2 + $0x30] sm:$0xff]
  %v2491 = vld [vmem:[#allocation2 + $0x38] sm:$0xff]
  %v2492 = vld [vmem:[#allocation2 + $0x40] sm:$0xff]
  %v2493 = vld [vmem:[#allocation2 + $0x48] sm:$0xff]
  %v2494 = vld [vmem:[#allocation2 + $0x50] sm:$0xff]
  %v2495 = vld [vmem:[#allocation2 + $0x58] sm:$0xff]
  %v2496 = vld [vmem:[#allocation2 + $0x60] sm:$0xff]
  %v2497 = vld [vmem:[#allocation2 + $0x68] sm:$0xff]
  %v2498 = vld [vmem:[#allocation2 + $0x70] sm:$0xff]
  %v2499 = vld [vmem:[#allocation2 + $0x78] sm:$0xff]
  %v2500 = vld [vmem:[#allocation2 + $0x80] sm:$0xff]
  %v2501 = vld [vmem:[#allocation2 + $0x88] sm:$0xff]
  %v2502 = vld [vmem:[#allocation2 + $0x90] sm:$0xff]
  %v2503 = vld [vmem:[#allocation2 + $0x98] sm:$0xff]
  %v2504 = vld [vmem:[#allocation2 + $0xa0] sm:$0xff]
  %v2505 = vld [vmem:[#allocation2 + $0xa8] sm:$0xff]
  %v2506 = vld [vmem:[#allocation2 + $0xb0] sm:$0xff]
  %v2507 = vld [vmem:[#allocation2 + $0xb8] sm:$0xff]
  %v2508 = vld [vmem:[#allocation2 + $0xc0] sm:$0xff]
  %v2509 = vld [vmem:[#allocation2 + $0xc8] sm:$0xff]
  %v2510 = vld [vmem:[#allocation2 + $0xd0] sm:$0xff]
  %v2511 = vld [vmem:[#allocation2 + $0xd8] sm:$0xff]
  %v2512 = vld [vmem:[#allocation2 + $0xe0] sm:$0xff]
  %v2513 = vld [vmem:[#allocation2 + $0xe8] sm:$0xff]
  %v2514 = vld [vmem:[#allocation2 + $0xf0] sm:$0xff]
  %v2515 = vld [vmem:[#allocation2 + $0xf8] sm:$0xff]
  %v2516 = vld [vmem:[#allocation3] sm:$0xff]
  %v2517 = vld [vmem:[#allocation3 + $0x8] sm:$0xff]
  %v2518 = vld [vmem:[#allocation3 + $0x10] sm:$0xff]
  %v2519 = vld [vmem:[#allocation3 + $0x18] sm:$0xff]
  %v2520 = vld [vmem:[#allocation3 + $0x20] sm:$0xff]
  %v2521 = vld [vmem:[#allocation3 + $0x28] sm:$0xff]
  %v2522 = vld [vmem:[#allocation3 + $0x30] sm:$0xff]
  %v2523 = vld [vmem:[#allocation3 + $0x38] sm:$0xff]
  %v2524 = vld [vmem:[#allocation3 + $0x40] sm:$0xff]
  %v2525 = vld [vmem:[#allocation3 + $0x48] sm:$0xff]
  %v2526 = vld [vmem:[#allocation3 + $0x50] sm:$0xff]
  %v2527 = vld [vmem:[#allocation3 + $0x58] sm:$0xff]
  %v2528 = vld [vmem:[#allocation3 + $0x60] sm:$0xff]
  %v2529 = vld [vmem:[#allocation3 + $0x68] sm:$0xff]
  %v2530 = vld [vmem:[#allocation3 + $0x70] sm:$0xff]
  %v2531 = vld [vmem:[#allocation3 + $0x78] sm:$0xff]
  %v2532 = vld [vmem:[#allocation3 + $0x80] sm:$0xff]
  %v2533 = vld [vmem:[#allocation3 + $0x88] sm:$0xff]
  %v2534 = vld [vmem:[#allocation3 + $0x90] sm:$0xff]
  %v2535 = vld [vmem:[#allocation3 + $0x98] sm:$0xff]
  %v2536 = vld [vmem:[#allocation3 + $0xa0] sm:$0xff]
  %v2537 = vld [vmem:[#allocation3 + $0xa8] sm:$0xff]
  %v2538 = vld [vmem:[#allocation3 + $0xb0] sm:$0xff]
  %v2539 = vld [vmem:[#allocation3 + $0xb8] sm:$0xff]
  %v2540 = vld [vmem:[#allocation3 + $0xc0] sm:$0xff]
  %v2541 = vld [vmem:[#allocation3 + $0xc8] sm:$0xff]
  %v2542 = vld [vmem:[#allocation3 + $0xd0] sm:$0xff]
  %v2543 = vld [vmem:[#allocation3 + $0xd8] sm:$0xff]
  %v2544 = vld [vmem:[#allocation3 + $0xe0] sm:$0xff]
  %v2545 = vld [vmem:[#allocation3 + $0xe8] sm:$0xff]
  %v2546 = vld [vmem:[#allocation3 + $0xf0] sm:$0xff]
  %v2547 = vld [vmem:[#allocation3 + $0xf8] sm:$0xff]
  %2548 = vmatprep.subr.bf16.mxu0 0
  %2549 = vmatpush1.bf16.xpose.msra.mxu0 %v2516
  %2550 = vmatprep.subr.bf16.mxu0 0
  %2551 = vmatpush1.bf16.xpose.msra.mxu0 %v2517
  %2552 = vmatprep.subr.bf16.mxu0 0
  %2553 = vmatpush1.bf16.xpose.msra.mxu0 %v2518
  %2554 = vmatprep.subr.bf16.mxu0 0
  %2555 = vmatpush1.bf16.xpose.msra.mxu0 %v2519
  %2556 = vmatprep.subr.bf16.mxu0 0
  %2557 = vmatpush1.bf16.xpose.msra.mxu0 %v2520
  %2558 = vmatprep.subr.bf16.mxu0 0
  %2559 = vmatpush1.bf16.xpose.msra.mxu0 %v2521
  %2560 = vmatprep.subr.bf16.mxu0 0
  %2561 = vmatpush1.bf16.xpose.msra.mxu0 %v2522
  %2562 = vmatprep.subr.bf16.mxu0 0
  %2563 = vmatpush1.bf16.xpose.msra.mxu0 %v2523
  %2564 = vmatprep.subr.bf16.mxu0 0
  %2565 = vmatpush1.bf16.xpose.msra.mxu0 %v2524
  %2566 = vmatprep.subr.bf16.mxu0 0
  %2567 = vmatpush1.bf16.xpose.msra.mxu0 %v2525
  %2568 = vmatprep.subr.bf16.mxu0 0
  %2569 = vmatpush1.bf16.xpose.msra.mxu0 %v2526
  %2570 = vmatprep.subr.bf16.mxu0 0
  %2571 = vmatpush1.bf16.xpose.msra.mxu0 %v2527
  %2572 = vmatprep.subr.bf16.mxu0 0
  %2573 = vmatpush1.bf16.xpose.msra.mxu0 %v2528
  %2574 = vmatprep.subr.bf16.mxu0 0
  %2575 = vmatpush1.bf16.xpose.msra.mxu0 %v2529
  %2576 = vmatprep.subr.bf16.mxu0 0
  %2577 = vmatpush1.bf16.xpose.msra.mxu0 %v2530
  %2578 = vmatprep.subr.bf16.mxu0 0
  %2579 = vmatpush1.bf16.xpose.msra.mxu0 %v2531
  %2580 = vmatprep.mubr.bf16.mxu0 0
  %2581 = vmatmul.mubr.bf16.gmra.mrb[0].mxu0 %v2484
  %v2582 = vpop.f32.mrb[0].mxu0
  %v2583 = vadd.f32 0.0, %v2582
  %v2584 = vpop.f32.mrb[0].mxu0
  %v2585 = vadd.f32 0.0, %v2584
  %v2586 = vpop.f32.mrb[0].mxu0
  %v2587 = vadd.f32 0.0, %v2586
  %v2588 = vpop.f32.mrb[0].mxu0
  %v2589 = vadd.f32 0.0, %v2588
  %2590 = vmatprep.mubr.bf16.mxu0 0
  %2591 = vmatmul.mubr.bf16.gmra.mrb[0].mxu0 %v2485
  %v2592 = vpop.f32.mrb[0].mxu0
  %v2593 = vadd.f32 0.0, %v2592
  %v2594 = vpop.f32.mrb[0].mxu0
  %v2595 = vadd.f32 0.0, %v2594
  %v2596 = vpop.f32.mrb[0].mxu0
  %v2597 = vadd.f32 0.0, %v2596
  %v2598 = vpop.f32.mrb[0].mxu0
  %v2599 = vadd.f32 0.0, %v2598
  %2600 = vmatprep.mubr.bf16.mxu0 0
  %2601 = vmatmul.mubr.bf16.gmra.mrb[0].mxu0 %v2486
  %v2602 = vpop.f32.mrb[0].mxu0
  %v2603 = vadd.f32 0.0, %v2602
  %v2604 = vpop.f32.mrb[0].mxu0
  %v2605 = vadd.f32 0.0, %v2604
  %v2606 = vpop.f32.mrb[0].mxu0
  %v2607 = vadd.f32 0.0, %v2606
  %v2608 = vpop.f32.mrb[0].mxu0
  %v2609 = vadd.f32 0.0, %v2608
  %2610 = vmatprep.mubr.bf16.mxu0 0
  %2611 = vmatmul.mubr.bf16.gmra.mrb[0].mxu0 %v2487
  %v2612 = vpop.f32.mrb[0].mxu0
  %v2613 = vadd.f32 0.0, %v2612
  %v2614 = vpop.f32.mrb[0].mxu0
  %v2615 = vadd.f32 0.0, %v2614
  %v2616 = vpop.f32.mrb[0].mxu0
  %v2617 = vadd.f32 0.0, %v2616
  %v2618 = vpop.f32.mrb[0].mxu0
  %v2619 = vadd.f32 0.0, %v2618
  %2620 = vmatprep.mubr.bf16.mxu0 0
  %2621 = vmatmul.mubr.bf16.gmra.mrb[0].mxu0 %v2488
  %v2622 = vpop.f32.mrb[0].mxu0
  %v2623 = vadd.f32 0.0, %v2622
  %v2624 = vpop.f32.mrb[0].mxu0
  %v2625 = vadd.f32 0.0, %v2624
  %v2626 = vpop.f32.mrb[0].mxu0
  %v2627 = vadd.f32 0.0, %v2626
  %v2628 = vpop.f32.mrb[0].mxu0
  %v2629 = vadd.f32 0.0, %v2628
  %2630 = vmatprep.mubr.bf16.mxu0 0
  %2631 = vmatmul.mubr.bf16.gmra.mrb[0].mxu0 %v2489
  %v2632 = vpop.f32.mrb[0].mxu0
  %v2633 = vadd.f32 0.0, %v2632
  %v2634 = vpop.f32.mrb[0].mxu0
  %v2635 = vadd.f32 0.0, %v2634
  %v2636 = vpop.f32.mrb[0].mxu0
  %v2637 = vadd.f32 0.0, %v2636
  %v2638 = vpop.f32.mrb[0].mxu0
  %v2639 = vadd.f32 0.0, %v2638
  %2640 = vmatprep.mubr.bf16.mxu0 0
  %2641 = vmatmul.mubr.bf16.gmra.mrb[0].mxu0 %v2490
  %v2642 = vpop.f32.mrb[0].mxu0
  %v2643 = vadd.f32 0.0, %v2642
  %v2644 = vpop.f32.mrb[0].mxu0
  %v2645 = vadd.f32 0.0, %v2644
  %v2646 = vpop.f32.mrb[0].mxu0
  %v2647 = vadd.f32 0.0, %v2646
  %v2648 = vpop.f32.mrb[0].mxu0
  %v2649 = vadd.f32 0.0, %v2648
  %2650 = vmatprep.mubr.bf16.mxu0 0
  %2651 = vmatmul.mubr.bf16.gmra.mrb[0].mxu0 %v2491
  %v2652 = vpop.f32.mrb[0].mxu0
  %v2653 = vadd.f32 0.0, %v2652
  %v2654 = vpop.f32.mrb[0].mxu0
  %v2655 = vadd.f32 0.0, %v2654
  %v2656 = vpop.f32.mrb[0].mxu0
  %v2657 = vadd.f32 0.0, %v2656
  %v2658 = vpop.f32.mrb[0].mxu0
  %v2659 = vadd.f32 0.0, %v2658
  %2660 = vmatprep.mubr.bf16.mxu0 0
  %2661 = vmatmul.mubr.bf16.gmra.mrb[0].mxu0 %v2492
  %v2662 = vpop.f32.mrb[0].mxu0
  %v2663 = vadd.f32 0.0, %v2662
  %v2664 = vpop.f32.mrb[0].mxu0
  %v2665 = vadd.f32 0.0, %v2664
  %v2666 = vpop.f32.mrb[0].mxu0
  %v2667 = vadd.f32 0.0, %v2666
  %v2668 = vpop.f32.mrb[0].mxu0
  %v2669 = vadd.f32 0.0, %v2668
  %2670 = vmatprep.mubr.bf16.mxu0 0
  %2671 = vmatmul.mubr.bf16.gmra.mrb[0].mxu0 %v2493
  %v2672 = vpop.f32.mrb[0].mxu0
  %v2673 = vadd.f32 0.0, %v2672
  %v2674 = vpop.f32.mrb[0].mxu0
  %v2675 = vadd.f32 0.0, %v2674
  %v2676 = vpop.f32.mrb[0].mxu0
  %v2677 = vadd.f32 0.0, %v2676
  %v2678 = vpop.f32.mrb[0].mxu0
  %v2679 = vadd.f32 0.0, %v2678
  %2680 = vmatprep.mubr.bf16.mxu0 0
  %2681 = vmatmul.mubr.bf16.gmra.mrb[0].mxu0 %v2494
  %v2682 = vpop.f32.mrb[0].mxu0
  %v2683 = vadd.f32 0.0, %v2682
  %v2684 = vpop.f32.mrb[0].mxu0
  %v2685 = vadd.f32 0.0, %v2684
  %v2686 = vpop.f32.mrb[0].mxu0
  %v2687 = vadd.f32 0.0, %v2686
  %v2688 = vpop.f32.mrb[0].mxu0
  %v2689 = vadd.f32 0.0, %v2688
  %2690 = vmatprep.mubr.bf16.mxu0 0
  %2691 = vmatmul.mubr.bf16.gmra.mrb[0].mxu0 %v2495
  %v2692 = vpop.f32.mrb[0].mxu0
  %v2693 = vadd.f32 0.0, %v2692
  %v2694 = vpop.f32.mrb[0].mxu0
  %v2695 = vadd.f32 0.0, %v2694
  %v2696 = vpop.f32.mrb[0].mxu0
  %v2697 = vadd.f32 0.0, %v2696
  %v2698 = vpop.f32.mrb[0].mxu0
  %v2699 = vadd.f32 0.0, %v2698
  %2700 = vmatprep.mubr.bf16.mxu0 0
  %2701 = vmatmul.mubr.bf16.gmra.mrb[0].mxu0 %v2496
  %v2702 = vpop.f32.mrb[0].mxu0
  %v2703 = vadd.f32 0.0, %v2702
  %v2704 = vpop.f32.mrb[0].mxu0
  %v2705 = vadd.f32 0.0, %v2704
  %v2706 = vpop.f32.mrb[0].mxu0
  %v2707 = vadd.f32 0.0, %v2706
  %v2708 = vpop.f32.mrb[0].mxu0
  %v2709 = vadd.f32 0.0, %v2708
  %2710 = vmatprep.mubr.bf16.mxu0 0
  %2711 = vmatmul.mubr.bf16.gmra.mrb[0].mxu0 %v2497
  %v2712 = vpop.f32.mrb[0].mxu0
  %v2713 = vadd.f32 0.0, %v2712
  %v2714 = vpop.f32.mrb[0].mxu0
  %v2715 = vadd.f32 0.0, %v2714
  %v2716 = vpop.f32.mrb[0].mxu0
  %v2717 = vadd.f32 0.0, %v2716
  %v2718 = vpop.f32.mrb[0].mxu0
  %v2719 = vadd.f32 0.0, %v2718
  %2720 = vmatprep.mubr.bf16.mxu0 0
  %2721 = vmatmul.mubr.bf16.gmra.mrb[0].mxu0 %v2498
  %v2722 = vpop.f32.mrb[0].mxu0
  %v2723 = vadd.f32 0.0, %v2722
  %v2724 = vpop.f32.mrb[0].mxu0
  %v2725 = vadd.f32 0.0, %v2724
  %v2726 = vpop.f32.mrb[0].mxu0
  %v2727 = vadd.f32 0.0, %v2726
  %v2728 = vpop.f32.mrb[0].mxu0
  %v2729 = vadd.f32 0.0, %v2728
  %2730 = vmatprep.mubr.bf16.mxu0 0
  %2731 = vmatmul.mubr.bf16.gmra.mrb[0].mxu0 %v2499
  %v2732 = vpop.f32.mrb[0].mxu0
  %v2733 = vadd.f32 0.0, %v2732
  %v2734 = vpop.f32.mrb[0].mxu0
  %v2735 = vadd.f32 0.0, %v2734
  %v2736 = vpop.f32.mrb[0].mxu0
  %v2737 = vadd.f32 0.0, %v2736
  %v2738 = vpop.f32.mrb[0].mxu0
  %v2739 = vadd.f32 0.0, %v2738
  %2740 = vdwg.mxu0
  %2741 = vmatprep.subr.bf16.mxu0 0
  %2742 = vmatpush1.bf16.xpose.msra.mxu0 %v2532
  %2743 = vmatprep.subr.bf16.mxu0 0
  %2744 = vmatpush1.bf16.xpose.msra.mxu0 %v2533
  %2745 = vmatprep.subr.bf16.mxu0 0
  %2746 = vmatpush1.bf16.xpose.msra.mxu0 %v2534
  %2747 = vmatprep.subr.bf16.mxu0 0
  %2748 = vmatpush1.bf16.xpose.msra.mxu0 %v2535
  %2749 = vmatprep.subr.bf16.mxu0 0
  %2750 = vmatpush1.bf16.xpose.msra.mxu0 %v2536
  %2751 = vmatprep.subr.bf16.mxu0 0
  %2752 = vmatpush1.bf16.xpose.msra.mxu0 %v2537
  %2753 = vmatprep.subr.bf16.mxu0 0
  %2754 = vmatpush1.bf16.xpose.msra.mxu0 %v2538
  %2755 = vmatprep.subr.bf16.mxu0 0
  %2756 = vmatpush1.bf16.xpose.msra.mxu0 %v2539
  %2757 = vmatprep.subr.bf16.mxu0 0
  %2758 = vmatpush1.bf16.xpose.msra.mxu0 %v2540
  %2759 = vmatprep.subr.bf16.mxu0 0
  %2760 = vmatpush1.bf16.xpose.msra.mxu0 %v2541
  %2761 = vmatprep.subr.bf16.mxu0 0
  %2762 = vmatpush1.bf16.xpose.msra.mxu0 %v2542
  %2763 = vmatprep.subr.bf16.mxu0 0
  %2764 = vmatpush1.bf16.xpose.msra.mxu0 %v2543
  %2765 = vmatprep.subr.bf16.mxu0 0
  %2766 = vmatpush1.bf16.xpose.msra.mxu0 %v2544
  %2767 = vmatprep.subr.bf16.mxu0 0
  %2768 = vmatpush1.bf16.xpose.msra.mxu0 %v2545
  %2769 = vmatprep.subr.bf16.mxu0 0
  %2770 = vmatpush1.bf16.xpose.msra.mxu0 %v2546
  %2771 = vmatprep.subr.bf16.mxu0 0
  %2772 = vmatpush1.bf16.xpose.msra.mxu0 %v2547
  %2773 = vmatprep.mubr.bf16.mxu0 0
  %2774 = vmatmul.mubr.bf16.gmra.mrb[0].mxu0 %v2500
  %v2775 = vpop.f32.mrb[0].mxu0
  %v2776 = vadd.f32 0.0, %v2775
  %v2777 = vpop.f32.mrb[0].mxu0
  %v2778 = vadd.f32 0.0, %v2777
  %v2779 = vpop.f32.mrb[0].mxu0
  %v2780 = vadd.f32 0.0, %v2779
  %v2781 = vpop.f32.mrb[0].mxu0
  %v2782 = vadd.f32 0.0, %v2781
  %2783 = vmatprep.mubr.bf16.mxu0 0
  %2784 = vmatmul.mubr.bf16.gmra.mrb[0].mxu0 %v2501
  %v2785 = vpop.f32.mrb[0].mxu0
  %v2786 = vadd.f32 0.0, %v2785
  %v2787 = vpop.f32.mrb[0].mxu0
  %v2788 = vadd.f32 0.0, %v2787
  %v2789 = vpop.f32.mrb[0].mxu0
  %v2790 = vadd.f32 0.0, %v2789
  %v2791 = vpop.f32.mrb[0].mxu0
  %v2792 = vadd.f32 0.0, %v2791
  %2793 = vmatprep.mubr.bf16.mxu0 0
  %2794 = vmatmul.mubr.bf16.gmra.mrb[0].mxu0 %v2502
  %v2795 = vpop.f32.mrb[0].mxu0
  %v2796 = vadd.f32 0.0, %v2795
  %v2797 = vpop.f32.mrb[0].mxu0
  %v2798 = vadd.f32 0.0, %v2797
  %v2799 = vpop.f32.mrb[0].mxu0
  %v2800 = vadd.f32 0.0, %v2799
  %v2801 = vpop.f32.mrb[0].mxu0
  %v2802 = vadd.f32 0.0, %v2801
  %2803 = vmatprep.mubr.bf16.mxu0 0
  %2804 = vmatmul.mubr.bf16.gmra.mrb[0].mxu0 %v2503
  %v2805 = vpop.f32.mrb[0].mxu0
  %v2806 = vadd.f32 0.0, %v2805
  %v2807 = vpop.f32.mrb[0].mxu0
  %v2808 = vadd.f32 0.0, %v2807
  %v2809 = vpop.f32.mrb[0].mxu0
  %v2810 = vadd.f32 0.0, %v2809
  %v2811 = vpop.f32.mrb[0].mxu0
  %v2812 = vadd.f32 0.0, %v2811
  %2813 = vmatprep.mubr.bf16.mxu0 0
  %2814 = vmatmul.mubr.bf16.gmra.mrb[0].mxu0 %v2504
  %v2815 = vpop.f32.mrb[0].mxu0
  %v2816 = vadd.f32 0.0, %v2815
  %v2817 = vpop.f32.mrb[0].mxu0
  %v2818 = vadd.f32 0.0, %v2817
  %v2819 = vpop.f32.mrb[0].mxu0
  %v2820 = vadd.f32 0.0, %v2819
  %v2821 = vpop.f32.mrb[0].mxu0
  %v2822 = vadd.f32 0.0, %v2821
  %2823 = vmatprep.mubr.bf16.mxu0 0
  %2824 = vmatmul.mubr.bf16.gmra.mrb[0].mxu0 %v2505
  %v2825 = vpop.f32.mrb[0].mxu0
  %v2826 = vadd.f32 0.0, %v2825
  %v2827 = vpop.f32.mrb[0].mxu0
  %v2828 = vadd.f32 0.0, %v2827
  %v2829 = vpop.f32.mrb[0].mxu0
  %v2830 = vadd.f32 0.0, %v2829
  %v2831 = vpop.f32.mrb[0].mxu0
  %v2832 = vadd.f32 0.0, %v2831
  %2833 = vmatprep.mubr.bf16.mxu0 0
  %2834 = vmatmul.mubr.bf16.gmra.mrb[0].mxu0 %v2506
  %v2835 = vpop.f32.mrb[0].mxu0
  %v2836 = vadd.f32 0.0, %v2835
  %v2837 = vpop.f32.mrb[0].mxu0
  %v2838 = vadd.f32 0.0, %v2837
  %v2839 = vpop.f32.mrb[0].mxu0
  %v2840 = vadd.f32 0.0, %v2839
  %v2841 = vpop.f32.mrb[0].mxu0
  %v2842 = vadd.f32 0.0, %v2841
  %2843 = vmatprep.mubr.bf16.mxu0 0
  %2844 = vmatmul.mubr.bf16.gmra.mrb[0].mxu0 %v2507
  %v2845 = vpop.f32.mrb[0].mxu0
  %v2846 = vadd.f32 0.0, %v2845
  %v2847 = vpop.f32.mrb[0].mxu0
  %v2848 = vadd.f32 0.0, %v2847
  %v2849 = vpop.f32.mrb[0].mxu0
  %v2850 = vadd.f32 0.0, %v2849
  %v2851 = vpop.f32.mrb[0].mxu0
  %v2852 = vadd.f32 0.0, %v2851
  %2853 = vmatprep.mubr.bf16.mxu0 0
  %2854 = vmatmul.mubr.bf16.gmra.mrb[0].mxu0 %v2508
  %v2855 = vpop.f32.mrb[0].mxu0
  %v2856 = vadd.f32 0.0, %v2855
  %v2857 = vpop.f32.mrb[0].mxu0
  %v2858 = vadd.f32 0.0, %v2857
  %v2859 = vpop.f32.mrb[0].mxu0
  %v2860 = vadd.f32 0.0, %v2859
  %v2861 = vpop.f32.mrb[0].mxu0
  %v2862 = vadd.f32 0.0, %v2861
  %2863 = vmatprep.mubr.bf16.mxu0 0
  %2864 = vmatmul.mubr.bf16.gmra.mrb[0].mxu0 %v2509
  %v2865 = vpop.f32.mrb[0].mxu0
  %v2866 = vadd.f32 0.0, %v2865
  %v2867 = vpop.f32.mrb[0].mxu0
  %v2868 = vadd.f32 0.0, %v2867
  %v2869 = vpop.f32.mrb[0].mxu0
  %v2870 = vadd.f32 0.0, %v2869
  %v2871 = vpop.f32.mrb[0].mxu0
  %v2872 = vadd.f32 0.0, %v2871
  %2873 = vmatprep.mubr.bf16.mxu0 0
  %2874 = vmatmul.mubr.bf16.gmra.mrb[0].mxu0 %v2510
  %v2875 = vpop.f32.mrb[0].mxu0
  %v2876 = vadd.f32 0.0, %v2875
  %v2877 = vpop.f32.mrb[0].mxu0
  %v2878 = vadd.f32 0.0, %v2877
  %v2879 = vpop.f32.mrb[0].mxu0
  %v2880 = vadd.f32 0.0, %v2879
  %v2881 = vpop.f32.mrb[0].mxu0
  %v2882 = vadd.f32 0.0, %v2881
  %2883 = vmatprep.mubr.bf16.mxu0 0
  %2884 = vmatmul.mubr.bf16.gmra.mrb[0].mxu0 %v2511
  %v2885 = vpop.f32.mrb[0].mxu0
  %v2886 = vadd.f32 0.0, %v2885
  %v2887 = vpop.f32.mrb[0].mxu0
  %v2888 = vadd.f32 0.0, %v2887
  %v2889 = vpop.f32.mrb[0].mxu0
  %v2890 = vadd.f32 0.0, %v2889
  %v2891 = vpop.f32.mrb[0].mxu0
  %v2892 = vadd.f32 0.0, %v2891
  %2893 = vmatprep.mubr.bf16.mxu0 0
  %2894 = vmatmul.mubr.bf16.gmra.mrb[0].mxu0 %v2512
  %v2895 = vpop.f32.mrb[0].mxu0
  %v2896 = vadd.f32 0.0, %v2895
  %v2897 = vpop.f32.mrb[0].mxu0
  %v2898 = vadd.f32 0.0, %v2897
  %v2899 = vpop.f32.mrb[0].mxu0
  %v2900 = vadd.f32 0.0, %v2899
  %v2901 = vpop.f32.mrb[0].mxu0
  %v2902 = vadd.f32 0.0, %v2901
  %2903 = vmatprep.mubr.bf16.mxu0 0
  %2904 = vmatmul.mubr.bf16.gmra.mrb[0].mxu0 %v2513
  %v2905 = vpop.f32.mrb[0].mxu0
  %v2906 = vadd.f32 0.0, %v2905
  %v2907 = vpop.f32.mrb[0].mxu0
  %v2908 = vadd.f32 0.0, %v2907
  %v2909 = vpop.f32.mrb[0].mxu0
  %v2910 = vadd.f32 0.0, %v2909
  %v2911 = vpop.f32.mrb[0].mxu0
  %v2912 = vadd.f32 0.0, %v2911
  %2913 = vmatprep.mubr.bf16.mxu0 0
  %2914 = vmatmul.mubr.bf16.gmra.mrb[0].mxu0 %v2514
  %v2915 = vpop.f32.mrb[0].mxu0
  %v2916 = vadd.f32 0.0, %v2915
  %v2917 = vpop.f32.mrb[0].mxu0
  %v2918 = vadd.f32 0.0, %v2917
  %v2919 = vpop.f32.mrb[0].mxu0
  %v2920 = vadd.f32 0.0, %v2919
  %v2921 = vpop.f32.mrb[0].mxu0
  %v2922 = vadd.f32 0.0, %v2921
  %2923 = vmatprep.mubr.bf16.mxu0 0
  %2924 = vmatmul.mubr.bf16.gmra.mrb[0].mxu0 %v2515
  %v2925 = vpop.f32.mrb[0].mxu0
  %v2926 = vadd.f32 0.0, %v2925
  %v2927 = vpop.f32.mrb[0].mxu0
  %v2928 = vadd.f32 0.0, %v2927
  %v2929 = vpop.f32.mrb[0].mxu0
  %v2930 = vadd.f32 0.0, %v2929
  %v2931 = vpop.f32.mrb[0].mxu0
  %v2932 = vadd.f32 0.0, %v2931
  %2933 = vdwg.mxu0
  %v2934 = vmax.f32 %v2583, %v2585
  %2935 = vmax.xlane.f32.xlu0 %v2934
  %v2936 = vpop.xlane.xlu0 %2935
  %v2937 = vmax.f32 %v2587, %v2589
  %2938 = vmax.xlane.f32.xlu0 %v2937
  %v2939 = vpop.xlane.xlu0 %2938
  %v2940 = vmax.f32 %v2593, %v2595
  %2941 = vmax.xlane.f32.xlu0 %v2940
  %v2942 = vpop.xlane.xlu0 %2941
  %v2943 = vmax.f32 %v2597, %v2599
  %2944 = vmax.xlane.f32.xlu0 %v2943
  %v2945 = vpop.xlane.xlu0 %2944
  %v2946 = vmax.f32 %v2603, %v2605
  %2947 = vmax.xlane.f32.xlu0 %v2946
  %v2948 = vpop.xlane.xlu0 %2947
  %v2949 = vmax.f32 %v2607, %v2609
  %2950 = vmax.xlane.f32.xlu0 %v2949
  %v2951 = vpop.xlane.xlu0 %2950
  %v2952 = vmax.f32 %v2613, %v2615
  %2953 = vmax.xlane.f32.xlu0 %v2952
  %v2954 = vpop.xlane.xlu0 %2953
  %v2955 = vmax.f32 %v2617, %v2619
  %2956 = vmax.xlane.f32.xlu0 %v2955
  %v2957 = vpop.xlane.xlu0 %2956
  %v2958 = vmax.f32 %v2623, %v2625
  %2959 = vmax.xlane.f32.xlu0 %v2958
  %v2960 = vpop.xlane.xlu0 %2959
  %v2961 = vmax.f32 %v2627, %v2629
  %2962 = vmax.xlane.f32.xlu0 %v2961
  %v2963 = vpop.xlane.xlu0 %2962
  %v2964 = vmax.f32 %v2633, %v2635
  %2965 = vmax.xlane.f32.xlu0 %v2964
  %v2966 = vpop.xlane.xlu0 %2965
  %v2967 = vmax.f32 %v2637, %v2639
  %2968 = vmax.xlane.f32.xlu0 %v2967
  %v2969 = vpop.xlane.xlu0 %2968
  %v2970 = vmax.f32 %v2643, %v2645
  %2971 = vmax.xlane.f32.xlu0 %v2970
  %v2972 = vpop.xlane.xlu0 %2971
  %v2973 = vmax.f32 %v2647, %v2649
  %2974 = vmax.xlane.f32.xlu0 %v2973
  %v2975 = vpop.xlane.xlu0 %2974
  %v2976 = vmax.f32 %v2653, %v2655
  %2977 = vmax.xlane.f32.xlu0 %v2976
  %v2978 = vpop.xlane.xlu0 %2977
  %v2979 = vmax.f32 %v2657, %v2659
  %2980 = vmax.xlane.f32.xlu0 %v2979
  %v2981 = vpop.xlane.xlu0 %2980
  %v2982 = vmax.f32 %v2663, %v2665
  %2983 = vmax.xlane.f32.xlu0 %v2982
  %v2984 = vpop.xlane.xlu0 %2983
  %v2985 = vmax.f32 %v2667, %v2669
  %2986 = vmax.xlane.f32.xlu0 %v2985
  %v2987 = vpop.xlane.xlu0 %2986
  %v2988 = vmax.f32 %v2673, %v2675
  %2989 = vmax.xlane.f32.xlu0 %v2988
  %v2990 = vpop.xlane.xlu0 %2989
  %v2991 = vmax.f32 %v2677, %v2679
  %2992 = vmax.xlane.f32.xlu0 %v2991
  %v2993 = vpop.xlane.xlu0 %2992
  %v2994 = vmax.f32 %v2683, %v2685
  %2995 = vmax.xlane.f32.xlu0 %v2994
  %v2996 = vpop.xlane.xlu0 %2995
  %v2997 = vmax.f32 %v2687, %v2689
  %2998 = vmax.xlane.f32.xlu0 %v2997
  %v2999 = vpop.xlane.xlu0 %2998
  %v3000 = vmax.f32 %v2693, %v2695
  %3001 = vmax.xlane.f32.xlu0 %v3000
  %v3002 = vpop.xlane.xlu0 %3001
  %v3003 = vmax.f32 %v2697, %v2699
  %3004 = vmax.xlane.f32.xlu0 %v3003
  %v3005 = vpop.xlane.xlu0 %3004
  %v3006 = vmax.f32 %v2703, %v2705
  %3007 = vmax.xlane.f32.xlu0 %v3006
  %v3008 = vpop.xlane.xlu0 %3007
  %v3009 = vmax.f32 %v2707, %v2709
  %3010 = vmax.xlane.f32.xlu0 %v3009
  %v3011 = vpop.xlane.xlu0 %3010
  %v3012 = vmax.f32 %v2713, %v2715
  %3013 = vmax.xlane.f32.xlu0 %v3012
  %v3014 = vpop.xlane.xlu0 %3013
  %v3015 = vmax.f32 %v2717, %v2719
  %3016 = vmax.xlane.f32.xlu0 %v3015
  %v3017 = vpop.xlane.xlu0 %3016
  %v3018 = vmax.f32 %v2723, %v2725
  %3019 = vmax.xlane.f32.xlu0 %v3018
  %v3020 = vpop.xlane.xlu0 %3019
  %v3021 = vmax.f32 %v2727, %v2729
  %3022 = vmax.xlane.f32.xlu0 %v3021
  %v3023 = vpop.xlane.xlu0 %3022
  %v3024 = vmax.f32 %v2733, %v2735
  %3025 = vmax.xlane.f32.xlu0 %v3024
  %v3026 = vpop.xlane.xlu0 %3025
  %v3027 = vmax.f32 %v2737, %v2739
  %3028 = vmax.xlane.f32.xlu0 %v3027
  %v3029 = vpop.xlane.xlu0 %3028
  %v3030 = vmax.f32 %v2776, %v2778
  %3031 = vmax.xlane.f32.xlu0 %v3030
  %v3032 = vpop.xlane.xlu0 %3031
  %v3033 = vmax.f32 %v2780, %v2782
  %3034 = vmax.xlane.f32.xlu0 %v3033
  %v3035 = vpop.xlane.xlu0 %3034
  %v3036 = vmax.f32 %v2786, %v2788
  %3037 = vmax.xlane.f32.xlu0 %v3036
  %v3038 = vpop.xlane.xlu0 %3037
  %v3039 = vmax.f32 %v2790, %v2792
  %3040 = vmax.xlane.f32.xlu0 %v3039
  %v3041 = vpop.xlane.xlu0 %3040
  %v3042 = vmax.f32 %v2796, %v2798
  %3043 = vmax.xlane.f32.xlu0 %v3042
  %v3044 = vpop.xlane.xlu0 %3043
  %v3045 = vmax.f32 %v2800, %v2802
  %3046 = vmax.xlane.f32.xlu0 %v3045
  %v3047 = vpop.xlane.xlu0 %3046
  %v3048 = vmax.f32 %v2806, %v2808
  %3049 = vmax.xlane.f32.xlu0 %v3048
  %v3050 = vpop.xlane.xlu0 %3049
  %v3051 = vmax.f32 %v2810, %v2812
  %3052 = vmax.xlane.f32.xlu0 %v3051
  %v3053 = vpop.xlane.xlu0 %3052
  %v3054 = vmax.f32 %v2816, %v2818
  %3055 = vmax.xlane.f32.xlu0 %v3054
  %v3056 = vpop.xlane.xlu0 %3055
  %v3057 = vmax.f32 %v2820, %v2822
  %3058 = vmax.xlane.f32.xlu0 %v3057
  %v3059 = vpop.xlane.xlu0 %3058
  %v3060 = vmax.f32 %v2826, %v2828
  %3061 = vmax.xlane.f32.xlu0 %v3060
  %v3062 = vpop.xlane.xlu0 %3061
  %v3063 = vmax.f32 %v2830, %v2832
  %3064 = vmax.xlane.f32.xlu0 %v3063
  %v3065 = vpop.xlane.xlu0 %3064
  %v3066 = vmax.f32 %v2836, %v2838
  %3067 = vmax.xlane.f32.xlu0 %v3066
  %v3068 = vpop.xlane.xlu0 %3067
  %v3069 = vmax.f32 %v2840, %v2842
  %3070 = vmax.xlane.f32.xlu0 %v3069
  %v3071 = vpop.xlane.xlu0 %3070
  %v3072 = vmax.f32 %v2846, %v2848
  %3073 = vmax.xlane.f32.xlu0 %v3072
  %v3074 = vpop.xlane.xlu0 %3073
  %v3075 = vmax.f32 %v2850, %v2852
  %3076 = vmax.xlane.f32.xlu0 %v3075
  %v3077 = vpop.xlane.xlu0 %3076
  %v3078 = vmax.f32 %v2856, %v2858
  %3079 = vmax.xlane.f32.xlu0 %v3078
  %v3080 = vpop.xlane.xlu0 %3079
  %v3081 = vmax.f32 %v2860, %v2862
  %3082 = vmax.xlane.f32.xlu0 %v3081
  %v3083 = vpop.xlane.xlu0 %3082
  %v3084 = vmax.f32 %v2866, %v2868
  %3085 = vmax.xlane.f32.xlu0 %v3084
  %v3086 = vpop.xlane.xlu0 %3085
  %v3087 = vmax.f32 %v2870, %v2872
  %3088 = vmax.xlane.f32.xlu0 %v3087
  %v3089 = vpop.xlane.xlu0 %3088
  %v3090 = vmax.f32 %v2876, %v2878
  %3091 = vmax.xlane.f32.xlu0 %v3090
  %v3092 = vpop.xlane.xlu0 %3091
  %v3093 = vmax.f32 %v2880, %v2882
  %3094 = vmax.xlane.f32.xlu0 %v3093
  %v3095 = vpop.xlane.xlu0 %3094
  %v3096 = vmax.f32 %v2886, %v2888
  %3097 = vmax.xlane.f32.xlu0 %v3096
  %v3098 = vpop.xlane.xlu0 %3097
  %v3099 = vmax.f32 %v2890, %v2892
  %3100 = vmax.xlane.f32.xlu0 %v3099
  %v3101 = vpop.xlane.xlu0 %3100
  %v3102 = vmax.f32 %v2896, %v2898
  %3103 = vmax.xlane.f32.xlu0 %v3102
  %v3104 = vpop.xlane.xlu0 %3103
  %v3105 = vmax.f32 %v2900, %v2902
  %3106 = vmax.xlane.f32.xlu0 %v3105
  %v3107 = vpop.xlane.xlu0 %3106
  %v3108 = vmax.f32 %v2906, %v2908
  %3109 = vmax.xlane.f32.xlu0 %v3108
  %v3110 = vpop.xlane.xlu0 %3109
  %v3111 = vmax.f32 %v2910, %v2912
  %3112 = vmax.xlane.f32.xlu0 %v3111
  %v3113 = vpop.xlane.xlu0 %3112
  %v3114 = vmax.f32 %v2916, %v2918
  %3115 = vmax.xlane.f32.xlu0 %v3114
  %v3116 = vpop.xlane.xlu0 %3115
  %v3117 = vmax.f32 %v2920, %v2922
  %3118 = vmax.xlane.f32.xlu0 %v3117
  %v3119 = vpop.xlane.xlu0 %3118
  %v3120 = vmax.f32 %v2926, %v2928
  %3121 = vmax.xlane.f32.xlu0 %v3120
  %v3122 = vpop.xlane.xlu0 %3121
  %v3123 = vmax.f32 %v2930, %v2932
  %3124 = vmax.xlane.f32.xlu0 %v3123
  %v3125 = vpop.xlane.xlu0 %3124
  %v3126 = vsub.f32 %v2583, %v2936
  %v3127 = vsub.f32 %v2585, %v2936
  %v3128 = vsub.f32 %v2587, %v2939
  %v3129 = vsub.f32 %v2589, %v2939
  %v3130 = vsub.f32 %v2593, %v2942
  %v3131 = vsub.f32 %v2595, %v2942
  %v3132 = vsub.f32 %v2597, %v2945
  %v3133 = vsub.f32 %v2599, %v2945
  %v3134 = vsub.f32 %v2603, %v2948
  %v3135 = vsub.f32 %v2605, %v2948
  %v3136 = vsub.f32 %v2607, %v2951
  %v3137 = vsub.f32 %v2609, %v2951
  %v3138 = vsub.f32 %v2613, %v2954
  %v3139 = vsub.f32 %v2615, %v2954
  %v3140 = vsub.f32 %v2617, %v2957
  %v3141 = vsub.f32 %v2619, %v2957
  %v3142 = vsub.f32 %v2623, %v2960
  %v3143 = vsub.f32 %v2625, %v2960
  %v3144 = vsub.f32 %v2627, %v2963
  %v3145 = vsub.f32 %v2629, %v2963
  %v3146 = vsub.f32 %v2633, %v2966
  %v3147 = vsub.f32 %v2635, %v2966
  %v3148 = vsub.f32 %v2637, %v2969
  %v3149 = vsub.f32 %v2639, %v2969
  %v3150 = vsub.f32 %v2643, %v2972
  %v3151 = vsub.f32 %v2645, %v2972
  %v3152 = vsub.f32 %v2647, %v2975
  %v3153 = vsub.f32 %v2649, %v2975
  %v3154 = vsub.f32 %v2653, %v2978
  %v3155 = vsub.f32 %v2655, %v2978
  %v3156 = vsub.f32 %v2657, %v2981
  %v3157 = vsub.f32 %v2659, %v2981
  %v3158 = vsub.f32 %v2663, %v2984
  %v3159 = vsub.f32 %v2665, %v2984
  %v3160 = vsub.f32 %v2667, %v2987
  %v3161 = vsub.f32 %v2669, %v2987
  %v3162 = vsub.f32 %v2673, %v2990
  %v3163 = vsub.f32 %v2675, %v2990
  %v3164 = vsub.f32 %v2677, %v2993
  %v3165 = vsub.f32 %v2679, %v2993
  %v3166 = vsub.f32 %v2683, %v2996
  %v3167 = vsub.f32 %v2685, %v2996
  %v3168 = vsub.f32 %v2687, %v2999
  %v3169 = vsub.f32 %v2689, %v2999
  %v3170 = vsub.f32 %v2693, %v3002
  %v3171 = vsub.f32 %v2695, %v3002
  %v3172 = vsub.f32 %v2697, %v3005
  %v3173 = vsub.f32 %v2699, %v3005
  %v3174 = vsub.f32 %v2703, %v3008
  %v3175 = vsub.f32 %v2705, %v3008
  %v3176 = vsub.f32 %v2707, %v3011
  %v3177 = vsub.f32 %v2709, %v3011
  %v3178 = vsub.f32 %v2713, %v3014
  %v3179 = vsub.f32 %v2715, %v3014
  %v3180 = vsub.f32 %v2717, %v3017
  %v3181 = vsub.f32 %v2719, %v3017
  %v3182 = vsub.f32 %v2723, %v3020
  %v3183 = vsub.f32 %v2725, %v3020
  %v3184 = vsub.f32 %v2727, %v3023
  %v3185 = vsub.f32 %v2729, %v3023
  %v3186 = vsub.f32 %v2733, %v3026
  %v3187 = vsub.f32 %v2735, %v3026
  %v3188 = vsub.f32 %v2737, %v3029
  %v3189 = vsub.f32 %v2739, %v3029
  %v3190 = vsub.f32 %v2776, %v3032
  %v3191 = vsub.f32 %v2778, %v3032
  %v3192 = vsub.f32 %v2780, %v3035
  %v3193 = vsub.f32 %v2782, %v3035
  %v3194 = vsub.f32 %v2786, %v3038
  %v3195 = vsub.f32 %v2788, %v3038
  %v3196 = vsub.f32 %v2790, %v3041
  %v3197 = vsub.f32 %v2792, %v3041
  %v3198 = vsub.f32 %v2796, %v3044
  %v3199 = vsub.f32 %v2798, %v3044
  %v3200 = vsub.f32 %v2800, %v3047
  %v3201 = vsub.f32 %v2802, %v3047
  %v3202 = vsub.f32 %v2806, %v3050
  %v3203 = vsub.f32 %v2808, %v3050
  %v3204 = vsub.f32 %v2810, %v3053
  %v3205 = vsub.f32 %v2812, %v3053
  %v3206 = vsub.f32 %v2816, %v3056
  %v3207 = vsub.f32 %v2818, %v3056
  %v3208 = vsub.f32 %v2820, %v3059
  %v3209 = vsub.f32 %v2822, %v3059
  %v3210 = vsub.f32 %v2826, %v3062
  %v3211 = vsub.f32 %v2828, %v3062
  %v3212 = vsub.f32 %v2830, %v3065
  %v3213 = vsub.f32 %v2832, %v3065
  %v3214 = vsub.f32 %v2836, %v3068
  %v3215 = vsub.f32 %v2838, %v3068
  %v3216 = vsub.f32 %v2840, %v3071
  %v3217 = vsub.f32 %v2842, %v3071
  %v3218 = vsub.f32 %v2846, %v3074
  %v3219 = vsub.f32 %v2848, %v3074
  %v3220 = vsub.f32 %v2850, %v3077
  %v3221 = vsub.f32 %v2852, %v3077
  %v3222 = vsub.f32 %v2856, %v3080
  %v3223 = vsub.f32 %v2858, %v3080
  %v3224 = vsub.f32 %v2860, %v3083
  %v3225 = vsub.f32 %v2862, %v3083
  %v3226 = vsub.f32 %v2866, %v3086
  %v3227 = vsub.f32 %v2868, %v3086
  %v3228 = vsub.f32 %v2870, %v3089
  %v3229 = vsub.f32 %v2872, %v3089
  %v3230 = vsub.f32 %v2876, %v3092
  %v3231 = vsub.f32 %v2878, %v3092
  %v3232 = vsub.f32 %v2880, %v3095
  %v3233 = vsub.f32 %v2882, %v3095
  %v3234 = vsub.f32 %v2886, %v3098
  %v3235 = vsub.f32 %v2888, %v3098
  %v3236 = vsub.f32 %v2890, %v3101
  %v3237 = vsub.f32 %v2892, %v3101
  %v3238 = vsub.f32 %v2896, %v3104
  %v3239 = vsub.f32 %v2898, %v3104
  %v3240 = vsub.f32 %v2900, %v3107
  %v3241 = vsub.f32 %v2902, %v3107
  %v3242 = vsub.f32 %v2906, %v3110
  %v3243 = vsub.f32 %v2908, %v3110
  %v3244 = vsub.f32 %v2910, %v3113
  %v3245 = vsub.f32 %v2912, %v3113
  %v3246 = vsub.f32 %v2916, %v3116
  %v3247 = vsub.f32 %v2918, %v3116
  %v3248 = vsub.f32 %v2920, %v3119
  %v3249 = vsub.f32 %v2922, %v3119
  %v3250 = vsub.f32 %v2926, %v3122
  %v3251 = vsub.f32 %v2928, %v3122
  %v3252 = vsub.f32 %v2930, %v3125
  %v3253 = vsub.f32 %v2932, %v3125
  %v3254 = vmul.f32 %v3126, 1.442695
  %v3255 = vpow.pop %v3254
  %v3256 = vmul.f32 %v3127, 1.442695
  %v3257 = vpow.pop %v3256
  %v3258 = vmul.f32 %v3128, 1.442695
  %v3259 = vpow.pop %v3258
  %v3260 = vmul.f32 %v3129, 1.442695
  %v3261 = vpow.pop %v3260
  %v3262 = vmul.f32 %v3130, 1.442695
  %v3263 = vpow.pop %v3262
  %v3264 = vmul.f32 %v3131, 1.442695
  %v3265 = vpow.pop %v3264
  %v3266 = vmul.f32 %v3132, 1.442695
  %v3267 = vpow.pop %v3266
  %v3268 = vmul.f32 %v3133, 1.442695
  %v3269 = vpow.pop %v3268
  %v3270 = vmul.f32 %v3134, 1.442695
  %v3271 = vpow.pop %v3270
  %v3272 = vmul.f32 %v3135, 1.442695
  %v3273 = vpow.pop %v3272
  %v3274 = vmul.f32 %v3136, 1.442695
  %v3275 = vpow.pop %v3274
  %v3276 = vmul.f32 %v3137, 1.442695
  %v3277 = vpow.pop %v3276
  %v3278 = vmul.f32 %v3138, 1.442695
  %v3279 = vpow.pop %v3278
  %v3280 = vmul.f32 %v3139, 1.442695
  %v3281 = vpow.pop %v3280
  %v3282 = vmul.f32 %v3140, 1.442695
  %v3283 = vpow.pop %v3282
  %v3284 = vmul.f32 %v3141, 1.442695
  %v3285 = vpow.pop %v3284
  %v3286 = vmul.f32 %v3142, 1.442695
  %v3287 = vpow.pop %v3286
  %v3288 = vmul.f32 %v3143, 1.442695
  %v3289 = vpow.pop %v3288
  %v3290 = vmul.f32 %v3144, 1.442695
  %v3291 = vpow.pop %v3290
  %v3292 = vmul.f32 %v3145, 1.442695
  %v3293 = vpow.pop %v3292
  %v3294 = vmul.f32 %v3146, 1.442695
  %v3295 = vpow.pop %v3294
  %v3296 = vmul.f32 %v3147, 1.442695
  %v3297 = vpow.pop %v3296
  %v3298 = vmul.f32 %v3148, 1.442695
  %v3299 = vpow.pop %v3298
  %v3300 = vmul.f32 %v3149, 1.442695
  %v3301 = vpow.pop %v3300
  %v3302 = vmul.f32 %v3150, 1.442695
  %v3303 = vpow.pop %v3302
  %v3304 = vmul.f32 %v3151, 1.442695
  %v3305 = vpow.pop %v3304
  %v3306 = vmul.f32 %v3152, 1.442695
  %v3307 = vpow.pop %v3306
  %v3308 = vmul.f32 %v3153, 1.442695
  %v3309 = vpow.pop %v3308
  %v3310 = vmul.f32 %v3154, 1.442695
  %v3311 = vpow.pop %v3310
  %v3312 = vmul.f32 %v3155, 1.442695
  %v3313 = vpow.pop %v3312
  %v3314 = vmul.f32 %v3156, 1.442695
  %v3315 = vpow.pop %v3314
  %v3316 = vmul.f32 %v3157, 1.442695
  %v3317 = vpow.pop %v3316
  %v3318 = vmul.f32 %v3158, 1.442695
  %v3319 = vpow.pop %v3318
  %v3320 = vmul.f32 %v3159, 1.442695
  %v3321 = vpow.pop %v3320
  %v3322 = vmul.f32 %v3160, 1.442695
  %v3323 = vpow.pop %v3322
  %v3324 = vmul.f32 %v3161, 1.442695
  %v3325 = vpow.pop %v3324
  %v3326 = vmul.f32 %v3162, 1.442695
  %v3327 = vpow.pop %v3326
  %v3328 = vmul.f32 %v3163, 1.442695
  %v3329 = vpow.pop %v3328
  %v3330 = vmul.f32 %v3164, 1.442695
  %v3331 = vpow.pop %v3330
  %v3332 = vmul.f32 %v3165, 1.442695
  %v3333 = vpow.pop %v3332
  %v3334 = vmul.f32 %v3166, 1.442695
  %v3335 = vpow.pop %v3334
  %v3336 = vmul.f32 %v3167, 1.442695
  %v3337 = vpow.pop %v3336
  %v3338 = vmul.f32 %v3168, 1.442695
  %v3339 = vpow.pop %v3338
  %v3340 = vmul.f32 %v3169, 1.442695
  %v3341 = vpow.pop %v3340
  %v3342 = vmul.f32 %v3170, 1.442695
  %v3343 = vpow.pop %v3342
  %v3344 = vmul.f32 %v3171, 1.442695
  %v3345 = vpow.pop %v3344
  %v3346 = vmul.f32 %v3172, 1.442695
  %v3347 = vpow.pop %v3346
  %v3348 = vmul.f32 %v3173, 1.442695
  %v3349 = vpow.pop %v3348
  %v3350 = vmul.f32 %v3174, 1.442695
  %v3351 = vpow.pop %v3350
  %v3352 = vmul.f32 %v3175, 1.442695
  %v3353 = vpow.pop %v3352
  %v3354 = vmul.f32 %v3176, 1.442695
  %v3355 = vpow.pop %v3354
  %v3356 = vmul.f32 %v3177, 1.442695
  %v3357 = vpow.pop %v3356
  %v3358 = vmul.f32 %v3178, 1.442695
  %v3359 = vpow.pop %v3358
  %v3360 = vmul.f32 %v3179, 1.442695
  %v3361 = vpow.pop %v3360
  %v3362 = vmul.f32 %v3180, 1.442695
  %v3363 = vpow.pop %v3362
  %v3364 = vmul.f32 %v3181, 1.442695
  %v3365 = vpow.pop %v3364
  %v3366 = vmul.f32 %v3182, 1.442695
  %v3367 = vpow.pop %v3366
  %v3368 = vmul.f32 %v3183, 1.442695
  %v3369 = vpow.pop %v3368
  %v3370 = vmul.f32 %v3184, 1.442695
  %v3371 = vpow.pop %v3370
  %v3372 = vmul.f32 %v3185, 1.442695
  %v3373 = vpow.pop %v3372
  %v3374 = vmul.f32 %v3186, 1.442695
  %v3375 = vpow.pop %v3374
  %v3376 = vmul.f32 %v3187, 1.442695
  %v3377 = vpow.pop %v3376
  %v3378 = vmul.f32 %v3188, 1.442695
  %v3379 = vpow.pop %v3378
  %v3380 = vmul.f32 %v3189, 1.442695
  %v3381 = vpow.pop %v3380
  %v3382 = vmul.f32 %v3190, 1.442695
  %v3383 = vpow.pop %v3382
  %v3384 = vmul.f32 %v3191, 1.442695
  %v3385 = vpow.pop %v3384
  %v3386 = vmul.f32 %v3192, 1.442695
  %v3387 = vpow.pop %v3386
  %v3388 = vmul.f32 %v3193, 1.442695
  %v3389 = vpow.pop %v3388
  %v3390 = vmul.f32 %v3194, 1.442695
  %v3391 = vpow.pop %v3390
  %v3392 = vmul.f32 %v3195, 1.442695
  %v3393 = vpow.pop %v3392
  %v3394 = vmul.f32 %v3196, 1.442695
  %v3395 = vpow.pop %v3394
  %v3396 = vmul.f32 %v3197, 1.442695
  %v3397 = vpow.pop %v3396
  %v3398 = vmul.f32 %v3198, 1.442695
  %v3399 = vpow.pop %v3398
  %v3400 = vmul.f32 %v3199, 1.442695
  %v3401 = vpow.pop %v3400
  %v3402 = vmul.f32 %v3200, 1.442695
  %v3403 = vpow.pop %v3402
  %v3404 = vmul.f32 %v3201, 1.442695
  %v3405 = vpow.pop %v3404
  %v3406 = vmul.f32 %v3202, 1.442695
  %v3407 = vpow.pop %v3406
  %v3408 = vmul.f32 %v3203, 1.442695
  %v3409 = vpow.pop %v3408
  %v3410 = vmul.f32 %v3204, 1.442695
  %v3411 = vpow.pop %v3410
  %v3412 = vmul.f32 %v3205, 1.442695
  %v3413 = vpow.pop %v3412
  %v3414 = vmul.f32 %v3206, 1.442695
  %v3415 = vpow.pop %v3414
  %v3416 = vmul.f32 %v3207, 1.442695
  %v3417 = vpow.pop %v3416
  %v3418 = vmul.f32 %v3208, 1.442695
  %v3419 = vpow.pop %v3418
  %v3420 = vmul.f32 %v3209, 1.442695
  %v3421 = vpow.pop %v3420
  %v3422 = vmul.f32 %v3210, 1.442695
  %v3423 = vpow.pop %v3422
  %v3424 = vmul.f32 %v3211, 1.442695
  %v3425 = vpow.pop %v3424
  %v3426 = vmul.f32 %v3212, 1.442695
  %v3427 = vpow.pop %v3426
  %v3428 = vmul.f32 %v3213, 1.442695
  %v3429 = vpow.pop %v3428
  %v3430 = vmul.f32 %v3214, 1.442695
  %v3431 = vpow.pop %v3430
  %v3432 = vmul.f32 %v3215, 1.442695
  %v3433 = vpow.pop %v3432
  %v3434 = vmul.f32 %v3216, 1.442695
  %v3435 = vpow.pop %v3434
  %v3436 = vmul.f32 %v3217, 1.442695
  %v3437 = vpow.pop %v3436
  %v3438 = vmul.f32 %v3218, 1.442695
  %v3439 = vpow.pop %v3438
  %v3440 = vmul.f32 %v3219, 1.442695
  %v3441 = vpow.pop %v3440
  %v3442 = vmul.f32 %v3220, 1.442695
  %v3443 = vpow.pop %v3442
  %v3444 = vmul.f32 %v3221, 1.442695
  %v3445 = vpow.pop %v3444
  %v3446 = vmul.f32 %v3222, 1.442695
  %v3447 = vpow.pop %v3446
  %v3448 = vmul.f32 %v3223, 1.442695
  %v3449 = vpow.pop %v3448
  %v3450 = vmul.f32 %v3224, 1.442695
  %v3451 = vpow.pop %v3450
  %v3452 = vmul.f32 %v3225, 1.442695
  %v3453 = vpow.pop %v3452
  %v3454 = vmul.f32 %v3226, 1.442695
  %v3455 = vpow.pop %v3454
  %v3456 = vmul.f32 %v3227, 1.442695
  %v3457 = vpow.pop %v3456
  %v3458 = vmul.f32 %v3228, 1.442695
  %v3459 = vpow.pop %v3458
  %v3460 = vmul.f32 %v3229, 1.442695
  %v3461 = vpow.pop %v3460
  %v3462 = vmul.f32 %v3230, 1.442695
  %v3463 = vpow.pop %v3462
  %v3464 = vmul.f32 %v3231, 1.442695
  %v3465 = vpow.pop %v3464
  %v3466 = vmul.f32 %v3232, 1.442695
  %v3467 = vpow.pop %v3466
  %v3468 = vmul.f32 %v3233, 1.442695
  %v3469 = vpow.pop %v3468
  %v3470 = vmul.f32 %v3234, 1.442695
  %v3471 = vpow.pop %v3470
  %v3472 = vmul.f32 %v3235, 1.442695
  %v3473 = vpow.pop %v3472
  %v3474 = vmul.f32 %v3236, 1.442695
  %v3475 = vpow.pop %v3474
  %v3476 = vmul.f32 %v3237, 1.442695
  %v3477 = vpow.pop %v3476
  %v3478 = vmul.f32 %v3238, 1.442695
  %v3479 = vpow.pop %v3478
  %v3480 = vmul.f32 %v3239, 1.442695
  %v3481 = vpow.pop %v3480
  %v3482 = vmul.f32 %v3240, 1.442695
  %v3483 = vpow.pop %v3482
  %v3484 = vmul.f32 %v3241, 1.442695
  %v3485 = vpow.pop %v3484
  %v3486 = vmul.f32 %v3242, 1.442695
  %v3487 = vpow.pop %v3486
  %v3488 = vmul.f32 %v3243, 1.442695
  %v3489 = vpow.pop %v3488
  %v3490 = vmul.f32 %v3244, 1.442695
  %v3491 = vpow.pop %v3490
  %v3492 = vmul.f32 %v3245, 1.442695
  %v3493 = vpow.pop %v3492
  %v3494 = vmul.f32 %v3246, 1.442695
  %v3495 = vpow.pop %v3494
  %v3496 = vmul.f32 %v3247, 1.442695
  %v3497 = vpow.pop %v3496
  %v3498 = vmul.f32 %v3248, 1.442695
  %v3499 = vpow.pop %v3498
  %v3500 = vmul.f32 %v3249, 1.442695
  %v3501 = vpow.pop %v3500
  %v3502 = vmul.f32 %v3250, 1.442695
  %v3503 = vpow.pop %v3502
  %v3504 = vmul.f32 %v3251, 1.442695
  %v3505 = vpow.pop %v3504
  %v3506 = vmul.f32 %v3252, 1.442695
  %v3507 = vpow.pop %v3506
  %v3508 = vmul.f32 %v3253, 1.442695
  %v3509 = vpow.pop %v3508
  %v3510 = vadd.f32 %v3255, %v3257
  %3511 = vadd.xlane.f32.xlu0 %v3510
  %v3512 = vpop.xlane.xlu0 %3511
  %v3513 = vadd.f32 %v3259, %v3261
  %3514 = vadd.xlane.f32.xlu0 %v3513
  %v3515 = vpop.xlane.xlu0 %3514
  %v3516 = vadd.f32 %v3263, %v3265
  %3517 = vadd.xlane.f32.xlu0 %v3516
  %v3518 = vpop.xlane.xlu0 %3517
  %v3519 = vadd.f32 %v3267, %v3269
  %3520 = vadd.xlane.f32.xlu0 %v3519
  %v3521 = vpop.xlane.xlu0 %3520
  %v3522 = vadd.f32 %v3271, %v3273
  %3523 = vadd.xlane.f32.xlu0 %v3522
  %v3524 = vpop.xlane.xlu0 %3523
  %v3525 = vadd.f32 %v3275, %v3277
  %3526 = vadd.xlane.f32.xlu0 %v3525
  %v3527 = vpop.xlane.xlu0 %3526
  %v3528 = vadd.f32 %v3279, %v3281
  %3529 = vadd.xlane.f32.xlu0 %v3528
  %v3530 = vpop.xlane.xlu0 %3529
  %v3531 = vadd.f32 %v3283, %v3285
  %3532 = vadd.xlane.f32.xlu0 %v3531
  %v3533 = vpop.xlane.xlu0 %3532
  %v3534 = vadd.f32 %v3287, %v3289
  %3535 = vadd.xlane.f32.xlu0 %v3534
  %v3536 = vpop.xlane.xlu0 %3535
  %v3537 = vadd.f32 %v3291, %v3293
  %3538 = vadd.xlane.f32.xlu0 %v3537
  %v3539 = vpop.xlane.xlu0 %3538
  %v3540 = vadd.f32 %v3295, %v3297
  %3541 = vadd.xlane.f32.xlu0 %v3540
  %v3542 = vpop.xlane.xlu0 %3541
  %v3543 = vadd.f32 %v3299, %v3301
  %3544 = vadd.xlane.f32.xlu0 %v3543
  %v3545 = vpop.xlane.xlu0 %3544
  %v3546 = vadd.f32 %v3303, %v3305
  %3547 = vadd.xlane.f32.xlu0 %v3546
  %v3548 = vpop.xlane.xlu0 %3547
  %v3549 = vadd.f32 %v3307, %v3309
  %3550 = vadd.xlane.f32.xlu0 %v3549
  %v3551 = vpop.xlane.xlu0 %3550
  %v3552 = vadd.f32 %v3311, %v3313
  %3553 = vadd.xlane.f32.xlu0 %v3552
  %v3554 = vpop.xlane.xlu0 %3553
  %v3555 = vadd.f32 %v3315, %v3317
  %3556 = vadd.xlane.f32.xlu0 %v3555
  %v3557 = vpop.xlane.xlu0 %3556
  %v3558 = vadd.f32 %v3319, %v3321
  %3559 = vadd.xlane.f32.xlu0 %v3558
  %v3560 = vpop.xlane.xlu0 %3559
  %v3561 = vadd.f32 %v3323, %v3325
  %3562 = vadd.xlane.f32.xlu0 %v3561
  %v3563 = vpop.xlane.xlu0 %3562
  %v3564 = vadd.f32 %v3327, %v3329
  %3565 = vadd.xlane.f32.xlu0 %v3564
  %v3566 = vpop.xlane.xlu0 %3565
  %v3567 = vadd.f32 %v3331, %v3333
  %3568 = vadd.xlane.f32.xlu0 %v3567
  %v3569 = vpop.xlane.xlu0 %3568
  %v3570 = vadd.f32 %v3335, %v3337
  %3571 = vadd.xlane.f32.xlu0 %v3570
  %v3572 = vpop.xlane.xlu0 %3571
  %v3573 = vadd.f32 %v3339, %v3341
  %3574 = vadd.xlane.f32.xlu0 %v3573
  %v3575 = vpop.xlane.xlu0 %3574
  %v3576 = vadd.f32 %v3343, %v3345
  %3577 = vadd.xlane.f32.xlu0 %v3576
  %v3578 = vpop.xlane.xlu0 %3577
  %v3579 = vadd.f32 %v3347, %v3349
  %3580 = vadd.xlane.f32.xlu0 %v3579
  %v3581 = vpop.xlane.xlu0 %3580
  %v3582 = vadd.f32 %v3351, %v3353
  %3583 = vadd.xlane.f32.xlu0 %v3582
  %v3584 = vpop.xlane.xlu0 %3583
  %v3585 = vadd.f32 %v3355, %v3357
  %3586 = vadd.xlane.f32.xlu0 %v3585
  %v3587 = vpop.xlane.xlu0 %3586
  %v3588 = vadd.f32 %v3359, %v3361
  %3589 = vadd.xlane.f32.xlu0 %v3588
  %v3590 = vpop.xlane.xlu0 %3589
  %v3591 = vadd.f32 %v3363, %v3365
  %3592 = vadd.xlane.f32.xlu0 %v3591
  %v3593 = vpop.xlane.xlu0 %3592
  %v3594 = vadd.f32 %v3367, %v3369
  %3595 = vadd.xlane.f32.xlu0 %v3594
  %v3596 = vpop.xlane.xlu0 %3595
  %v3597 = vadd.f32 %v3371, %v3373
  %3598 = vadd.xlane.f32.xlu0 %v3597
  %v3599 = vpop.xlane.xlu0 %3598
  %v3600 = vadd.f32 %v3375, %v3377
  %3601 = vadd.xlane.f32.xlu0 %v3600
  %v3602 = vpop.xlane.xlu0 %3601
  %v3603 = vadd.f32 %v3379, %v3381
  %3604 = vadd.xlane.f32.xlu0 %v3603
  %v3605 = vpop.xlane.xlu0 %3604
  %v3606 = vadd.f32 %v3383, %v3385
  %3607 = vadd.xlane.f32.xlu0 %v3606
  %v3608 = vpop.xlane.xlu0 %3607
  %v3609 = vadd.f32 %v3387, %v3389
  %3610 = vadd.xlane.f32.xlu0 %v3609
  %v3611 = vpop.xlane.xlu0 %3610
  %v3612 = vadd.f32 %v3391, %v3393
  %3613 = vadd.xlane.f32.xlu0 %v3612
  %v3614 = vpop.xlane.xlu0 %3613
  %v3615 = vadd.f32 %v3395, %v3397
  %3616 = vadd.xlane.f32.xlu0 %v3615
  %v3617 = vpop.xlane.xlu0 %3616
  %v3618 = vadd.f32 %v3399, %v3401
  %3619 = vadd.xlane.f32.xlu0 %v3618
  %v3620 = vpop.xlane.xlu0 %3619
  %v3621 = vadd.f32 %v3403, %v3405
  %3622 = vadd.xlane.f32.xlu0 %v3621
  %v3623 = vpop.xlane.xlu0 %3622
  %v3624 = vadd.f32 %v3407, %v3409
  %3625 = vadd.xlane.f32.xlu0 %v3624
  %v3626 = vpop.xlane.xlu0 %3625
  %v3627 = vadd.f32 %v3411, %v3413
  %3628 = vadd.xlane.f32.xlu0 %v3627
  %v3629 = vpop.xlane.xlu0 %3628
  %v3630 = vadd.f32 %v3415, %v3417
  %3631 = vadd.xlane.f32.xlu0 %v3630
  %v3632 = vpop.xlane.xlu0 %3631
  %v3633 = vadd.f32 %v3419, %v3421
  %3634 = vadd.xlane.f32.xlu0 %v3633
  %v3635 = vpop.xlane.xlu0 %3634
  %v3636 = vadd.f32 %v3423, %v3425
  %3637 = vadd.xlane.f32.xlu0 %v3636
  %v3638 = vpop.xlane.xlu0 %3637
  %v3639 = vadd.f32 %v3427, %v3429
  %3640 = vadd.xlane.f32.xlu0 %v3639
  %v3641 = vpop.xlane.xlu0 %3640
  %v3642 = vadd.f32 %v3431, %v3433
  %3643 = vadd.xlane.f32.xlu0 %v3642
  %v3644 = vpop.xlane.xlu0 %3643
  %v3645 = vadd.f32 %v3435, %v3437
  %3646 = vadd.xlane.f32.xlu0 %v3645
  %v3647 = vpop.xlane.xlu0 %3646
  %v3648 = vadd.f32 %v3439, %v3441
  %3649 = vadd.xlane.f32.xlu0 %v3648
  %v3650 = vpop.xlane.xlu0 %3649
  %v3651 = vadd.f32 %v3443, %v3445
  %3652 = vadd.xlane.f32.xlu0 %v3651
  %v3653 = vpop.xlane.xlu0 %3652
  %v3654 = vadd.f32 %v3447, %v3449
  %3655 = vadd.xlane.f32.xlu0 %v3654
  %v3656 = vpop.xlane.xlu0 %3655
  %v3657 = vadd.f32 %v3451, %v3453
  %3658 = vadd.xlane.f32.xlu0 %v3657
  %v3659 = vpop.xlane.xlu0 %3658
  %v3660 = vadd.f32 %v3455, %v3457
  %3661 = vadd.xlane.f32.xlu0 %v3660
  %v3662 = vpop.xlane.xlu0 %3661
  %v3663 = vadd.f32 %v3459, %v3461
  %3664 = vadd.xlane.f32.xlu0 %v3663
  %v3665 = vpop.xlane.xlu0 %3664
  %v3666 = vadd.f32 %v3463, %v3465
  %3667 = vadd.xlane.f32.xlu0 %v3666
  %v3668 = vpop.xlane.xlu0 %3667
  %v3669 = vadd.f32 %v3467, %v3469
  %3670 = vadd.xlane.f32.xlu0 %v3669
  %v3671 = vpop.xlane.xlu0 %3670
  %v3672 = vadd.f32 %v3471, %v3473
  %3673 = vadd.xlane.f32.xlu0 %v3672
  %v3674 = vpop.xlane.xlu0 %3673
  %v3675 = vadd.f32 %v3475, %v3477
  %3676 = vadd.xlane.f32.xlu0 %v3675
  %v3677 = vpop.xlane.xlu0 %3676
  %v3678 = vadd.f32 %v3479, %v3481
  %3679 = vadd.xlane.f32.xlu0 %v3678
  %v3680 = vpop.xlane.xlu0 %3679
  %v3681 = vadd.f32 %v3483, %v3485
  %3682 = vadd.xlane.f32.xlu0 %v3681
  %v3683 = vpop.xlane.xlu0 %3682
  %v3684 = vadd.f32 %v3487, %v3489
  %3685 = vadd.xlane.f32.xlu0 %v3684
  %v3686 = vpop.xlane.xlu0 %3685
  %v3687 = vadd.f32 %v3491, %v3493
  %3688 = vadd.xlane.f32.xlu0 %v3687
  %v3689 = vpop.xlane.xlu0 %3688
  %v3690 = vadd.f32 %v3495, %v3497
  %3691 = vadd.xlane.f32.xlu0 %v3690
  %v3692 = vpop.xlane.xlu0 %3691
  %v3693 = vadd.f32 %v3499, %v3501
  %3694 = vadd.xlane.f32.xlu0 %v3693
  %v3695 = vpop.xlane.xlu0 %3694
  %v3696 = vadd.f32 %v3503, %v3505
  %3697 = vadd.xlane.f32.xlu0 %v3696
  %v3698 = vpop.xlane.xlu0 %3697
  %v3699 = vadd.f32 %v3507, %v3509
  %3700 = vadd.xlane.f32.xlu0 %v3699
  %v3701 = vpop.xlane.xlu0 %3700
  %v3702 = vpack.c.bf16 %v3259, %v3255
  %v3703 = vpack.c.bf16 %v3261, %v3257
  %v3704 = vpack.c.bf16 %v3267, %v3263
  %v3705 = vpack.c.bf16 %v3269, %v3265
  %v3706 = vpack.c.bf16 %v3275, %v3271
  %v3707 = vpack.c.bf16 %v3277, %v3273
  %v3708 = vpack.c.bf16 %v3283, %v3279
  %v3709 = vpack.c.bf16 %v3285, %v3281
  %v3710 = vpack.c.bf16 %v3291, %v3287
  %v3711 = vpack.c.bf16 %v3293, %v3289
  %v3712 = vpack.c.bf16 %v3299, %v3295
  %v3713 = vpack.c.bf16 %v3301, %v3297
  %v3714 = vpack.c.bf16 %v3307, %v3303
  %v3715 = vpack.c.bf16 %v3309, %v3305
  %v3716 = vpack.c.bf16 %v3315, %v3311
  %v3717 = vpack.c.bf16 %v3317, %v3313
  %v3718 = vpack.c.bf16 %v3323, %v3319
  %v3719 = vpack.c.bf16 %v3325, %v3321
  %v3720 = vpack.c.bf16 %v3331, %v3327
  %v3721 = vpack.c.bf16 %v3333, %v3329
  %v3722 = vpack.c.bf16 %v3339, %v3335
  %v3723 = vpack.c.bf16 %v3341, %v3337
  %v3724 = vpack.c.bf16 %v3347, %v3343
  %v3725 = vpack.c.bf16 %v3349, %v3345
  %v3726 = vpack.c.bf16 %v3355, %v3351
  %v3727 = vpack.c.bf16 %v3357, %v3353
  %v3728 = vpack.c.bf16 %v3363, %v3359
  %v3729 = vpack.c.bf16 %v3365, %v3361
  %v3730 = vpack.c.bf16 %v3371, %v3367
  %v3731 = vpack.c.bf16 %v3373, %v3369
  %v3732 = vpack.c.bf16 %v3379, %v3375
  %v3733 = vpack.c.bf16 %v3381, %v3377
  %v3734 = vpack.c.bf16 %v3387, %v3383
  %v3735 = vpack.c.bf16 %v3389, %v3385
  %v3736 = vpack.c.bf16 %v3395, %v3391
  %v3737 = vpack.c.bf16 %v3397, %v3393
  %v3738 = vpack.c.bf16 %v3403, %v3399
  %v3739 = vpack.c.bf16 %v3405, %v3401
  %v3740 = vpack.c.bf16 %v3411, %v3407
  %v3741 = vpack.c.bf16 %v3413, %v3409
  %v3742 = vpack.c.bf16 %v3419, %v3415
  %v3743 = vpack.c.bf16 %v3421, %v3417
  %v3744 = vpack.c.bf16 %v3427, %v3423
  %v3745 = vpack.c.bf16 %v3429, %v3425
  %v3746 = vpack.c.bf16 %v3435, %v3431
  %v3747 = vpack.c.bf16 %v3437, %v3433
  %v3748 = vpack.c.bf16 %v3443, %v3439
  %v3749 = vpack.c.bf16 %v3445, %v3441
  %v3750 = vpack.c.bf16 %v3451, %v3447
  %v3751 = vpack.c.bf16 %v3453, %v3449
  %v3752 = vpack.c.bf16 %v3459, %v3455
  %v3753 = vpack.c.bf16 %v3461, %v3457
  %v3754 = vpack.c.bf16 %v3467, %v3463
  %v3755 = vpack.c.bf16 %v3469, %v3465
  %v3756 = vpack.c.bf16 %v3475, %v3471
  %v3757 = vpack.c.bf16 %v3477, %v3473
  %v3758 = vpack.c.bf16 %v3483, %v3479
  %v3759 = vpack.c.bf16 %v3485, %v3481
  %v3760 = vpack.c.bf16 %v3491, %v3487
  %v3761 = vpack.c.bf16 %v3493, %v3489
  %v3762 = vpack.c.bf16 %v3499, %v3495
  %v3763 = vpack.c.bf16 %v3501, %v3497
  %v3764 = vpack.c.bf16 %v3507, %v3503
  %v3765 = vpack.c.bf16 %v3509, %v3505
  %v3766 = vld [vmem:[#allocation4] sm:$0xff]
  %v3767 = vld [vmem:[#allocation4 + $0x8] sm:$0xff]
  %v3768 = vld [vmem:[#allocation4 + $0x10] sm:$0xff]
  %v3769 = vld [vmem:[#allocation4 + $0x18] sm:$0xff]
  %v3770 = vld [vmem:[#allocation4 + $0x20] sm:$0xff]
  %v3771 = vld [vmem:[#allocation4 + $0x28] sm:$0xff]
  %v3772 = vld [vmem:[#allocation4 + $0x30] sm:$0xff]
  %v3773 = vld [vmem:[#allocation4 + $0x38] sm:$0xff]
  %v3774 = vld [vmem:[#allocation4 + $0x40] sm:$0xff]
  %v3775 = vld [vmem:[#allocation4 + $0x48] sm:$0xff]
  %v3776 = vld [vmem:[#allocation4 + $0x50] sm:$0xff]
  %v3777 = vld [vmem:[#allocation4 + $0x58] sm:$0xff]
  %v3778 = vld [vmem:[#allocation4 + $0x60] sm:$0xff]
  %v3779 = vld [vmem:[#allocation4 + $0x68] sm:$0xff]
  %v3780 = vld [vmem:[#allocation4 + $0x70] sm:$0xff]
  %v3781 = vld [vmem:[#allocation4 + $0x78] sm:$0xff]
  %v3782 = vld [vmem:[#allocation4 + $0x80] sm:$0xff]
  %v3783 = vld [vmem:[#allocation4 + $0x88] sm:$0xff]
  %v3784 = vld [vmem:[#allocation4 + $0x90] sm:$0xff]
  %v3785 = vld [vmem:[#allocation4 + $0x98] sm:$0xff]
  %v3786 = vld [vmem:[#allocation4 + $0xa0] sm:$0xff]
  %v3787 = vld [vmem:[#allocation4 + $0xa8] sm:$0xff]
  %v3788 = vld [vmem:[#allocation4 + $0xb0] sm:$0xff]
  %v3789 = vld [vmem:[#allocation4 + $0xb8] sm:$0xff]
  %v3790 = vld [vmem:[#allocation4 + $0xc0] sm:$0xff]
  %v3791 = vld [vmem:[#allocation4 + $0xc8] sm:$0xff]
  %v3792 = vld [vmem:[#allocation4 + $0xd0] sm:$0xff]
  %v3793 = vld [vmem:[#allocation4 + $0xd8] sm:$0xff]
  %v3794 = vld [vmem:[#allocation4 + $0xe0] sm:$0xff]
  %v3795 = vld [vmem:[#allocation4 + $0xe8] sm:$0xff]
  %v3796 = vld [vmem:[#allocation4 + $0xf0] sm:$0xff]
  %v3797 = vld [vmem:[#allocation4 + $0xf8] sm:$0xff]
  %3798 = vmatprep.subr.bf16.mxu0 0
  %3799 = vmatpush1.bf16.msra.mxu0 %v3766
  %3800 = vmatprep.subr.bf16.mxu0 0
  %3801 = vmatpush1.bf16.msra.mxu0 %v3767
  %3802 = vmatprep.subr.bf16.mxu0 0
  %3803 = vmatpush1.bf16.msra.mxu0 %v3768
  %3804 = vmatprep.subr.bf16.mxu0 0
  %3805 = vmatpush1.bf16.msra.mxu0 %v3769
  %3806 = vmatprep.subr.bf16.mxu0 0
  %3807 = vmatpush1.bf16.msra.mxu0 %v3770
  %3808 = vmatprep.subr.bf16.mxu0 0
  %3809 = vmatpush1.bf16.msra.mxu0 %v3771
  %3810 = vmatprep.subr.bf16.mxu0 0
  %3811 = vmatpush1.bf16.msra.mxu0 %v3772
  %3812 = vmatprep.subr.bf16.mxu0 0
  %3813 = vmatpush1.bf16.msra.mxu0 %v3773
  %3814 = vmatprep.subr.bf16.mxu0 0
  %3815 = vmatpush1.bf16.msra.mxu0 %v3774
  %3816 = vmatprep.subr.bf16.mxu0 0
  %3817 = vmatpush1.bf16.msra.mxu0 %v3775
  %3818 = vmatprep.subr.bf16.mxu0 0
  %3819 = vmatpush1.bf16.msra.mxu0 %v3776
  %3820 = vmatprep.subr.bf16.mxu0 0
  %3821 = vmatpush1.bf16.msra.mxu0 %v3777
  %3822 = vmatprep.subr.bf16.mxu0 0
  %3823 = vmatpush1.bf16.msra.mxu0 %v3778
  %3824 = vmatprep.subr.bf16.mxu0 0
  %3825 = vmatpush1.bf16.msra.mxu0 %v3779
  %3826 = vmatprep.subr.bf16.mxu0 0
  %3827 = vmatpush1.bf16.msra.mxu0 %v3780
  %3828 = vmatprep.subr.bf16.mxu0 0
  %3829 = vmatpush1.bf16.msra.mxu0 %v3781
  %3830 = vmatprep.mubr.bf16.mxu0 %v3703
  %3831 = vmatmul.mubr.bf16.gmra.mrb[0].mxu0 %v3702
  %v3832 = vpop.f32.mrb[0].mxu0
  %v3833 = vadd.f32 0.0, %v3832
  %v3834 = vpop.f32.mrb[0].mxu0
  %v3835 = vpop.f32.mrb[0].mxu0
  %v3836 = vadd.f32 0.0, %v3835
  %v3837 = vpop.f32.mrb[0].mxu0
  %3838 = vmatprep.mubr.bf16.mxu0 %v3705
  %3839 = vmatmul.mubr.bf16.gmra.mrb[0].mxu0 %v3704
  %v3840 = vpop.f32.mrb[0].mxu0
  %v3841 = vadd.f32 0.0, %v3840
  %v3842 = vpop.f32.mrb[0].mxu0
  %v3843 = vpop.f32.mrb[0].mxu0
  %v3844 = vadd.f32 0.0, %v3843
  %v3845 = vpop.f32.mrb[0].mxu0
  %3846 = vmatprep.mubr.bf16.mxu0 %v3707
  %3847 = vmatmul.mubr.bf16.gmra.mrb[0].mxu0 %v3706
  %v3848 = vpop.f32.mrb[0].mxu0
  %v3849 = vadd.f32 0.0, %v3848
  %v3850 = vpop.f32.mrb[0].mxu0
  %v3851 = vpop.f32.mrb[0].mxu0
  %v3852 = vadd.f32 0.0, %v3851
  %v3853 = vpop.f32.mrb[0].mxu0
  %3854 = vmatprep.mubr.bf16.mxu0 %v3709
  %3855 = vmatmul.mubr.bf16.gmra.mrb[0].mxu0 %v3708
  %v3856 = vpop.f32.mrb[0].mxu0
  %v3857 = vadd.f32 0.0, %v3856
  %v3858 = vpop.f32.mrb[0].mxu0
  %v3859 = vpop.f32.mrb[0].mxu0
  %v3860 = vadd.f32 0.0, %v3859
  %v3861 = vpop.f32.mrb[0].mxu0
  %3862 = vmatprep.mubr.bf16.mxu0 %v3711
  %3863 = vmatmul.mubr.bf16.gmra.mrb[0].mxu0 %v3710
  %v3864 = vpop.f32.mrb[0].mxu0
  %v3865 = vadd.f32 0.0, %v3864
  %v3866 = vpop.f32.mrb[0].mxu0
  %v3867 = vpop.f32.mrb[0].mxu0
  %v3868 = vadd.f32 0.0, %v3867
  %v3869 = vpop.f32.mrb[0].mxu0
  %3870 = vmatprep.mubr.bf16.mxu0 %v3713
  %3871 = vmatmul.mubr.bf16.gmra.mrb[0].mxu0 %v3712
  %v3872 = vpop.f32.mrb[0].mxu0
  %v3873 = vadd.f32 0.0, %v3872
  %v3874 = vpop.f32.mrb[0].mxu0
  %v3875 = vpop.f32.mrb[0].mxu0
  %v3876 = vadd.f32 0.0, %v3875
  %v3877 = vpop.f32.mrb[0].mxu0
  %3878 = vmatprep.mubr.bf16.mxu0 %v3715
  %3879 = vmatmul.mubr.bf16.gmra.mrb[0].mxu0 %v3714
  %v3880 = vpop.f32.mrb[0].mxu0
  %v3881 = vadd.f32 0.0, %v3880
  %v3882 = vpop.f32.mrb[0].mxu0
  %v3883 = vpop.f32.mrb[0].mxu0
  %v3884 = vadd.f32 0.0, %v3883
  %v3885 = vpop.f32.mrb[0].mxu0
  %3886 = vmatprep.mubr.bf16.mxu0 %v3717
  %3887 = vmatmul.mubr.bf16.gmra.mrb[0].mxu0 %v3716
  %v3888 = vpop.f32.mrb[0].mxu0
  %v3889 = vadd.f32 0.0, %v3888
  %v3890 = vpop.f32.mrb[0].mxu0
  %v3891 = vpop.f32.mrb[0].mxu0
  %v3892 = vadd.f32 0.0, %v3891
  %v3893 = vpop.f32.mrb[0].mxu0
  %3894 = vmatprep.mubr.bf16.mxu0 %v3719
  %3895 = vmatmul.mubr.bf16.gmra.mrb[0].mxu0 %v3718
  %v3896 = vpop.f32.mrb[0].mxu0
  %v3897 = vadd.f32 0.0, %v3896
  %v3898 = vpop.f32.mrb[0].mxu0
  %v3899 = vpop.f32.mrb[0].mxu0
  %v3900 = vadd.f32 0.0, %v3899
  %v3901 = vpop.f32.mrb[0].mxu0
  %3902 = vmatprep.mubr.bf16.mxu0 %v3721
  %3903 = vmatmul.mubr.bf16.gmra.mrb[0].mxu0 %v3720
  %v3904 = vpop.f32.mrb[0].mxu0
  %v3905 = vadd.f32 0.0, %v3904
  %v3906 = vpop.f32.mrb[0].mxu0
  %v3907 = vpop.f32.mrb[0].mxu0
  %v3908 = vadd.f32 0.0, %v3907
  %v3909 = vpop.f32.mrb[0].mxu0
  %3910 = vmatprep.mubr.bf16.mxu0 %v3723
  %3911 = vmatmul.mubr.bf16.gmra.mrb[0].mxu0 %v3722
  %v3912 = vpop.f32.mrb[0].mxu0
  %v3913 = vadd.f32 0.0, %v3912
  %v3914 = vpop.f32.mrb[0].mxu0
  %v3915 = vpop.f32.mrb[0].mxu0
  %v3916 = vadd.f32 0.0, %v3915
  %v3917 = vpop.f32.mrb[0].mxu0
  %3918 = vmatprep.mubr.bf16.mxu0 %v3725
  %3919 = vmatmul.mubr.bf16.gmra.mrb[0].mxu0 %v3724
  %v3920 = vpop.f32.mrb[0].mxu0
  %v3921 = vadd.f32 0.0, %v3920
  %v3922 = vpop.f32.mrb[0].mxu0
  %v3923 = vpop.f32.mrb[0].mxu0
  %v3924 = vadd.f32 0.0, %v3923
  %v3925 = vpop.f32.mrb[0].mxu0
  %3926 = vmatprep.mubr.bf16.mxu0 %v3727
  %3927 = vmatmul.mubr.bf16.gmra.mrb[0].mxu0 %v3726
  %v3928 = vpop.f32.mrb[0].mxu0
  %v3929 = vadd.f32 0.0, %v3928
  %v3930 = vpop.f32.mrb[0].mxu0
  %v3931 = vpop.f32.mrb[0].mxu0
  %v3932 = vadd.f32 0.0, %v3931
  %v3933 = vpop.f32.mrb[0].mxu0
  %3934 = vmatprep.mubr.bf16.mxu0 %v3729
  %3935 = vmatmul.mubr.bf16.gmra.mrb[0].mxu0 %v3728
  %v3936 = vpop.f32.mrb[0].mxu0
  %v3937 = vadd.f32 0.0, %v3936
  %v3938 = vpop.f32.mrb[0].mxu0
  %v3939 = vpop.f32.mrb[0].mxu0
  %v3940 = vadd.f32 0.0, %v3939
  %v3941 = vpop.f32.mrb[0].mxu0
  %3942 = vmatprep.mubr.bf16.mxu0 %v3731
  %3943 = vmatmul.mubr.bf16.gmra.mrb[0].mxu0 %v3730
  %v3944 = vpop.f32.mrb[0].mxu0
  %v3945 = vadd.f32 0.0, %v3944
  %v3946 = vpop.f32.mrb[0].mxu0
  %v3947 = vpop.f32.mrb[0].mxu0
  %v3948 = vadd.f32 0.0, %v3947
  %v3949 = vpop.f32.mrb[0].mxu0
  %3950 = vmatprep.mubr.bf16.mxu0 %v3733
  %3951 = vmatmul.mubr.bf16.gmra.mrb[0].mxu0 %v3732
  %v3952 = vpop.f32.mrb[0].mxu0
  %v3953 = vadd.f32 0.0, %v3952
  %v3954 = vpop.f32.mrb[0].mxu0
  %v3955 = vpop.f32.mrb[0].mxu0
  %v3956 = vadd.f32 0.0, %v3955
  %v3957 = vpop.f32.mrb[0].mxu0
  %3958 = vdwg.mxu0
  %3959 = vmatprep.subr.bf16.mxu0 0
  %3960 = vmatpush1.bf16.msra.mxu0 %v3782
  %3961 = vmatprep.subr.bf16.mxu0 0
  %3962 = vmatpush1.bf16.msra.mxu0 %v3783
  %3963 = vmatprep.subr.bf16.mxu0 0
  %3964 = vmatpush1.bf16.msra.mxu0 %v3784
  %3965 = vmatprep.subr.bf16.mxu0 0
  %3966 = vmatpush1.bf16.msra.mxu0 %v3785
  %3967 = vmatprep.subr.bf16.mxu0 0
  %3968 = vmatpush1.bf16.msra.mxu0 %v3786
  %3969 = vmatprep.subr.bf16.mxu0 0
  %3970 = vmatpush1.bf16.msra.mxu0 %v3787
  %3971 = vmatprep.subr.bf16.mxu0 0
  %3972 = vmatpush1.bf16.msra.mxu0 %v3788
  %3973 = vmatprep.subr.bf16.mxu0 0
  %3974 = vmatpush1.bf16.msra.mxu0 %v3789
  %3975 = vmatprep.subr.bf16.mxu0 0
  %3976 = vmatpush1.bf16.msra.mxu0 %v3790
  %3977 = vmatprep.subr.bf16.mxu0 0
  %3978 = vmatpush1.bf16.msra.mxu0 %v3791
  %3979 = vmatprep.subr.bf16.mxu0 0
  %3980 = vmatpush1.bf16.msra.mxu0 %v3792
  %3981 = vmatprep.subr.bf16.mxu0 0
  %3982 = vmatpush1.bf16.msra.mxu0 %v3793
  %3983 = vmatprep.subr.bf16.mxu0 0
  %3984 = vmatpush1.bf16.msra.mxu0 %v3794
  %3985 = vmatprep.subr.bf16.mxu0 0
  %3986 = vmatpush1.bf16.msra.mxu0 %v3795
  %3987 = vmatprep.subr.bf16.mxu0 0
  %3988 = vmatpush1.bf16.msra.mxu0 %v3796
  %3989 = vmatprep.subr.bf16.mxu0 0
  %3990 = vmatpush1.bf16.msra.mxu0 %v3797
  %3991 = vmatprep.mubr.bf16.mxu0 %v3735
  %3992 = vmatmul.mubr.bf16.gmra.mrb[0].mxu0 %v3734
  %v3993 = vpop.f32.mrb[0].mxu0
  %v3994 = vadd.f32 0.0, %v3993
  %v3995 = vpop.f32.mrb[0].mxu0
  %v3996 = vpop.f32.mrb[0].mxu0
  %v3997 = vadd.f32 0.0, %v3996
  %v3998 = vpop.f32.mrb[0].mxu0
  %3999 = vmatprep.mubr.bf16.mxu0 %v3737
  %4000 = vmatmul.mubr.bf16.gmra.mrb[0].mxu0 %v3736
  %v4001 = vpop.f32.mrb[0].mxu0
  %v4002 = vadd.f32 0.0, %v4001
  %v4003 = vpop.f32.mrb[0].mxu0
  %v4004 = vpop.f32.mrb[0].mxu0
  %v4005 = vadd.f32 0.0, %v4004
  %v4006 = vpop.f32.mrb[0].mxu0
  %4007 = vmatprep.mubr.bf16.mxu0 %v3739
  %4008 = vmatmul.mubr.bf16.gmra.mrb[0].mxu0 %v3738
  %v4009 = vpop.f32.mrb[0].mxu0
  %v4010 = vadd.f32 0.0, %v4009
  %v4011 = vpop.f32.mrb[0].mxu0
  %v4012 = vpop.f32.mrb[0].mxu0
  %v4013 = vadd.f32 0.0, %v4012
  %v4014 = vpop.f32.mrb[0].mxu0
  %4015 = vmatprep.mubr.bf16.mxu0 %v3741
  %4016 = vmatmul.mubr.bf16.gmra.mrb[0].mxu0 %v3740
  %v4017 = vpop.f32.mrb[0].mxu0
  %v4018 = vadd.f32 0.0, %v4017
  %v4019 = vpop.f32.mrb[0].mxu0
  %v4020 = vpop.f32.mrb[0].mxu0
  %v4021 = vadd.f32 0.0, %v4020
  %v4022 = vpop.f32.mrb[0].mxu0
  %4023 = vmatprep.mubr.bf16.mxu0 %v3743
  %4024 = vmatmul.mubr.bf16.gmra.mrb[0].mxu0 %v3742
  %v4025 = vpop.f32.mrb[0].mxu0
  %v4026 = vadd.f32 0.0, %v4025
  %v4027 = vpop.f32.mrb[0].mxu0
  %v4028 = vpop.f32.mrb[0].mxu0
  %v4029 = vadd.f32 0.0, %v4028
  %v4030 = vpop.f32.mrb[0].mxu0
  %4031 = vmatprep.mubr.bf16.mxu0 %v3745
  %4032 = vmatmul.mubr.bf16.gmra.mrb[0].mxu0 %v3744
  %v4033 = vpop.f32.mrb[0].mxu0
  %v4034 = vadd.f32 0.0, %v4033
  %v4035 = vpop.f32.mrb[0].mxu0
  %v4036 = vpop.f32.mrb[0].mxu0
  %v4037 = vadd.f32 0.0, %v4036
  %v4038 = vpop.f32.mrb[0].mxu0
  %4039 = vmatprep.mubr.bf16.mxu0 %v3747
  %4040 = vmatmul.mubr.bf16.gmra.mrb[0].mxu0 %v3746
  %v4041 = vpop.f32.mrb[0].mxu0
  %v4042 = vadd.f32 0.0, %v4041
  %v4043 = vpop.f32.mrb[0].mxu0
  %v4044 = vpop.f32.mrb[0].mxu0
  %v4045 = vadd.f32 0.0, %v4044
  %v4046 = vpop.f32.mrb[0].mxu0
  %4047 = vmatprep.mubr.bf16.mxu0 %v3749
  %4048 = vmatmul.mubr.bf16.gmra.mrb[0].mxu0 %v3748
  %v4049 = vpop.f32.mrb[0].mxu0
  %v4050 = vadd.f32 0.0, %v4049
  %v4051 = vpop.f32.mrb[0].mxu0
  %v4052 = vpop.f32.mrb[0].mxu0
  %v4053 = vadd.f32 0.0, %v4052
  %v4054 = vpop.f32.mrb[0].mxu0
  %4055 = vmatprep.mubr.bf16.mxu0 %v3751
  %4056 = vmatmul.mubr.bf16.gmra.mrb[0].mxu0 %v3750
  %v4057 = vpop.f32.mrb[0].mxu0
  %v4058 = vadd.f32 0.0, %v4057
  %v4059 = vpop.f32.mrb[0].mxu0
  %v4060 = vpop.f32.mrb[0].mxu0
  %v4061 = vadd.f32 0.0, %v4060
  %v4062 = vpop.f32.mrb[0].mxu0
  %4063 = vmatprep.mubr.bf16.mxu0 %v3753
  %4064 = vmatmul.mubr.bf16.gmra.mrb[0].mxu0 %v3752
  %v4065 = vpop.f32.mrb[0].mxu0
  %v4066 = vadd.f32 0.0, %v4065
  %v4067 = vpop.f32.mrb[0].mxu0
  %v4068 = vpop.f32.mrb[0].mxu0
  %v4069 = vadd.f32 0.0, %v4068
  %v4070 = vpop.f32.mrb[0].mxu0
  %4071 = vmatprep.mubr.bf16.mxu0 %v3755
  %4072 = vmatmul.mubr.bf16.gmra.mrb[0].mxu0 %v3754
  %v4073 = vpop.f32.mrb[0].mxu0
  %v4074 = vadd.f32 0.0, %v4073
  %v4075 = vpop.f32.mrb[0].mxu0
  %v4076 = vpop.f32.mrb[0].mxu0
  %v4077 = vadd.f32 0.0, %v4076
  %v4078 = vpop.f32.mrb[0].mxu0
  %4079 = vmatprep.mubr.bf16.mxu0 %v3757
  %4080 = vmatmul.mubr.bf16.gmra.mrb[0].mxu0 %v3756
  %v4081 = vpop.f32.mrb[0].mxu0
  %v4082 = vadd.f32 0.0, %v4081
  %v4083 = vpop.f32.mrb[0].mxu0
  %v4084 = vpop.f32.mrb[0].mxu0
  %v4085 = vadd.f32 0.0, %v4084
  %v4086 = vpop.f32.mrb[0].mxu0
  %4087 = vmatprep.mubr.bf16.mxu0 %v3759
  %4088 = vmatmul.mubr.bf16.gmra.mrb[0].mxu0 %v3758
  %v4089 = vpop.f32.mrb[0].mxu0
  %v4090 = vadd.f32 0.0, %v4089
  %v4091 = vpop.f32.mrb[0].mxu0
  %v4092 = vpop.f32.mrb[0].mxu0
  %v4093 = vadd.f32 0.0, %v4092
  %v4094 = vpop.f32.mrb[0].mxu0
  %4095 = vmatprep.mubr.bf16.mxu0 %v3761
  %4096 = vmatmul.mubr.bf16.gmra.mrb[0].mxu0 %v3760
  %v4097 = vpop.f32.mrb[0].mxu0
  %v4098 = vadd.f32 0.0, %v4097
  %v4099 = vpop.f32.mrb[0].mxu0
  %v4100 = vpop.f32.mrb[0].mxu0
  %v4101 = vadd.f32 0.0, %v4100
  %v4102 = vpop.f32.mrb[0].mxu0
  %4103 = vmatprep.mubr.bf16.mxu0 %v3763
  %4104 = vmatmul.mubr.bf16.gmra.mrb[0].mxu0 %v3762
  %v4105 = vpop.f32.mrb[0].mxu0
  %v4106 = vadd.f32 0.0, %v4105
  %v4107 = vpop.f32.mrb[0].mxu0
  %v4108 = vpop.f32.mrb[0].mxu0
  %v4109 = vadd.f32 0.0, %v4108
  %v4110 = vpop.f32.mrb[0].mxu0
  %4111 = vmatprep.mubr.bf16.mxu0 %v3765
  %4112 = vmatmul.mubr.bf16.gmra.mrb[0].mxu0 %v3764
  %v4113 = vpop.f32.mrb[0].mxu0
  %v4114 = vadd.f32 0.0, %v4113
  %v4115 = vpop.f32.mrb[0].mxu0
  %v4116 = vpop.f32.mrb[0].mxu0
  %v4117 = vadd.f32 0.0, %v4116
  %v4118 = vpop.f32.mrb[0].mxu0
  %4119 = vdwg.mxu0
  %v4120 = vrcp.pop %v3512
  %v4121 = vrcp.pop %v3515
  %v4122 = vrcp.pop %v3518
  %v4123 = vrcp.pop %v3521
  %v4124 = vrcp.pop %v3524
  %v4125 = vrcp.pop %v3527
  %v4126 = vrcp.pop %v3530
  %v4127 = vrcp.pop %v3533
  %v4128 = vrcp.pop %v3536
  %v4129 = vrcp.pop %v3539
  %v4130 = vrcp.pop %v3542
  %v4131 = vrcp.pop %v3545
  %v4132 = vrcp.pop %v3548
  %v4133 = vrcp.pop %v3551
  %v4134 = vrcp.pop %v3554
  %v4135 = vrcp.pop %v3557
  %v4136 = vrcp.pop %v3560
  %v4137 = vrcp.pop %v3563
  %v4138 = vrcp.pop %v3566
  %v4139 = vrcp.pop %v3569
  %v4140 = vrcp.pop %v3572
  %v4141 = vrcp.pop %v3575
  %v4142 = vrcp.pop %v3578
  %v4143 = vrcp.pop %v3581
  %v4144 = vrcp.pop %v3584
  %v4145 = vrcp.pop %v3587
  %v4146 = vrcp.pop %v3590
  %v4147 = vrcp.pop %v3593
  %v4148 = vrcp.pop %v3596
  %v4149 = vrcp.pop %v3599
  %v4150 = vrcp.pop %v3602
  %v4151 = vrcp.pop %v3605
  %v4152 = vrcp.pop %v3608
  %v4153 = vrcp.pop %v3611
  %v4154 = vrcp.pop %v3614
  %v4155 = vrcp.pop %v3617
  %v4156 = vrcp.pop %v3620
  %v4157 = vrcp.pop %v3623
  %v4158 = vrcp.pop %v3626
  %v4159 = vrcp.pop %v3629
  %v4160 = vrcp.pop %v3632
  %v4161 = vrcp.pop %v3635
  %v4162 = vrcp.pop %v3638
  %v4163 = vrcp.pop %v3641
  %v4164 = vrcp.pop %v3644
  %v4165 = vrcp.pop %v3647
  %v4166 = vrcp.pop %v3650
  %v4167 = vrcp.pop %v3653
  %v4168 = vrcp.pop %v3656
  %v4169 = vrcp.pop %v3659
  %v4170 = vrcp.pop %v3662
  %v4171 = vrcp.pop %v3665
  %v4172 = vrcp.pop %v3668
  %v4173 = vrcp.pop %v3671
  %v4174 = vrcp.pop %v3674
  %v4175 = vrcp.pop %v3677
  %v4176 = vrcp.pop %v3680
  %v4177 = vrcp.pop %v3683
  %v4178 = vrcp.pop %v3686
  %v4179 = vrcp.pop %v3689
  %v4180 = vrcp.pop %v3692
  %v4181 = vrcp.pop %v3695
  %v4182 = vrcp.pop %v3698
  %v4183 = vrcp.pop %v3701
  %v4184 = vmul.f32 %v3833, %v4120
  %v4185 = vmul.f32 %v3836, %v4121
  %v4186 = vmul.f32 %v3841, %v4122
  %v4187 = vmul.f32 %v3844, %v4123
  %v4188 = vmul.f32 %v3849, %v4124
  %v4189 = vmul.f32 %v3852, %v4125
  %v4190 = vmul.f32 %v3857, %v4126
  %v4191 = vmul.f32 %v3860, %v4127
  %v4192 = vmul.f32 %v3865, %v4128
  %v4193 = vmul.f32 %v3868, %v4129
  %v4194 = vmul.f32 %v3873, %v4130
  %v4195 = vmul.f32 %v3876, %v4131
  %v4196 = vmul.f32 %v3881, %v4132
  %v4197 = vmul.f32 %v3884, %v4133
  %v4198 = vmul.f32 %v3889, %v4134
  %v4199 = vmul.f32 %v3892, %v4135
  %v4200 = vmul.f32 %v3897, %v4136
  %v4201 = vmul.f32 %v3900, %v4137
  %v4202 = vmul.f32 %v3905, %v4138
  %v4203 = vmul.f32 %v3908, %v4139
  %v4204 = vmul.f32 %v3913, %v4140
  %v4205 = vmul.f32 %v3916, %v4141
  %v4206 = vmul.f32 %v3921, %v4142
  %v4207 = vmul.f32 %v3924, %v4143
  %v4208 = vmul.f32 %v3929, %v4144
  %v4209 = vmul.f32 %v3932, %v4145
  %v4210 = vmul.f32 %v3937, %v4146
  %v4211 = vmul.f32 %v3940, %v4147
  %v4212 = vmul.f32 %v3945, %v4148
  %v4213 = vmul.f32 %v3948, %v4149
  %v4214 = vmul.f32 %v3953, %v4150
  %v4215 = vmul.f32 %v3956, %v4151
  %v4216 = vmul.f32 %v3994, %v4152
  %v4217 = vmul.f32 %v3997, %v4153
  %v4218 = vmul.f32 %v4002, %v4154
  %v4219 = vmul.f32 %v4005, %v4155
  %v4220 = vmul.f32 %v4010, %v4156
  %v4221 = vmul.f32 %v4013, %v4157
  %v4222 = vmul.f32 %v4018, %v4158
  %v4223 = vmul.f32 %v4021, %v4159
  %v4224 = vmul.f32 %v4026, %v4160
  %v4225 = vmul.f32 %v4029, %v4161
  %v4226 = vmul.f32 %v4034, %v4162
  %v4227 = vmul.f32 %v4037, %v4163
  %v4228 = vmul.f32 %v4042, %v4164
  %v4229 = vmul.f32 %v4045, %v4165
  %v4230 = vmul.f32 %v4050, %v4166
  %v4231 = vmul.f32 %v4053, %v4167
  %v4232 = vmul.f32 %v4058, %v4168
  %v4233 = vmul.f32 %v4061, %v4169
  %v4234 = vmul.f32 %v4066, %v4170
  %v4235 = vmul.f32 %v4069, %v4171
  %v4236 = vmul.f32 %v4074, %v4172
  %v4237 = vmul.f32 %v4077, %v4173
  %v4238 = vmul.f32 %v4082, %v4174
  %v4239 = vmul.f32 %v4085, %v4175
  %v4240 = vmul.f32 %v4090, %v4176
  %v4241 = vmul.f32 %v4093, %v4177
  %v4242 = vmul.f32 %v4098, %v4178
  %v4243 = vmul.f32 %v4101, %v4179
  %v4244 = vmul.f32 %v4106, %v4180
  %v4245 = vmul.f32 %v4109, %v4181
  %v4246 = vmul.f32 %v4114, %v4182
  %v4247 = vmul.f32 %v4117, %v4183
  %v4248 = vpack.c.bf16 %v4185, %v4184
  %v4249 = vpack.c.bf16 %v4187, %v4186
  %v4250 = vpack.c.bf16 %v4189, %v4188
  %v4251 = vpack.c.bf16 %v4191, %v4190
  %v4252 = vpack.c.bf16 %v4193, %v4192
  %v4253 = vpack.c.bf16 %v4195, %v4194
  %v4254 = vpack.c.bf16 %v4197, %v4196
  %v4255 = vpack.c.bf16 %v4199, %v4198
  %v4256 = vpack.c.bf16 %v4201, %v4200
  %v4257 = vpack.c.bf16 %v4203, %v4202
  %v4258 = vpack.c.bf16 %v4205, %v4204
  %v4259 = vpack.c.bf16 %v4207, %v4206
  %v4260 = vpack.c.bf16 %v4209, %v4208
  %v4261 = vpack.c.bf16 %v4211, %v4210
  %v4262 = vpack.c.bf16 %v4213, %v4212
  %v4263 = vpack.c.bf16 %v4215, %v4214
  %v4264 = vpack.c.bf16 %v4217, %v4216
  %v4265 = vpack.c.bf16 %v4219, %v4218
  %v4266 = vpack.c.bf16 %v4221, %v4220
  %v4267 = vpack.c.bf16 %v4223, %v4222
  %v4268 = vpack.c.bf16 %v4225, %v4224
  %v4269 = vpack.c.bf16 %v4227, %v4226
  %v4270 = vpack.c.bf16 %v4229, %v4228
  %v4271 = vpack.c.bf16 %v4231, %v4230
  %v4272 = vpack.c.bf16 %v4233, %v4232
  %v4273 = vpack.c.bf16 %v4235, %v4234
  %v4274 = vpack.c.bf16 %v4237, %v4236
  %v4275 = vpack.c.bf16 %v4239, %v4238
  %v4276 = vpack.c.bf16 %v4241, %v4240
  %v4277 = vpack.c.bf16 %v4243, %v4242
  %v4278 = vpack.c.bf16 %v4245, %v4244
  %v4279 = vpack.c.bf16 %v4247, %v4246
  %v4280 = vld [vmem:[%s5] sm:$0xf]
  %v4281 = vld [vmem:[%s5 + $0x4] sm:$0xf]
  %v4282 = vld [vmem:[%s5 + $0x8] sm:$0xf]
  %v4283 = vld [vmem:[%s5 + $0xc] sm:$0xf]
  %v4284 = vld [vmem:[%s5 + $0x10] sm:$0xf]
  %v4285 = vld [vmem:[%s5 + $0x14] sm:$0xf]
  %v4286 = vld [vmem:[%s5 + $0x18] sm:$0xf]
  %v4287 = vld [vmem:[%s5 + $0x1c] sm:$0xf]
  %v4288 = vld [vmem:[%s5 + $0x20] sm:$0xf]
  %v4289 = vld [vmem:[%s5 + $0x24] sm:$0xf]
  %v4290 = vld [vmem:[%s5 + $0x28] sm:$0xf]
  %v4291 = vld [vmem:[%s5 + $0x2c] sm:$0xf]
  %v4292 = vld [vmem:[%s5 + $0x30] sm:$0xf]
  %v4293 = vld [vmem:[%s5 + $0x34] sm:$0xf]
  %v4294 = vld [vmem:[%s5 + $0x38] sm:$0xf]
  %v4295 = vld [vmem:[%s5 + $0x3c] sm:$0xf]
  %v4296 = vld [vmem:[%s6] sm:$0x1]
  %v4298 = vlaneseq
  %v4299 = vshrl.u32 %v4298, 7
  %v4300 = vsub.s32 0, %v4299
  %v4301 = vrot.slane %v4296, %v4300
  %v4319 = vunpack.c.l.b16 %v4280
  %v4320 = vunpack.c.l.b16 %v4281
  %v4321 = vunpack.c.l.b16 %v4282
  %v4322 = vunpack.c.l.b16 %v4283
  %v4323 = vunpack.c.l.b16 %v4284
  %v4324 = vunpack.c.l.b16 %v4285
  %v4325 = vunpack.c.l.b16 %v4286
  %v4326 = vunpack.c.l.b16 %v4287
  %v4327 = vunpack.c.l.b16 %v4288
  %v4328 = vunpack.c.l.b16 %v4289
  %v4329 = vunpack.c.l.b16 %v4290
  %v4330 = vunpack.c.l.b16 %v4291
  %v4331 = vunpack.c.l.b16 %v4292
  %v4332 = vunpack.c.l.b16 %v4293
  %v4333 = vunpack.c.l.b16 %v4294
  %v4334 = vunpack.c.l.b16 %v4295
  %v4335 = vpack.c.b16 %v4320, %v4319
  %v4336 = vpack.c.b16 %v4322, %v4321
  %v4337 = vpack.c.b16 %v4324, %v4323
  %v4338 = vpack.c.b16 %v4326, %v4325
  %v4339 = vpack.c.b16 %v4328, %v4327
  %v4340 = vpack.c.b16 %v4330, %v4329
  %v4341 = vpack.c.b16 %v4332, %v4331
  %v4342 = vpack.c.b16 %v4334, %v4333
  %4351 = vmatprep.subr.bf16.mxu0 0
  %4352 = vmatpush1.bf16.msra.mxu0 %v4335
  %4353 = vmatprep.subr.bf16.mxu0 0
  %4354 = vmatpush1.bf16.msra.mxu0 %v4336
  %4355 = vmatprep.subr.bf16.mxu0 0
  %4356 = vmatpush1.bf16.msra.mxu0 %v4337
  %4357 = vmatprep.subr.bf16.mxu0 0
  %4358 = vmatpush1.bf16.msra.mxu0 %v4338
  %4359 = vmatprep.subr.bf16.mxu0 0
  %4360 = vmatpush1.bf16.msra.mxu0 %v4339
  %4361 = vmatprep.subr.bf16.mxu0 0
  %4362 = vmatpush1.bf16.msra.mxu0 %v4340
  %4363 = vmatprep.subr.bf16.mxu0 0
  %4364 = vmatpush1.bf16.msra.mxu0 %v4341
  %4365 = vmatprep.subr.bf16.mxu0 0
  %4366 = vmatpush1.bf16.msra.mxu0 %v4342
  %4367 = vmatprep.subr.bf16.mxu0 0
  %4368 = vmatpush1.bf16.msra.mxu0 0
  %4369 = vmatprep.subr.bf16.mxu0 0
  %4370 = vmatpush1.bf16.msra.mxu0 0
  %4371 = vmatprep.subr.bf16.mxu0 0
  %4372 = vmatpush1.bf16.msra.mxu0 0
  %4373 = vmatprep.subr.bf16.mxu0 0
  %4374 = vmatpush1.bf16.msra.mxu0 0
  %4375 = vmatprep.subr.bf16.mxu0 0
  %4376 = vmatpush1.bf16.msra.mxu0 0
  %4377 = vmatprep.subr.bf16.mxu0 0
  %4378 = vmatpush1.bf16.msra.mxu0 0
  %4379 = vmatprep.subr.bf16.mxu0 0
  %4380 = vmatpush1.bf16.msra.mxu0 0
  %4381 = vmatprep.subr.bf16.mxu0 0
  %4382 = vmatpush1.bf16.msra.mxu0 0
  %4383 = vmatprep.mubr.bf16.mxu0 0
  %4384 = vmatmul.mubr.bf16.gmra.mrb[0].mxu0 %v4248
  %v4385 = vpop.f32.mrb[0].mxu0
  %v4386 = vadd.f32 %v4301, %v4385
  %v4387 = vpop.f32.mrb[0].mxu0
  %v4388 = vpop.f32.mrb[0].mxu0
  %v4389 = vadd.f32 %v4301, %v4388
  %v4390 = vpop.f32.mrb[0].mxu0
  %4391 = vmatprep.mubr.bf16.mxu0 0
  %4392 = vmatmul.mubr.bf16.gmra.mrb[0].mxu0 %v4249
  %v4393 = vpop.f32.mrb[0].mxu0
  %v4394 = vadd.f32 %v4301, %v4393
  %v4395 = vpop.f32.mrb[0].mxu0
  %v4396 = vpop.f32.mrb[0].mxu0
  %v4397 = vadd.f32 %v4301, %v4396
  %v4398 = vpop.f32.mrb[0].mxu0
  %4399 = vmatprep.mubr.bf16.mxu0 0
  %4400 = vmatmul.mubr.bf16.gmra.mrb[0].mxu0 %v4250
  %v4401 = vpop.f32.mrb[0].mxu0
  %v4402 = vadd.f32 %v4301, %v4401
  %v4403 = vpop.f32.mrb[0].mxu0
  %v4404 = vpop.f32.mrb[0].mxu0
  %v4405 = vadd.f32 %v4301, %v4404
  %v4406 = vpop.f32.mrb[0].mxu0
  %4407 = vmatprep.mubr.bf16.mxu0 0
  %4408 = vmatmul.mubr.bf16.gmra.mrb[0].mxu0 %v4251
  %v4409 = vpop.f32.mrb[0].mxu0
  %v4410 = vadd.f32 %v4301, %v4409
  %v4411 = vpop.f32.mrb[0].mxu0
  %v4412 = vpop.f32.mrb[0].mxu0
  %v4413 = vadd.f32 %v4301, %v4412
  %v4414 = vpop.f32.mrb[0].mxu0
  %4415 = vmatprep.mubr.bf16.mxu0 0
  %4416 = vmatmul.mubr.bf16.gmra.mrb[0].mxu0 %v4252
  %v4417 = vpop.f32.mrb[0].mxu0
  %v4418 = vadd.f32 %v4301, %v4417
  %v4419 = vpop.f32.mrb[0].mxu0
  %v4420 = vpop.f32.mrb[0].mxu0
  %v4421 = vadd.f32 %v4301, %v4420
  %v4422 = vpop.f32.mrb[0].mxu0
  %4423 = vmatprep.mubr.bf16.mxu0 0
  %4424 = vmatmul.mubr.bf16.gmra.mrb[0].mxu0 %v4253
  %v4425 = vpop.f32.mrb[0].mxu0
  %v4426 = vadd.f32 %v4301, %v4425
  %v4427 = vpop.f32.mrb[0].mxu0
  %v4428 = vpop.f32.mrb[0].mxu0
  %v4429 = vadd.f32 %v4301, %v4428
  %v4430 = vpop.f32.mrb[0].mxu0
  %4431 = vmatprep.mubr.bf16.mxu0 0
  %4432 = vmatmul.mubr.bf16.gmra.mrb[0].mxu0 %v4254
  %v4433 = vpop.f32.mrb[0].mxu0
  %v4434 = vadd.f32 %v4301, %v4433
  %v4435 = vpop.f32.mrb[0].mxu0
  %v4436 = vpop.f32.mrb[0].mxu0
  %v4437 = vadd.f32 %v4301, %v4436
  %v4438 = vpop.f32.mrb[0].mxu0
  %4439 = vmatprep.mubr.bf16.mxu0 0
  %4440 = vmatmul.mubr.bf16.gmra.mrb[0].mxu0 %v4255
  %v4441 = vpop.f32.mrb[0].mxu0
  %v4442 = vadd.f32 %v4301, %v4441
  %v4443 = vpop.f32.mrb[0].mxu0
  %v4444 = vpop.f32.mrb[0].mxu0
  %v4445 = vadd.f32 %v4301, %v4444
  %v4446 = vpop.f32.mrb[0].mxu0
  %4447 = vmatprep.mubr.bf16.mxu0 0
  %4448 = vmatmul.mubr.bf16.gmra.mrb[0].mxu0 %v4256
  %v4449 = vpop.f32.mrb[0].mxu0
  %v4450 = vadd.f32 %v4301, %v4449
  %v4451 = vpop.f32.mrb[0].mxu0
  %v4452 = vpop.f32.mrb[0].mxu0
  %v4453 = vadd.f32 %v4301, %v4452
  %v4454 = vpop.f32.mrb[0].mxu0
  %4455 = vmatprep.mubr.bf16.mxu0 0
  %4456 = vmatmul.mubr.bf16.gmra.mrb[0].mxu0 %v4257
  %v4457 = vpop.f32.mrb[0].mxu0
  %v4458 = vadd.f32 %v4301, %v4457
  %v4459 = vpop.f32.mrb[0].mxu0
  %v4460 = vpop.f32.mrb[0].mxu0
  %v4461 = vadd.f32 %v4301, %v4460
  %v4462 = vpop.f32.mrb[0].mxu0
  %4463 = vmatprep.mubr.bf16.mxu0 0
  %4464 = vmatmul.mubr.bf16.gmra.mrb[0].mxu0 %v4258
  %v4465 = vpop.f32.mrb[0].mxu0
  %v4466 = vadd.f32 %v4301, %v4465
  %v4467 = vpop.f32.mrb[0].mxu0
  %v4468 = vpop.f32.mrb[0].mxu0
  %v4469 = vadd.f32 %v4301, %v4468
  %v4470 = vpop.f32.mrb[0].mxu0
  %4471 = vmatprep.mubr.bf16.mxu0 0
  %4472 = vmatmul.mubr.bf16.gmra.mrb[0].mxu0 %v4259
  %v4473 = vpop.f32.mrb[0].mxu0
  %v4474 = vadd.f32 %v4301, %v4473
  %v4475 = vpop.f32.mrb[0].mxu0
  %v4476 = vpop.f32.mrb[0].mxu0
  %v4477 = vadd.f32 %v4301, %v4476
  %v4478 = vpop.f32.mrb[0].mxu0
  %4479 = vmatprep.mubr.bf16.mxu0 0
  %4480 = vmatmul.mubr.bf16.gmra.mrb[0].mxu0 %v4260
  %v4481 = vpop.f32.mrb[0].mxu0
  %v4482 = vadd.f32 %v4301, %v4481
  %v4483 = vpop.f32.mrb[0].mxu0
  %v4484 = vpop.f32.mrb[0].mxu0
  %v4485 = vadd.f32 %v4301, %v4484
  %v4486 = vpop.f32.mrb[0].mxu0
  %4487 = vmatprep.mubr.bf16.mxu0 0
  %4488 = vmatmul.mubr.bf16.gmra.mrb[0].mxu0 %v4261
  %v4489 = vpop.f32.mrb[0].mxu0
  %v4490 = vadd.f32 %v4301, %v4489
  %v4491 = vpop.f32.mrb[0].mxu0
  %v4492 = vpop.f32.mrb[0].mxu0
  %v4493 = vadd.f32 %v4301, %v4492
  %v4494 = vpop.f32.mrb[0].mxu0
  %4495 = vmatprep.mubr.bf16.mxu0 0
  %4496 = vmatmul.mubr.bf16.gmra.mrb[0].mxu0 %v4262
  %v4497 = vpop.f32.mrb[0].mxu0
  %v4498 = vadd.f32 %v4301, %v4497
  %v4499 = vpop.f32.mrb[0].mxu0
  %v4500 = vpop.f32.mrb[0].mxu0
  %v4501 = vadd.f32 %v4301, %v4500
  %v4502 = vpop.f32.mrb[0].mxu0
  %4503 = vmatprep.mubr.bf16.mxu0 0
  %4504 = vmatmul.mubr.bf16.gmra.mrb[0].mxu0 %v4263
  %v4505 = vpop.f32.mrb[0].mxu0
  %v4506 = vadd.f32 %v4301, %v4505
  %v4507 = vpop.f32.mrb[0].mxu0
  %v4508 = vpop.f32.mrb[0].mxu0
  %v4509 = vadd.f32 %v4301, %v4508
  %v4510 = vpop.f32.mrb[0].mxu0
  %4511 = vmatprep.mubr.bf16.mxu0 0
  %4512 = vmatmul.mubr.bf16.gmra.mrb[0].mxu0 %v4264
  %v4513 = vpop.f32.mrb[0].mxu0
  %v4514 = vadd.f32 %v4301, %v4513
  %v4515 = vpop.f32.mrb[0].mxu0
  %v4516 = vpop.f32.mrb[0].mxu0
  %v4517 = vadd.f32 %v4301, %v4516
  %v4518 = vpop.f32.mrb[0].mxu0
  %4519 = vmatprep.mubr.bf16.mxu0 0
  %4520 = vmatmul.mubr.bf16.gmra.mrb[0].mxu0 %v4265
  %v4521 = vpop.f32.mrb[0].mxu0
  %v4522 = vadd.f32 %v4301, %v4521
  %v4523 = vpop.f32.mrb[0].mxu0
  %v4524 = vpop.f32.mrb[0].mxu0
  %v4525 = vadd.f32 %v4301, %v4524
  %v4526 = vpop.f32.mrb[0].mxu0
  %4527 = vmatprep.mubr.bf16.mxu0 0
  %4528 = vmatmul.mubr.bf16.gmra.mrb[0].mxu0 %v4266
  %v4529 = vpop.f32.mrb[0].mxu0
  %v4530 = vadd.f32 %v4301, %v4529
  %v4531 = vpop.f32.mrb[0].mxu0
  %v4532 = vpop.f32.mrb[0].mxu0
  %v4533 = vadd.f32 %v4301, %v4532
  %v4534 = vpop.f32.mrb[0].mxu0
  %4535 = vmatprep.mubr.bf16.mxu0 0
  %4536 = vmatmul.mubr.bf16.gmra.mrb[0].mxu0 %v4267
  %v4537 = vpop.f32.mrb[0].mxu0
  %v4538 = vadd.f32 %v4301, %v4537
  %v4539 = vpop.f32.mrb[0].mxu0
  %v4540 = vpop.f32.mrb[0].mxu0
  %v4541 = vadd.f32 %v4301, %v4540
  %v4542 = vpop.f32.mrb[0].mxu0
  %4543 = vmatprep.mubr.bf16.mxu0 0
  %4544 = vmatmul.mubr.bf16.gmra.mrb[0].mxu0 %v4268
  %v4545 = vpop.f32.mrb[0].mxu0
  %v4546 = vadd.f32 %v4301, %v4545
  %v4547 = vpop.f32.mrb[0].mxu0
  %v4548 = vpop.f32.mrb[0].mxu0
  %v4549 = vadd.f32 %v4301, %v4548
  %v4550 = vpop.f32.mrb[0].mxu0
  %4551 = vmatprep.mubr.bf16.mxu0 0
  %4552 = vmatmul.mubr.bf16.gmra.mrb[0].mxu0 %v4269
  %v4553 = vpop.f32.mrb[0].mxu0
  %v4554 = vadd.f32 %v4301, %v4553
  %v4555 = vpop.f32.mrb[0].mxu0
  %v4556 = vpop.f32.mrb[0].mxu0
  %v4557 = vadd.f32 %v4301, %v4556
  %v4558 = vpop.f32.mrb[0].mxu0
  %4559 = vmatprep.mubr.bf16.mxu0 0
  %4560 = vmatmul.mubr.bf16.gmra.mrb[0].mxu0 %v4270
  %v4561 = vpop.f32.mrb[0].mxu0
  %v4562 = vadd.f32 %v4301, %v4561
  %v4563 = vpop.f32.mrb[0].mxu0
  %v4564 = vpop.f32.mrb[0].mxu0
  %v4565 = vadd.f32 %v4301, %v4564
  %v4566 = vpop.f32.mrb[0].mxu0
  %4567 = vmatprep.mubr.bf16.mxu0 0
  %4568 = vmatmul.mubr.bf16.gmra.mrb[0].mxu0 %v4271
  %v4569 = vpop.f32.mrb[0].mxu0
  %v4570 = vadd.f32 %v4301, %v4569
  %v4571 = vpop.f32.mrb[0].mxu0
  %v4572 = vpop.f32.mrb[0].mxu0
  %v4573 = vadd.f32 %v4301, %v4572
  %v4574 = vpop.f32.mrb[0].mxu0
  %4575 = vmatprep.mubr.bf16.mxu0 0
  %4576 = vmatmul.mubr.bf16.gmra.mrb[0].mxu0 %v4272
  %v4577 = vpop.f32.mrb[0].mxu0
  %v4578 = vadd.f32 %v4301, %v4577
  %v4579 = vpop.f32.mrb[0].mxu0
  %v4580 = vpop.f32.mrb[0].mxu0
  %v4581 = vadd.f32 %v4301, %v4580
  %v4582 = vpop.f32.mrb[0].mxu0
  %4583 = vmatprep.mubr.bf16.mxu0 0
  %4584 = vmatmul.mubr.bf16.gmra.mrb[0].mxu0 %v4273
  %v4585 = vpop.f32.mrb[0].mxu0
  %v4586 = vadd.f32 %v4301, %v4585
  %v4587 = vpop.f32.mrb[0].mxu0
  %v4588 = vpop.f32.mrb[0].mxu0
  %v4589 = vadd.f32 %v4301, %v4588
  %v4590 = vpop.f32.mrb[0].mxu0
  %4591 = vmatprep.mubr.bf16.mxu0 0
  %4592 = vmatmul.mubr.bf16.gmra.mrb[0].mxu0 %v4274
  %v4593 = vpop.f32.mrb[0].mxu0
  %v4594 = vadd.f32 %v4301, %v4593
  %v4595 = vpop.f32.mrb[0].mxu0
  %v4596 = vpop.f32.mrb[0].mxu0
  %v4597 = vadd.f32 %v4301, %v4596
  %v4598 = vpop.f32.mrb[0].mxu0
  %4599 = vmatprep.mubr.bf16.mxu0 0
  %4600 = vmatmul.mubr.bf16.gmra.mrb[0].mxu0 %v4275
  %v4601 = vpop.f32.mrb[0].mxu0
  %v4602 = vadd.f32 %v4301, %v4601
  %v4603 = vpop.f32.mrb[0].mxu0
  %v4604 = vpop.f32.mrb[0].mxu0
  %v4605 = vadd.f32 %v4301, %v4604
  %v4606 = vpop.f32.mrb[0].mxu0
  %4607 = vmatprep.mubr.bf16.mxu0 0
  %4608 = vmatmul.mubr.bf16.gmra.mrb[0].mxu0 %v4276
  %v4609 = vpop.f32.mrb[0].mxu0
  %v4610 = vadd.f32 %v4301, %v4609
  %v4611 = vpop.f32.mrb[0].mxu0
  %v4612 = vpop.f32.mrb[0].mxu0
  %v4613 = vadd.f32 %v4301, %v4612
  %v4614 = vpop.f32.mrb[0].mxu0
  %4615 = vmatprep.mubr.bf16.mxu0 0
  %4616 = vmatmul.mubr.bf16.gmra.mrb[0].mxu0 %v4277
  %v4617 = vpop.f32.mrb[0].mxu0
  %v4618 = vadd.f32 %v4301, %v4617
  %v4619 = vpop.f32.mrb[0].mxu0
  %v4620 = vpop.f32.mrb[0].mxu0
  %v4621 = vadd.f32 %v4301, %v4620
  %v4622 = vpop.f32.mrb[0].mxu0
  %4623 = vmatprep.mubr.bf16.mxu0 0
  %4624 = vmatmul.mubr.bf16.gmra.mrb[0].mxu0 %v4278
  %v4625 = vpop.f32.mrb[0].mxu0
  %v4626 = vadd.f32 %v4301, %v4625
  %v4627 = vpop.f32.mrb[0].mxu0
  %v4628 = vpop.f32.mrb[0].mxu0
  %v4629 = vadd.f32 %v4301, %v4628
  %v4630 = vpop.f32.mrb[0].mxu0
  %4631 = vmatprep.mubr.bf16.mxu0 0
  %4632 = vmatmul.mubr.bf16.gmra.mrb[0].mxu0 %v4279
  %v4633 = vpop.f32.mrb[0].mxu0
  %v4634 = vadd.f32 %v4301, %v4633
  %v4635 = vpop.f32.mrb[0].mxu0
  %v4636 = vpop.f32.mrb[0].mxu0
  %v4637 = vadd.f32 %v4301, %v4636
  %v4638 = vpop.f32.mrb[0].mxu0
  %4639 = vdwg.mxu0
  %vm4640 = vcmask 261120
  %4641 = vst.msk [vmem:[%s7] sm:$0xff] %vm4640, %v4386
  %4642 = vst.msk [vmem:[%s7 + $0x8] sm:$0xff] %vm4640, %v4389
  %4643 = vst.msk [vmem:[%s7 + $0x10] sm:$0xff] %vm4640, %v4394
  %4644 = vst.msk [vmem:[%s7 + $0x18] sm:$0xff] %vm4640, %v4397
  %4645 = vst.msk [vmem:[%s7 + $0x20] sm:$0xff] %vm4640, %v4402
  %4646 = vst.msk [vmem:[%s7 + $0x28] sm:$0xff] %vm4640, %v4405
  %4647 = vst.msk [vmem:[%s7 + $0x30] sm:$0xff] %vm4640, %v4410
  %4648 = vst.msk [vmem:[%s7 + $0x38] sm:$0xff] %vm4640, %v4413
  %4649 = vst.msk [vmem:[%s7 + $0x40] sm:$0xff] %vm4640, %v4418
  %4650 = vst.msk [vmem:[%s7 + $0x48] sm:$0xff] %vm4640, %v4421
  %4651 = vst.msk [vmem:[%s7 + $0x50] sm:$0xff] %vm4640, %v4426
  %4652 = vst.msk [vmem:[%s7 + $0x58] sm:$0xff] %vm4640, %v4429
  %4653 = vst.msk [vmem:[%s7 + $0x60] sm:$0xff] %vm4640, %v4434
  %4654 = vst.msk [vmem:[%s7 + $0x68] sm:$0xff] %vm4640, %v4437
  %4655 = vst.msk [vmem:[%s7 + $0x70] sm:$0xff] %vm4640, %v4442
  %4656 = vst.msk [vmem:[%s7 + $0x78] sm:$0xff] %vm4640, %v4445
  %4657 = vst.msk [vmem:[%s7 + $0x80] sm:$0xff] %vm4640, %v4450
  %4658 = vst.msk [vmem:[%s7 + $0x88] sm:$0xff] %vm4640, %v4453
  %4659 = vst.msk [vmem:[%s7 + $0x90] sm:$0xff] %vm4640, %v4458
  %4660 = vst.msk [vmem:[%s7 + $0x98] sm:$0xff] %vm4640, %v4461
  %4661 = vst.msk [vmem:[%s7 + $0xa0] sm:$0xff] %vm4640, %v4466
  %4662 = vst.msk [vmem:[%s7 + $0xa8] sm:$0xff] %vm4640, %v4469
  %4663 = vst.msk [vmem:[%s7 + $0xb0] sm:$0xff] %vm4640, %v4474
  %4664 = vst.msk [vmem:[%s7 + $0xb8] sm:$0xff] %vm4640, %v4477
  %4665 = vst.msk [vmem:[%s7 + $0xc0] sm:$0xff] %vm4640, %v4482
  %4666 = vst.msk [vmem:[%s7 + $0xc8] sm:$0xff] %vm4640, %v4485
  %4667 = vst.msk [vmem:[%s7 + $0xd0] sm:$0xff] %vm4640, %v4490
  %4668 = vst.msk [vmem:[%s7 + $0xd8] sm:$0xff] %vm4640, %v4493
  %4669 = vst.msk [vmem:[%s7 + $0xe0] sm:$0xff] %vm4640, %v4498
  %4670 = vst.msk [vmem:[%s7 + $0xe8] sm:$0xff] %vm4640, %v4501
  %4671 = vst.msk [vmem:[%s7 + $0xf0] sm:$0xff] %vm4640, %v4506
  %4672 = vst.msk [vmem:[%s7 + $0xf8] sm:$0xff] %vm4640, %v4509
  %4673 = vst.msk [vmem:[%s7 + $0x100] sm:$0xff] %vm4640, %v4514
  %4674 = vst.msk [vmem:[%s7 + $0x108] sm:$0xff] %vm4640, %v4517
  %4675 = vst.msk [vmem:[%s7 + $0x110] sm:$0xff] %vm4640, %v4522
  %4676 = vst.msk [vmem:[%s7 + $0x118] sm:$0xff] %vm4640, %v4525
  %4677 = vst.msk [vmem:[%s7 + $0x120] sm:$0xff] %vm4640, %v4530
  %4678 = vst.msk [vmem:[%s7 + $0x128] sm:$0xff] %vm4640, %v4533
  %4679 = vst.msk [vmem:[%s7 + $0x130] sm:$0xff] %vm4640, %v4538
  %4680 = vst.msk [vmem:[%s7 + $0x138] sm:$0xff] %vm4640, %v4541
  %4681 = vst.msk [vmem:[%s7 + $0x140] sm:$0xff] %vm4640, %v4546
  %4682 = vst.msk [vmem:[%s7 + $0x148] sm:$0xff] %vm4640, %v4549
  %4683 = vst.msk [vmem:[%s7 + $0x150] sm:$0xff] %vm4640, %v4554
  %4684 = vst.msk [vmem:[%s7 + $0x158] sm:$0xff] %vm4640, %v4557
  %4685 = vst.msk [vmem:[%s7 + $0x160] sm:$0xff] %vm4640, %v4562
  %4686 = vst.msk [vmem:[%s7 + $0x168] sm:$0xff] %vm4640, %v4565
  %4687 = vst.msk [vmem:[%s7 + $0x170] sm:$0xff] %vm4640, %v4570
  %4688 = vst.msk [vmem:[%s7 + $0x178] sm:$0xff] %vm4640, %v4573
  %4689 = vst.msk [vmem:[%s7 + $0x180] sm:$0xff] %vm4640, %v4578
  %4690 = vst.msk [vmem:[%s7 + $0x188] sm:$0xff] %vm4640, %v4581
  %4691 = vst.msk [vmem:[%s7 + $0x190] sm:$0xff] %vm4640, %v4586
  %4692 = vst.msk [vmem:[%s7 + $0x198] sm:$0xff] %vm4640, %v4589
  %4693 = vst.msk [vmem:[%s7 + $0x1a0] sm:$0xff] %vm4640, %v4594
  %4694 = vst.msk [vmem:[%s7 + $0x1a8] sm:$0xff] %vm4640, %v4597
  %4695 = vst.msk [vmem:[%s7 + $0x1b0] sm:$0xff] %vm4640, %v4602
  %4696 = vst.msk [vmem:[%s7 + $0x1b8] sm:$0xff] %vm4640, %v4605
  %4697 = vst.msk [vmem:[%s7 + $0x1c0] sm:$0xff] %vm4640, %v4610
  %4698 = vst.msk [vmem:[%s7 + $0x1c8] sm:$0xff] %vm4640, %v4613
  %4699 = vst.msk [vmem:[%s7 + $0x1d0] sm:$0xff] %vm4640, %v4618
  %4700 = vst.msk [vmem:[%s7 + $0x1d8] sm:$0xff] %vm4640, %v4621
  %4701 = vst.msk [vmem:[%s7 + $0x1e0] sm:$0xff] %vm4640, %v4626
  %4702 = vst.msk [vmem:[%s7 + $0x1e8] sm:$0xff] %vm4640, %v4629
  %4703 = vst.msk [vmem:[%s7 + $0x1f0] sm:$0xff] %vm4640, %v4634
  %4704 = vst.msk [vmem:[%s7 + $0x1f8] sm:$0xff] %vm4640, %v4637
  // Predicated region
  $region34: #{tpu_custom_call.1} parent=0 // pred_check
    _
  $region35: #{tpu_custom_call.1} parent=0 // pred_check_branch
    %4706 = sbr.rel (0) target = $region37
  $region36: #{tpu_custom_call.1} parent=0 // pred_region
    _
  $region37: #{tpu_custom_call.1} parent=0 // pred_fallthru
    _
  // Predicated region
  $region38: #{tpu_custom_call.1} parent=0 // pred_check
    _
  $region39: #{tpu_custom_call.1} parent=0 // pred_check_branch
    %4708 = sbr.rel (0) target = $region41
  $region40: #{tpu_custom_call.1} parent=0 // pred_region
    _
  $region41: #{tpu_custom_call.1} parent=0 // pred_fallthru
    _

</llo_original>
